<compile_context>
chip_gen: v5e
topology: v5e:2x2
jax: 0.10.0
libtpu: 0.0.40
codegen_flags: <defaults>
</compile_context>

<pallas_src>
import numpy as np
import jax
import jax.numpy as jnp
from jax.experimental import pallas as pl
from jax.experimental.pallas import tpu as pltpu

BN_EPS = 1e-5

IN_CHANNELS = [16, 16, 32, 64, 64]
OUT_CHANNELS = [16, 16, 32, 64, 64]
OUT_SHAPES = [32, 32, 16, 8, 1]


# ----------------------------- Pallas kernel ---------------------------------
def make_fused_kernel(n_batch, cfg):
    """One gridless kernel body that processes all fused problems.

    cfg: tuple of dicts with static fields
         cin, cout, mhw (= H*W per sample), split (output-channel ranges that
         map one fused problem back to the original per-module output tensors).
    Everything is Python-unrolled at trace time (shapes differ per problem).
    """
    n_mod = len(cfg)

    def kernel(*refs):
        x_refs = refs[:n_mod]                 # each (N, Cin, HW)
        w_ref = refs[n_mod]                   # (n_mod, 64, 64) zero-padded
        gb_ref = refs[n_mod + 1]              # (n_mod, 64, 2): [...,0]=gamma, [...,1]=beta
        out_refs = refs[n_mod + 2:]           # per split range: (N, Cout_j, HW)

        out_i = 0
        for m, c in enumerate(cfg):
            cin, cout, mhw, split = c["cin"], c["cout"], c["mhw"], c["split"]
            inv_m = 1.0 / float(n_batch * mhw)          # static constant

            w = w_ref[m][:cout, :cin]                    # (Cout, Cin)
            gb = gb_ref[m]                               # (64, 2)
            gamma = gb[:cout, 0:1]                       # (Cout, 1)
            beta = gb[:cout, 1:2]                        # (Cout, 1)
            x_ref = x_refs[m]                            # (N, Cin, HW)

            if n_batch * mhw >= 64:
                # ---- BN stats on the MXU (Gram matrix) ----
                #   sumsq_c = sum_{b,p} t[c,p]^2 = row_c((w G) * w),  G = sum_b x_b x_b^T
                #   mean_c  = row_c(w sx) / M,                        sx = sum_{b,p} x[:,p]
                g = jnp.zeros((cin, cin), jnp.float32)
                sx = jnp.zeros((cin, 1), jnp.float32)
                for b in range(n_batch):                 # N=2, unrolled
                    xb = x_ref[b]                        # (Cin, HW)
                    g = g + jax.lax.dot_general(         # x @ x.T (NT form, no transpose op)
                        xb, xb, (((1,), (1,)), ((), ())),
                        preferred_element_type=jnp.float32)
                    sx = sx + jnp.sum(xb, axis=1, keepdims=True)
                mean = jnp.dot(w, sx, preferred_element_type=jnp.float32) * inv_m
                wg = jnp.dot(w, g, preferred_element_type=jnp.float32)       # (Cout, Cin)
                sumsq = jnp.sum(wg * w, axis=1, keepdims=True)
                var = jnp.maximum(sumsq * inv_m - mean * mean, 0.0)
                scale = jax.lax.rsqrt(var + BN_EPS) * gamma    # gamma folded into inv-std
                shift = beta - mean * scale
                for b in range(n_batch):
                    t = jnp.dot(w, x_ref[b], preferred_element_type=jnp.float32)
                    y = t * scale + shift                # single normalize+store sweep
                    for j, (lo, hi) in enumerate(split):
                        out_refs[out_i + j][b] = y[lo:hi]
            else:
                # ---- tiny problem (module 4: HW == 1): direct two-pass variance ----
                ts = [jnp.dot(w, x_ref[b], preferred_element_type=jnp.float32)
                      for b in range(n_batch)]
                s = ts[0]
                for t in ts[1:]:
                    s = s + t
                mean = jnp.sum(s, axis=1, keepdims=True) * inv_m
                sq = jnp.zeros((cout, 1), jnp.float32)
                for t in ts:
                    d = t - mean
                    sq = sq + jnp.sum(d * d, axis=1, keepdims=True)
                var = sq * inv_m
                scale = jax.lax.rsqrt(var + BN_EPS) * gamma
                shift = beta - mean * scale
                for b, t in enumerate(ts):
                    y = t * scale + shift
                    for j, (lo, hi) in enumerate(split):
                        out_refs[out_i + j][b] = y[lo:hi]
            out_i += len(split)

    return kernel


def fused_conv1x1_bn(xs, w_stack, gb_stack, cfg, n_batch):
    """xs[i]: (N, Cin_i, HW_i); returns one (N, Cout_j, HW_i) array per split range."""
    out_shapes = []
    for c in cfg:
        for lo, hi in c["split"]:
            out_shapes.append(
                jax.ShapeDtypeStruct((n_batch, hi - lo, c["mhw"]), jnp.float32))

    vmem = pl.BlockSpec(memory_space=pltpu.MemorySpace.VMEM)
    inputs = list(xs) + [w_stack, gb_stack]          # 4 + 2 = 6 input DMAs
    return pl.pallas_call(
        make_fused_kernel(n_batch, cfg),
        out_shape=tuple(out_shapes),                 # 5 output DMAs
        in_specs=[vmem] * len(inputs),
        out_specs=tuple(vmem for _ in out_shapes),
    )(*inputs)


# --------------------------- fusion-module glue -------------------------------
def nearest_resize_nchw(x, out_hw):
    # PyTorch F.interpolate(mode='nearest'): src = floor(dst * in / out)
    n, c, h, w = x.shape
    hi = (jnp.arange(out_hw) * h) // out_hw
    wi = (jnp.arange(out_hw) * w) // out_hw
    return x[:, :, hi, :][:, :, :, wi]


# ------------------------- deterministic parameters ---------------------------
def init_fusion_params(key, in_channels, out_channels):
    """Per-module (w, bias, gamma, beta) matching PyTorch Conv2d(1x1)+BatchNorm2d init."""
    params = []
    for i, (cin, cout) in enumerate(zip(in_channels, out_channels)):
        kw, kb = jax.random.split(jax.random.fold_in(key, i))
        # kaiming_uniform_(a=1): bound = sqrt(6 / ((1 + a^2) * fan_in)) = sqrt(3 / cin)
        bw = (3.0 / cin) ** 0.5
        w = jax.random.uniform(kw, (cout, cin), jnp.float32, -bw, bw)
        # default Conv2d bias init: U(-1/sqrt(fan_in), 1/sqrt(fan_in))
        bb = 1.0 / (cin ** 0.5)
        bias = jax.random.uniform(kb, (cout,), jnp.float32, -bb, bb)
        gamma = jnp.ones((cout,), jnp.float32)
        beta = jnp.zeros((cout,), jnp.float32)
        params.append((w, bias, gamma, beta))
    return params


def pack_fusion_params(params):
    """Pack per-module params into two DMA-friendly arrays (done once, outside jit).

    Modules 0 and 1 (identical 16->16 problems on the same spatial size) are merged
    block-diagonally into one 32->32 problem.  The conv bias is intentionally dropped:
    train-mode BatchNorm subtracts the batch mean right after the conv, cancelling it.
    """
    w0, _, g0, b0 = params[0]
    w1, _, g1, b1 = params[1]
    c0, k0 = w0.shape
    c1, k1 = w1.shape
    wm = jnp.zeros((c0 + c1, k0 + k1), jnp.float32)
    wm = wm.at[:c0, :k0].set(w0).at[c0:, k0:].set(w1)
    merged = [(wm, jnp.concatenate([g0, g1]), jnp.concatenate([b0, b1]))]
    merged += [(w, g, b) for (w, _, g, b) in params[2:]]

    n_mod = len(merged)
    cmax = max(w.shape[0] for w, _, _ in merged)     # 64
    kmax = max(w.shape[1] for w, _, _ in merged)     # 64
    w_stack = jnp.zeros((n_mod, cmax, kmax), jnp.float32)
    gb_stack = jnp.zeros((n_mod, cmax, 2), jnp.float32)
    for m, (w, g, b) in enumerate(merged):
        co, ci = w.shape
        w_stack = w_stack.at[m, :co, :ci].set(w)
        gb_stack = gb_stack.at[m, :co, 0].set(g)
        gb_stack = gb_stack.at[m, :co, 1].set(b)
    return w_stack, gb_stack


# ------------------------------ student stub ----------------------------------
def student_stub(x):
    # Produces 5 feature maps with channels [16,16,32,64,64] + preds (plain JAX glue).
    n = x.shape[0]
    f0 = jnp.tile(x, (1, 6, 1, 1))[:, :16]                           # (N,16,32,32)
    f1 = jnp.tile(x * 0.5 + 0.1, (1, 6, 1, 1))[:, :16]               # (N,16,32,32)
    p2 = x.reshape(n, 3, 16, 2, 16, 2).mean(axis=(3, 5))             # (N,3,16,16)
    f2 = jnp.tile(p2, (1, 11, 1, 1))[:, :32]                         # (N,32,16,16)
    p3 = x.reshape(n, 3, 8, 4, 8, 4).mean(axis=(3, 5))               # (N,3,8,8)
    f3 = jnp.tile(p3, (1, 22, 1, 1))[:, :64]                         # (N,64,8,8)
    p4 = x.mean(axis=(2, 3), keepdims=True)                          # (N,3,1,1)
    f4 = jnp.tile(p4, (1, 22, 1, 1))[:, :64]                         # (N,64,1,1)
    preds = f4[:, :10, 0, 0]                                         # (N,10)
    return [f0, f1, f2, f3, f4], preds


# ---------------------------- BaselineFramework --------------------------------
@jax.jit
def baseline_framework_forward(x, w_stack, gb_stack):
    student_features, student_preds = student_stub(x)
    f0, f1, f2, f3, f4 = student_features
    n = f0.shape[0]

    # Merge the two identical 16-channel modules along channels (block-diag weight).
    x01 = jnp.concatenate([f0, f1], axis=1)
    c0, c1 = OUT_CHANNELS[0], OUT_CHANNELS[1]
    problems = [
        (x01, ((0, c0), (c0, c0 + c1))),     # original modules 0 and 1
        (f2, ((0, OUT_CHANNELS[2]),)),       # module 2
        (f3, ((0, OUT_CHANNELS[3]),)),       # module 3
        (f4, ((0, OUT_CHANNELS[4]),)),       # module 4 (HW=1, masked stores)
    ]

    xs, cfg = [], []
    for f, split in problems:
        _, cin, h, w = f.shape
        xs.append(f.reshape(n, cin, h * w))          # free reshape of contiguous NCHW
        cfg.append(dict(cin=cin, cout=split[-1][1], mhw=h * w, split=split))

    ys = fused_conv1x1_bn(xs, w_stack, gb_stack, tuple(cfg), n)

    # ys maps 1:1 onto the original 5 module outputs; reshape back (free) + resize.
    hw_list = [f0.shape[2:], f1.shape[2:], f2.shape[2:], f3.shape[2:], f4.shape[2:]]
    results = []
    for y, (h, w), out_hw in zip(ys, hw_list, OUT_SHAPES):
        r = y.reshape(n, y.shape[1], h, w)
        if (h, w) != (out_hw, out_hw):               # identity at these shapes
            r = nearest_resize_nchw(r, out_hw)
        results.append(r)
    return results, student_preds


# ------------------------------ pure-JAX reference -----------------------------
def reference_forward(x, params):
    """Straightforward JAX version of the PyTorch module (conv+bias, train-mode BN)."""
    feats, preds = student_stub(x)
    results = []
    for f, (w, bias, gamma, beta), out_hw in zip(feats, params, OUT_SHAPES):
        t = jnp.einsum("co,nohw->nchw", w, f,
                       precision=jax.lax.Precision.HIGHEST)
        t = t + bias[None, :, None, None]
        mean = t.mean(axis=(0, 2, 3), keepdims=True)
        var = ((t - mean) ** 2).mean(axis=(0, 2, 3), keepdims=True)  # biased (train mode)
        y = (t - mean) * jax.lax.rsqrt(var + BN_EPS)
        y = y * gamma[None, :, None, None] + beta[None, :, None, None]
        if y.shape[-1] != out_hw:
            y = nearest_resize_nchw(y, out_hw)
        results.append(y)
    return results, preds


if __name__ == "__main__":
    key = jax.random.PRNGKey(0)
    k_x, k_p = jax.random.split(key)
    x = jax.random.normal(k_x, (2, 3, 32, 32), jnp.float32)  # small NCHW input
    params = init_fusion_params(k_p, IN_CHANNELS, OUT_CHANNELS)
    w_stack, gb_stack = pack_fusion_params(params)           # one-time param packing

    results, preds = baseline_framework_forward(x, w_stack, gb_stack)
    results = [jax.block_until_ready(r) for r in results]
    preds = jax.block_until_ready(preds)

    expected_shapes = [(2, c, s, s) for c, s in zip(OUT_CHANNELS, OUT_SHAPES)]
    assert [tuple(r.shape) for r in results] == expected_shapes, "bad output shapes"
    assert preds.shape == (2, 10)

    # Tolerance check vs. the straightforward reference (conv bias included there;
    # it cancels under train-mode BN, validating the bias-free fused kernel).
    ref_results, ref_preds = reference_forward(x, params)
    for r, rr in zip(results, ref_results):
        np.testing.assert_allclose(np.asarray(r), np.asarray(rr), rtol=2e-3, atol=2e-3)
    np.testing.assert_allclose(np.asarray(preds), np.asarray(ref_preds), rtol=1e-5, atol=1e-5)

    print("KERNEL_OK")
</pallas_src>

<mosaic_0001>
module attributes {stable_mosaic.version = 11 : i64} {
  func.func @kernel(%arg0: memref<2x32x1024xf32, #tpu.memory_space<vmem>>, %arg1: memref<2x32x256xf32, #tpu.memory_space<vmem>>, %arg2: memref<2x64x64xf32, #tpu.memory_space<vmem>>, %arg3: memref<2x64x1xf32, #tpu.memory_space<vmem>>, %arg4: memref<4x64x64xf32, #tpu.memory_space<vmem>>, %arg5: memref<4x64x2xf32, #tpu.memory_space<vmem>>, %arg6: memref<2x16x1024xf32, #tpu.memory_space<vmem>>, %arg7: memref<2x16x1024xf32, #tpu.memory_space<vmem>>, %arg8: memref<2x32x256xf32, #tpu.memory_space<vmem>>, %arg9: memref<2x64x64xf32, #tpu.memory_space<vmem>>, %arg10: memref<2x64x1xf32, #tpu.memory_space<vmem>>) attributes {dimension_semantics = [], scalar_prefetch = 0 : i64, scratch_operands = 0 : i64, tpu.core_type = #tpu.core_type<tc>} {
    %c0 = arith.constant 0 : index
    %c0_0 = arith.constant 0 : index
    %c0_1 = arith.constant 0 : index
    %0 = vector.load %arg4[%c0, %c0_0, %c0_1] : memref<4x64x64xf32, #tpu.memory_space<vmem>>, vector<1x64x64xf32>
    %1 = vector.shape_cast %0 : vector<1x64x64xf32> to vector<64x64xf32>
    %2 = vector.extract_strided_slice %1 {offsets = [0, 0], sizes = [32, 32], strides = [1, 1]} : vector<64x64xf32> to vector<32x32xf32>
    %c0_2 = arith.constant 0 : index
    %c0_3 = arith.constant 0 : index
    %c0_4 = arith.constant 0 : index
    %3 = vector.load %arg5[%c0_2, %c0_3, %c0_4] : memref<4x64x2xf32, #tpu.memory_space<vmem>>, vector<1x64x2xf32>
    %4 = vector.shape_cast %3 : vector<1x64x2xf32> to vector<64x2xf32>
    %5 = vector.extract_strided_slice %4 {offsets = [0, 0], sizes = [32, 1], strides = [1, 1]} : vector<64x2xf32> to vector<32x1xf32>
    %6 = vector.extract_strided_slice %4 {offsets = [0, 1], sizes = [32, 1], strides = [1, 1]} : vector<64x2xf32> to vector<32x1xf32>
    %cst = arith.constant 0.000000e+00 : f32
    %7 = vector.broadcast %cst : f32 to vector<32x32xf32>
    %cst_5 = arith.constant 0.000000e+00 : f32
    %8 = vector.broadcast %cst_5 : f32 to vector<32x1xf32>
    %c0_6 = arith.constant 0 : index
    %c0_7 = arith.constant 0 : index
    %c0_8 = arith.constant 0 : index
    %9 = vector.load %arg0[%c0_6, %c0_7, %c0_8] : memref<2x32x1024xf32, #tpu.memory_space<vmem>>, vector<1x32x1024xf32>
    %10 = vector.shape_cast %9 : vector<1x32x1024xf32> to vector<32x1024xf32>
    %cst_9 = arith.constant dense<0.000000e+00> : vector<32x32xf32>
    %11 = tpu.matmul %10, %10, %cst_9 {dimension_numbers = #tpu.dot_dimension_numbers<[1], [1], [0], [0], [0, 0, 1, 0], [], []>} : vector<32x1024xf32>, vector<32x1024xf32>, vector<32x32xf32> -> vector<32x32xf32>
    %12 = arith.addf %7, %11 : vector<32x32xf32>
    %cst_10 = arith.constant dense<0.000000e+00> : vector<32xf32>
    %13 = vector.multi_reduction <add>, %10, %cst_10 [1] : vector<32x1024xf32> to vector<32xf32>
    %14 = vector.shape_cast %13 : vector<32xf32> to vector<32x1xf32>
    %15 = arith.addf %8, %14 : vector<32x1xf32>
    %c1 = arith.constant 1 : index
    %c0_11 = arith.constant 0 : index
    %c0_12 = arith.constant 0 : index
    %16 = vector.load %arg0[%c1, %c0_11, %c0_12] : memref<2x32x1024xf32, #tpu.memory_space<vmem>>, vector<1x32x1024xf32>
    %17 = vector.shape_cast %16 : vector<1x32x1024xf32> to vector<32x1024xf32>
    %cst_13 = arith.constant dense<0.000000e+00> : vector<32x32xf32>
    %18 = tpu.matmul %17, %17, %cst_13 {dimension_numbers = #tpu.dot_dimension_numbers<[1], [1], [0], [0], [0, 0, 1, 0], [], []>} : vector<32x1024xf32>, vector<32x1024xf32>, vector<32x32xf32> -> vector<32x32xf32>
    %19 = arith.addf %12, %18 : vector<32x32xf32>
    %cst_14 = arith.constant dense<0.000000e+00> : vector<32xf32>
    %20 = vector.multi_reduction <add>, %17, %cst_14 [1] : vector<32x1024xf32> to vector<32xf32>
    %21 = vector.shape_cast %20 : vector<32xf32> to vector<32x1xf32>
    %22 = arith.addf %15, %21 : vector<32x1xf32>
    %cst_15 = arith.constant dense<0.000000e+00> : vector<32x1xf32>
    %23 = tpu.matmul %2, %22, %cst_15 {dimension_numbers = #tpu.dot_dimension_numbers<[1], [0], [0], [1], [0, 0, 1, 1], [], []>} : vector<32x32xf32>, vector<32x1xf32>, vector<32x1xf32> -> vector<32x1xf32>
    %cst_16 = arith.constant 4.8828125E-4 : f32
    %24 = vector.broadcast %cst_16 : f32 to vector<32x1xf32>
    %25 = arith.mulf %23, %24 : vector<32x1xf32>
    %cst_17 = arith.constant dense<0.000000e+00> : vector<32x32xf32>
    %26 = tpu.matmul %2, %19, %cst_17 {dimension_numbers = #tpu.dot_dimension_numbers<[1], [0], [0], [1], [0, 0, 1, 1], [], []>} : vector<32x32xf32>, vector<32x32xf32>, vector<32x32xf32> -> vector<32x32xf32>
    %27 = arith.mulf %26, %2 : vector<32x32xf32>
    %cst_18 = arith.constant dense<0.000000e+00> : vector<32xf32>
    %28 = vector.multi_reduction <add>, %27, %cst_18 [1] : vector<32x32xf32> to vector<32xf32>
    %29 = vector.shape_cast %28 : vector<32xf32> to vector<32x1xf32>
    %cst_19 = arith.constant 4.8828125E-4 : f32
    %30 = vector.broadcast %cst_19 : f32 to vector<32x1xf32>
    %31 = arith.mulf %29, %30 : vector<32x1xf32>
    %32 = arith.mulf %25, %25 : vector<32x1xf32>
    %33 = arith.subf %31, %32 : vector<32x1xf32>
    %cst_20 = arith.constant 0.000000e+00 : f32
    %34 = vector.broadcast %cst_20 : f32 to vector<32x1xf32>
    %35 = arith.maximumf %33, %34 : vector<32x1xf32>
    %cst_21 = arith.constant 9.99999974E-6 : f32
    %36 = vector.broadcast %cst_21 : f32 to vector<32x1xf32>
    %37 = arith.addf %35, %36 : vector<32x1xf32>
    %38 = math.rsqrt %37 : vector<32x1xf32>
    %39 = arith.mulf %38, %5 : vector<32x1xf32>
    %40 = arith.mulf %25, %39 : vector<32x1xf32>
    %41 = arith.subf %6, %40 : vector<32x1xf32>
    %c0_22 = arith.constant 0 : index
    %c0_23 = arith.constant 0 : index
    %c0_24 = arith.constant 0 : index
    %42 = vector.load %arg0[%c0_22, %c0_23, %c0_24] : memref<2x32x1024xf32, #tpu.memory_space<vmem>>, vector<1x32x1024xf32>
    %43 = vector.shape_cast %42 : vector<1x32x1024xf32> to vector<32x1024xf32>
    %cst_25 = arith.constant dense<0.000000e+00> : vector<32x1024xf32>
    %44 = tpu.matmul %2, %43, %cst_25 {dimension_numbers = #tpu.dot_dimension_numbers<[1], [0], [0], [1], [0, 0, 1, 1], [], []>} : vector<32x32xf32>, vector<32x1024xf32>, vector<32x1024xf32> -> vector<32x1024xf32>
    %45 = vector.broadcast %39 : vector<32x1xf32> to vector<32x1024xf32>
    %46 = arith.mulf %44, %45 : vector<32x1024xf32>
    %47 = vector.broadcast %41 : vector<32x1xf32> to vector<32x1024xf32>
    %48 = arith.addf %46, %47 : vector<32x1024xf32>
    %49 = vector.extract_strided_slice %48 {offsets = [0, 0], sizes = [16, 1024], strides = [1, 1]} : vector<32x1024xf32> to vector<16x1024xf32>
    %c0_26 = arith.constant 0 : index
    %c0_27 = arith.constant 0 : index
    %c0_28 = arith.constant 0 : index
    %50 = vector.load %arg6[%c0_26, %c0_27, %c0_28] : memref<2x16x1024xf32, #tpu.memory_space<vmem>>, vector<1x16x1024xf32>
    %51 = vector.shape_cast %50 : vector<1x16x1024xf32> to vector<16x1024xf32>
    %52 = vector.shape_cast %49 : vector<16x1024xf32> to vector<1x16x1024xf32>
    tpu.vector_store %arg6[%c0_26, %c0_27, %c0_28], %52 {strides = array<i32>} : memref<2x16x1024xf32, #tpu.memory_space<vmem>>, vector<1x16x1024xf32>,
    %53 = vector.extract_strided_slice %48 {offsets = [16, 0], sizes = [16, 1024], strides = [1, 1]} : vector<32x1024xf32> to vector<16x1024xf32>
    %c0_29 = arith.constant 0 : index
    %c0_30 = arith.constant 0 : index
    %c0_31 = arith.constant 0 : index
    %54 = vector.load %arg7[%c0_29, %c0_30, %c0_31] : memref<2x16x1024xf32, #tpu.memory_space<vmem>>, vector<1x16x1024xf32>
    %55 = vector.shape_cast %54 : vector<1x16x1024xf32> to vector<16x1024xf32>
    %56 = vector.shape_cast %53 : vector<16x1024xf32> to vector<1x16x1024xf32>
    tpu.vector_store %arg7[%c0_29, %c0_30, %c0_31], %56 {strides = array<i32>} : memref<2x16x1024xf32, #tpu.memory_space<vmem>>, vector<1x16x1024xf32>,
    %c1_32 = arith.constant 1 : index
    %c0_33 = arith.constant 0 : index
    %c0_34 = arith.constant 0 : index
    %57 = vector.load %arg0[%c1_32, %c0_33, %c0_34] : memref<2x32x1024xf32, #tpu.memory_space<vmem>>, vector<1x32x1024xf32>
    %58 = vector.shape_cast %57 : vector<1x32x1024xf32> to vector<32x1024xf32>
    %cst_35 = arith.constant dense<0.000000e+00> : vector<32x1024xf32>
    %59 = tpu.matmul %2, %58, %cst_35 {dimension_numbers = #tpu.dot_dimension_numbers<[1], [0], [0], [1], [0, 0, 1, 1], [], []>} : vector<32x32xf32>, vector<32x1024xf32>, vector<32x1024xf32> -> vector<32x1024xf32>
    %60 = vector.broadcast %39 : vector<32x1xf32> to vector<32x1024xf32>
    %61 = arith.mulf %59, %60 : vector<32x1024xf32>
    %62 = vector.broadcast %41 : vector<32x1xf32> to vector<32x1024xf32>
    %63 = arith.addf %61, %62 : vector<32x1024xf32>
    %64 = vector.extract_strided_slice %63 {offsets = [0, 0], sizes = [16, 1024], strides = [1, 1]} : vector<32x1024xf32> to vector<16x1024xf32>
    %c1_36 = arith.constant 1 : index
    %c0_37 = arith.constant 0 : index
    %c0_38 = arith.constant 0 : index
    %65 = vector.load %arg6[%c1_36, %c0_37, %c0_38] : memref<2x16x1024xf32, #tpu.memory_space<vmem>>, vector<1x16x1024xf32>
    %66 = vector.shape_cast %65 : vector<1x16x1024xf32> to vector<16x1024xf32>
    %67 = vector.shape_cast %64 : vector<16x1024xf32> to vector<1x16x1024xf32>
    tpu.vector_store %arg6[%c1_36, %c0_37, %c0_38], %67 {strides = array<i32>} : memref<2x16x1024xf32, #tpu.memory_space<vmem>>, vector<1x16x1024xf32>,
    %68 = vector.extract_strided_slice %63 {offsets = [16, 0], sizes = [16, 1024], strides = [1, 1]} : vector<32x1024xf32> to vector<16x1024xf32>
    %c1_39 = arith.constant 1 : index
    %c0_40 = arith.constant 0 : index
    %c0_41 = arith.constant 0 : index
    %69 = vector.load %arg7[%c1_39, %c0_40, %c0_41] : memref<2x16x1024xf32, #tpu.memory_space<vmem>>, vector<1x16x1024xf32>
    %70 = vector.shape_cast %69 : vector<1x16x1024xf32> to vector<16x1024xf32>
    %71 = vector.shape_cast %68 : vector<16x1024xf32> to vector<1x16x1024xf32>
    tpu.vector_store %arg7[%c1_39, %c0_40, %c0_41], %71 {strides = array<i32>} : memref<2x16x1024xf32, #tpu.memory_space<vmem>>, vector<1x16x1024xf32>,
    %c1_42 = arith.constant 1 : index
    %c0_43 = arith.constant 0 : index
    %c0_44 = arith.constant 0 : index
    %72 = vector.load %arg4[%c1_42, %c0_43, %c0_44] : memref<4x64x64xf32, #tpu.memory_space<vmem>>, vector<1x64x64xf32>
    %73 = vector.shape_cast %72 : vector<1x64x64xf32> to vector<64x64xf32>
    %74 = vector.extract_strided_slice %73 {offsets = [0, 0], sizes = [32, 32], strides = [1, 1]} : vector<64x64xf32> to vector<32x32xf32>
    %c1_45 = arith.constant 1 : index
    %c0_46 = arith.constant 0 : index
    %c0_47 = arith.constant 0 : index
    %75 = vector.load %arg5[%c1_45, %c0_46, %c0_47] : memref<4x64x2xf32, #tpu.memory_space<vmem>>, vector<1x64x2xf32>
    %76 = vector.shape_cast %75 : vector<1x64x2xf32> to vector<64x2xf32>
    %77 = vector.extract_strided_slice %76 {offsets = [0, 0], sizes = [32, 1], strides = [1, 1]} : vector<64x2xf32> to vector<32x1xf32>
    %78 = vector.extract_strided_slice %76 {offsets = [0, 1], sizes = [32, 1], strides = [1, 1]} : vector<64x2xf32> to vector<32x1xf32>
    %cst_48 = arith.constant 0.000000e+00 : f32
    %79 = vector.broadcast %cst_48 : f32 to vector<32x32xf32>
    %cst_49 = arith.constant 0.000000e+00 : f32
    %80 = vector.broadcast %cst_49 : f32 to vector<32x1xf32>
    %c0_50 = arith.constant 0 : index
    %c0_51 = arith.constant 0 : index
    %c0_52 = arith.constant 0 : index
    %81 = vector.load %arg1[%c0_50, %c0_51, %c0_52] : memref<2x32x256xf32, #tpu.memory_space<vmem>>, vector<1x32x256xf32>
    %82 = vector.shape_cast %81 : vector<1x32x256xf32> to vector<32x256xf32>
    %cst_53 = arith.constant dense<0.000000e+00> : vector<32x32xf32>
    %83 = tpu.matmul %82, %82, %cst_53 {dimension_numbers = #tpu.dot_dimension_numbers<[1], [1], [0], [0], [0, 0, 1, 0], [], []>} : vector<32x256xf32>, vector<32x256xf32>, vector<32x32xf32> -> vector<32x32xf32>
    %84 = arith.addf %79, %83 : vector<32x32xf32>
    %cst_54 = arith.constant dense<0.000000e+00> : vector<32xf32>
    %85 = vector.multi_reduction <add>, %82, %cst_54 [1] : vector<32x256xf32> to vector<32xf32>
    %86 = vector.shape_cast %85 : vector<32xf32> to vector<32x1xf32>
    %87 = arith.addf %80, %86 : vector<32x1xf32>
    %c1_55 = arith.constant 1 : index
    %c0_56 = arith.constant 0 : index
    %c0_57 = arith.constant 0 : index
    %88 = vector.load %arg1[%c1_55, %c0_56, %c0_57] : memref<2x32x256xf32, #tpu.memory_space<vmem>>, vector<1x32x256xf32>
    %89 = vector.shape_cast %88 : vector<1x32x256xf32> to vector<32x256xf32>
    %cst_58 = arith.constant dense<0.000000e+00> : vector<32x32xf32>
    %90 = tpu.matmul %89, %89, %cst_58 {dimension_numbers = #tpu.dot_dimension_numbers<[1], [1], [0], [0], [0, 0, 1, 0], [], []>} : vector<32x256xf32>, vector<32x256xf32>, vector<32x32xf32> -> vector<32x32xf32>
    %91 = arith.addf %84, %90 : vector<32x32xf32>
    %cst_59 = arith.constant dense<0.000000e+00> : vector<32xf32>
    %92 = vector.multi_reduction <add>, %89, %cst_59 [1] : vector<32x256xf32> to vector<32xf32>
    %93 = vector.shape_cast %92 : vector<32xf32> to vector<32x1xf32>
    %94 = arith.addf %87, %93 : vector<32x1xf32>
    %cst_60 = arith.constant dense<0.000000e+00> : vector<32x1xf32>
    %95 = tpu.matmul %74, %94, %cst_60 {dimension_numbers = #tpu.dot_dimension_numbers<[1], [0], [0], [1], [0, 0, 1, 1], [], []>} : vector<32x32xf32>, vector<32x1xf32>, vector<32x1xf32> -> vector<32x1xf32>
    %cst_61 = arith.constant 0.001953125 : f32
    %96 = vector.broadcast %cst_61 : f32 to vector<32x1xf32>
    %97 = arith.mulf %95, %96 : vector<32x1xf32>
    %cst_62 = arith.constant dense<0.000000e+00> : vector<32x32xf32>
    %98 = tpu.matmul %74, %91, %cst_62 {dimension_numbers = #tpu.dot_dimension_numbers<[1], [0], [0], [1], [0, 0, 1, 1], [], []>} : vector<32x32xf32>, vector<32x32xf32>, vector<32x32xf32> -> vector<32x32xf32>
    %99 = arith.mulf %98, %74 : vector<32x32xf32>
    %cst_63 = arith.constant dense<0.000000e+00> : vector<32xf32>
    %100 = vector.multi_reduction <add>, %99, %cst_63 [1] : vector<32x32xf32> to vector<32xf32>
    %101 = vector.shape_cast %100 : vector<32xf32> to vector<32x1xf32>
    %cst_64 = arith.constant 0.001953125 : f32
    %102 = vector.broadcast %cst_64 : f32 to vector<32x1xf32>
    %103 = arith.mulf %101, %102 : vector<32x1xf32>
    %104 = arith.mulf %97, %97 : vector<32x1xf32>
    %105 = arith.subf %103, %104 : vector<32x1xf32>
    %cst_65 = arith.constant 0.000000e+00 : f32
    %106 = vector.broadcast %cst_65 : f32 to vector<32x1xf32>
    %107 = arith.maximumf %105, %106 : vector<32x1xf32>
    %cst_66 = arith.constant 9.99999974E-6 : f32
    %108 = vector.broadcast %cst_66 : f32 to vector<32x1xf32>
    %109 = arith.addf %107, %108 : vector<32x1xf32>
    %110 = math.rsqrt %109 : vector<32x1xf32>
    %111 = arith.mulf %110, %77 : vector<32x1xf32>
    %112 = arith.mulf %97, %111 : vector<32x1xf32>
    %113 = arith.subf %78, %112 : vector<32x1xf32>
    %c0_67 = arith.constant 0 : index
    %c0_68 = arith.constant 0 : index
    %c0_69 = arith.constant 0 : index
    %114 = vector.load %arg1[%c0_67, %c0_68, %c0_69] : memref<2x32x256xf32, #tpu.memory_space<vmem>>, vector<1x32x256xf32>
    %115 = vector.shape_cast %114 : vector<1x32x256xf32> to vector<32x256xf32>
    %cst_70 = arith.constant dense<0.000000e+00> : vector<32x256xf32>
    %116 = tpu.matmul %74, %115, %cst_70 {dimension_numbers = #tpu.dot_dimension_numbers<[1], [0], [0], [1], [0, 0, 1, 1], [], []>} : vector<32x32xf32>, vector<32x256xf32>, vector<32x256xf32> -> vector<32x256xf32>
    %117 = vector.broadcast %111 : vector<32x1xf32> to vector<32x256xf32>
    %118 = arith.mulf %116, %117 : vector<32x256xf32>
    %119 = vector.broadcast %113 : vector<32x1xf32> to vector<32x256xf32>
    %120 = arith.addf %118, %119 : vector<32x256xf32>
    %c0_71 = arith.constant 0 : index
    %c0_72 = arith.constant 0 : index
    %c0_73 = arith.constant 0 : index
    %121 = vector.load %arg8[%c0_71, %c0_72, %c0_73] : memref<2x32x256xf32, #tpu.memory_space<vmem>>, vector<1x32x256xf32>
    %122 = vector.shape_cast %121 : vector<1x32x256xf32> to vector<32x256xf32>
    %123 = vector.shape_cast %120 : vector<32x256xf32> to vector<1x32x256xf32>
    tpu.vector_store %arg8[%c0_71, %c0_72, %c0_73], %123 {strides = array<i32>} : memref<2x32x256xf32, #tpu.memory_space<vmem>>, vector<1x32x256xf32>,
    %c1_74 = arith.constant 1 : index
    %c0_75 = arith.constant 0 : index
    %c0_76 = arith.constant 0 : index
    %124 = vector.load %arg1[%c1_74, %c0_75, %c0_76] : memref<2x32x256xf32, #tpu.memory_space<vmem>>, vector<1x32x256xf32>
    %125 = vector.shape_cast %124 : vector<1x32x256xf32> to vector<32x256xf32>
    %cst_77 = arith.constant dense<0.000000e+00> : vector<32x256xf32>
    %126 = tpu.matmul %74, %125, %cst_77 {dimension_numbers = #tpu.dot_dimension_numbers<[1], [0], [0], [1], [0, 0, 1, 1], [], []>} : vector<32x32xf32>, vector<32x256xf32>, vector<32x256xf32> -> vector<32x256xf32>
    %127 = vector.broadcast %111 : vector<32x1xf32> to vector<32x256xf32>
    %128 = arith.mulf %126, %127 : vector<32x256xf32>
    %129 = vector.broadcast %113 : vector<32x1xf32> to vector<32x256xf32>
    %130 = arith.addf %128, %129 : vector<32x256xf32>
    %c1_78 = arith.constant 1 : index
    %c0_79 = arith.constant 0 : index
    %c0_80 = arith.constant 0 : index
    %131 = vector.load %arg8[%c1_78, %c0_79, %c0_80] : memref<2x32x256xf32, #tpu.memory_space<vmem>>, vector<1x32x256xf32>
    %132 = vector.shape_cast %131 : vector<1x32x256xf32> to vector<32x256xf32>
    %133 = vector.shape_cast %130 : vector<32x256xf32> to vector<1x32x256xf32>
    tpu.vector_store %arg8[%c1_78, %c0_79, %c0_80], %133 {strides = array<i32>} : memref<2x32x256xf32, #tpu.memory_space<vmem>>, vector<1x32x256xf32>,
    %c2 = arith.constant 2 : index
    %c0_81 = arith.constant 0 : index
    %c0_82 = arith.constant 0 : index
    %134 = vector.load %arg4[%c2, %c0_81, %c0_82] : memref<4x64x64xf32, #tpu.memory_space<vmem>>, vector<1x64x64xf32>
    %135 = vector.shape_cast %134 : vector<1x64x64xf32> to vector<64x64xf32>
    %c2_83 = arith.constant 2 : index
    %c0_84 = arith.constant 0 : index
    %c0_85 = arith.constant 0 : index
    %136 = vector.load %arg5[%c2_83, %c0_84, %c0_85] : memref<4x64x2xf32, #tpu.memory_space<vmem>>, vector<1x64x2xf32>
    %137 = vector.shape_cast %136 : vector<1x64x2xf32> to vector<64x2xf32>
    %138 = vector.extract_strided_slice %137 {offsets = [0, 0], sizes = [64, 1], strides = [1, 1]} : vector<64x2xf32> to vector<64x1xf32>
    %139 = vector.extract_strided_slice %137 {offsets = [0, 1], sizes = [64, 1], strides = [1, 1]} : vector<64x2xf32> to vector<64x1xf32>
    %cst_86 = arith.constant 0.000000e+00 : f32
    %140 = vector.broadcast %cst_86 : f32 to vector<64x64xf32>
    %cst_87 = arith.constant 0.000000e+00 : f32
    %141 = vector.broadcast %cst_87 : f32 to vector<64x1xf32>
    %c0_88 = arith.constant 0 : index
    %c0_89 = arith.constant 0 : index
    %c0_90 = arith.constant 0 : index
    %142 = vector.load %arg2[%c0_88, %c0_89, %c0_90] : memref<2x64x64xf32, #tpu.memory_space<vmem>>, vector<1x64x64xf32>
    %143 = vector.shape_cast %142 : vector<1x64x64xf32> to vector<64x64xf32>
    %cst_91 = arith.constant dense<0.000000e+00> : vector<64x64xf32>
    %144 = tpu.matmul %143, %143, %cst_91 {dimension_numbers = #tpu.dot_dimension_numbers<[1], [1], [0], [0], [0, 0, 1, 0], [], []>} : vector<64x64xf32>, vector<64x64xf32>, vector<64x64xf32> -> vector<64x64xf32>
    %145 = arith.addf %140, %144 : vector<64x64xf32>
    %cst_92 = arith.constant dense<0.000000e+00> : vector<64xf32>
    %146 = vector.multi_reduction <add>, %143, %cst_92 [1] : vector<64x64xf32> to vector<64xf32>
    %147 = vector.shape_cast %146 : vector<64xf32> to vector<64x1xf32>
    %148 = arith.addf %141, %147 : vector<64x1xf32>
    %c1_93 = arith.constant 1 : index
    %c0_94 = arith.constant 0 : index
    %c0_95 = arith.constant 0 : index
    %149 = vector.load %arg2[%c1_93, %c0_94, %c0_95] : memref<2x64x64xf32, #tpu.memory_space<vmem>>, vector<1x64x64xf32>
    %150 = vector.shape_cast %149 : vector<1x64x64xf32> to vector<64x64xf32>
    %cst_96 = arith.constant dense<0.000000e+00> : vector<64x64xf32>
    %151 = tpu.matmul %150, %150, %cst_96 {dimension_numbers = #tpu.dot_dimension_numbers<[1], [1], [0], [0], [0, 0, 1, 0], [], []>} : vector<64x64xf32>, vector<64x64xf32>, vector<64x64xf32> -> vector<64x64xf32>
    %152 = arith.addf %145, %151 : vector<64x64xf32>
    %cst_97 = arith.constant dense<0.000000e+00> : vector<64xf32>
    %153 = vector.multi_reduction <add>, %150, %cst_97 [1] : vector<64x64xf32> to vector<64xf32>
    %154 = vector.shape_cast %153 : vector<64xf32> to vector<64x1xf32>
    %155 = arith.addf %148, %154 : vector<64x1xf32>
    %cst_98 = arith.constant dense<0.000000e+00> : vector<64x1xf32>
    %156 = tpu.matmul %135, %155, %cst_98 {dimension_numbers = #tpu.dot_dimension_numbers<[1], [0], [0], [1], [0, 0, 1, 1], [], []>} : vector<64x64xf32>, vector<64x1xf32>, vector<64x1xf32> -> vector<64x1xf32>
    %cst_99 = arith.constant 7.812500e-03 : f32
    %157 = vector.broadcast %cst_99 : f32 to vector<64x1xf32>
    %158 = arith.mulf %156, %157 : vector<64x1xf32>
    %cst_100 = arith.constant dense<0.000000e+00> : vector<64x64xf32>
    %159 = tpu.matmul %135, %152, %cst_100 {dimension_numbers = #tpu.dot_dimension_numbers<[1], [0], [0], [1], [0, 0, 1, 1], [], []>} : vector<64x64xf32>, vector<64x64xf32>, vector<64x64xf32> -> vector<64x64xf32>
    %160 = arith.mulf %159, %135 : vector<64x64xf32>
    %cst_101 = arith.constant dense<0.000000e+00> : vector<64xf32>
    %161 = vector.multi_reduction <add>, %160, %cst_101 [1] : vector<64x64xf32> to vector<64xf32>
    %162 = vector.shape_cast %161 : vector<64xf32> to vector<64x1xf32>
    %cst_102 = arith.constant 7.812500e-03 : f32
    %163 = vector.broadcast %cst_102 : f32 to vector<64x1xf32>
    %164 = arith.mulf %162, %163 : vector<64x1xf32>
    %165 = arith.mulf %158, %158 : vector<64x1xf32>
    %166 = arith.subf %164, %165 : vector<64x1xf32>
    %cst_103 = arith.constant 0.000000e+00 : f32
    %167 = vector.broadcast %cst_103 : f32 to vector<64x1xf32>
    %168 = arith.maximumf %166, %167 : vector<64x1xf32>
    %cst_104 = arith.constant 9.99999974E-6 : f32
    %169 = vector.broadcast %cst_104 : f32 to vector<64x1xf32>
    %170 = arith.addf %168, %169 : vector<64x1xf32>
    %171 = math.rsqrt %170 : vector<64x1xf32>
    %172 = arith.mulf %171, %138 : vector<64x1xf32>
    %173 = arith.mulf %158, %172 : vector<64x1xf32>
    %174 = arith.subf %139, %173 : vector<64x1xf32>
    %c0_105 = arith.constant 0 : index
    %c0_106 = arith.constant 0 : index
    %c0_107 = arith.constant 0 : index
    %175 = vector.load %arg2[%c0_105, %c0_106, %c0_107] : memref<2x64x64xf32, #tpu.memory_space<vmem>>, vector<1x64x64xf32>
    %176 = vector.shape_cast %175 : vector<1x64x64xf32> to vector<64x64xf32>
    %cst_108 = arith.constant dense<0.000000e+00> : vector<64x64xf32>
    %177 = tpu.matmul %135, %176, %cst_108 {dimension_numbers = #tpu.dot_dimension_numbers<[1], [0], [0], [1], [0, 0, 1, 1], [], []>} : vector<64x64xf32>, vector<64x64xf32>, vector<64x64xf32> -> vector<64x64xf32>
    %178 = vector.broadcast %172 : vector<64x1xf32> to vector<64x64xf32>
    %179 = arith.mulf %177, %178 : vector<64x64xf32>
    %180 = vector.broadcast %174 : vector<64x1xf32> to vector<64x64xf32>
    %181 = arith.addf %179, %180 : vector<64x64xf32>
    %c0_109 = arith.constant 0 : index
    %c0_110 = arith.constant 0 : index
    %c0_111 = arith.constant 0 : index
    %182 = vector.load %arg9[%c0_109, %c0_110, %c0_111] : memref<2x64x64xf32, #tpu.memory_space<vmem>>, vector<1x64x64xf32>
    %183 = vector.shape_cast %182 : vector<1x64x64xf32> to vector<64x64xf32>
    %184 = vector.shape_cast %181 : vector<64x64xf32> to vector<1x64x64xf32>
    tpu.vector_store %arg9[%c0_109, %c0_110, %c0_111], %184 {strides = array<i32>} : memref<2x64x64xf32, #tpu.memory_space<vmem>>, vector<1x64x64xf32>,
    %c1_112 = arith.constant 1 : index
    %c0_113 = arith.constant 0 : index
    %c0_114 = arith.constant 0 : index
    %185 = vector.load %arg2[%c1_112, %c0_113, %c0_114] : memref<2x64x64xf32, #tpu.memory_space<vmem>>, vector<1x64x64xf32>
    %186 = vector.shape_cast %185 : vector<1x64x64xf32> to vector<64x64xf32>
    %cst_115 = arith.constant dense<0.000000e+00> : vector<64x64xf32>
    %187 = tpu.matmul %135, %186, %cst_115 {dimension_numbers = #tpu.dot_dimension_numbers<[1], [0], [0], [1], [0, 0, 1, 1], [], []>} : vector<64x64xf32>, vector<64x64xf32>, vector<64x64xf32> -> vector<64x64xf32>
    %188 = vector.broadcast %172 : vector<64x1xf32> to vector<64x64xf32>
    %189 = arith.mulf %187, %188 : vector<64x64xf32>
    %190 = vector.broadcast %174 : vector<64x1xf32> to vector<64x64xf32>
    %191 = arith.addf %189, %190 : vector<64x64xf32>
    %c1_116 = arith.constant 1 : index
    %c0_117 = arith.constant 0 : index
    %c0_118 = arith.constant 0 : index
    %192 = vector.load %arg9[%c1_116, %c0_117, %c0_118] : memref<2x64x64xf32, #tpu.memory_space<vmem>>, vector<1x64x64xf32>
    %193 = vector.shape_cast %192 : vector<1x64x64xf32> to vector<64x64xf32>
    %194 = vector.shape_cast %191 : vector<64x64xf32> to vector<1x64x64xf32>
    tpu.vector_store %arg9[%c1_116, %c0_117, %c0_118], %194 {strides = array<i32>} : memref<2x64x64xf32, #tpu.memory_space<vmem>>, vector<1x64x64xf32>,
    %c3 = arith.constant 3 : index
    %c0_119 = arith.constant 0 : index
    %c0_120 = arith.constant 0 : index
    %195 = vector.load %arg4[%c3, %c0_119, %c0_120] : memref<4x64x64xf32, #tpu.memory_space<vmem>>, vector<1x64x64xf32>
    %196 = vector.shape_cast %195 : vector<1x64x64xf32> to vector<64x64xf32>
    %c3_121 = arith.constant 3 : index
    %c0_122 = arith.constant 0 : index
    %c0_123 = arith.constant 0 : index
    %197 = vector.load %arg5[%c3_121, %c0_122, %c0_123] : memref<4x64x2xf32, #tpu.memory_space<vmem>>, vector<1x64x2xf32>
    %198 = vector.shape_cast %197 : vector<1x64x2xf32> to vector<64x2xf32>
    %199 = vector.extract_strided_slice %198 {offsets = [0, 0], sizes = [64, 1], strides = [1, 1]} : vector<64x2xf32> to vector<64x1xf32>
    %200 = vector.extract_strided_slice %198 {offsets = [0, 1], sizes = [64, 1], strides = [1, 1]} : vector<64x2xf32> to vector<64x1xf32>
    %c0_124 = arith.constant 0 : index
    %c0_125 = arith.constant 0 : index
    %c0_126 = arith.constant 0 : index
    %201 = vector.load %arg3[%c0_124, %c0_125, %c0_126] : memref<2x64x1xf32, #tpu.memory_space<vmem>>, vector<1x64x1xf32>
    %202 = vector.shape_cast %201 : vector<1x64x1xf32> to vector<64x1xf32>
    %cst_127 = arith.constant dense<0.000000e+00> : vector<64x1xf32>
    %203 = tpu.matmul %196, %202, %cst_127 {dimension_numbers = #tpu.dot_dimension_numbers<[1], [0], [0], [1], [0, 0, 1, 1], [], []>} : vector<64x64xf32>, vector<64x1xf32>, vector<64x1xf32> -> vector<64x1xf32>
    %c1_128 = arith.constant 1 : index
    %c0_129 = arith.constant 0 : index
    %c0_130 = arith.constant 0 : index
    %204 = vector.load %arg3[%c1_128, %c0_129, %c0_130] : memref<2x64x1xf32, #tpu.memory_space<vmem>>, vector<1x64x1xf32>
    %205 = vector.shape_cast %204 : vector<1x64x1xf32> to vector<64x1xf32>
    %cst_131 = arith.constant dense<0.000000e+00> : vector<64x1xf32>
    %206 = tpu.matmul %196, %205, %cst_131 {dimension_numbers = #tpu.dot_dimension_numbers<[1], [0], [0], [1], [0, 0, 1, 1], [], []>} : vector<64x64xf32>, vector<64x1xf32>, vector<64x1xf32> -> vector<64x1xf32>
    %207 = arith.addf %203, %206 : vector<64x1xf32>
    %cst_132 = arith.constant dense<0.000000e+00> : vector<64xf32>
    %208 = vector.multi_reduction <add>, %207, %cst_132 [1] : vector<64x1xf32> to vector<64xf32>
    %209 = vector.shape_cast %208 : vector<64xf32> to vector<64x1xf32>
    %cst_133 = arith.constant 5.000000e-01 : f32
    %210 = vector.broadcast %cst_133 : f32 to vector<64x1xf32>
    %211 = arith.mulf %209, %210 : vector<64x1xf32>
    %cst_134 = arith.constant 0.000000e+00 : f32
    %212 = vector.broadcast %cst_134 : f32 to vector<64x1xf32>
    %213 = arith.subf %203, %211 : vector<64x1xf32>
    %214 = arith.mulf %213, %213 : vector<64x1xf32>
    %cst_135 = arith.constant dense<0.000000e+00> : vector<64xf32>
    %215 = vector.multi_reduction <add>, %214, %cst_135 [1] : vector<64x1xf32> to vector<64xf32>
    %216 = vector.shape_cast %215 : vector<64xf32> to vector<64x1xf32>
    %217 = arith.addf %212, %216 : vector<64x1xf32>
    %218 = arith.subf %206, %211 : vector<64x1xf32>
    %219 = arith.mulf %218, %218 : vector<64x1xf32>
    %cst_136 = arith.constant dense<0.000000e+00> : vector<64xf32>
    %220 = vector.multi_reduction <add>, %219, %cst_136 [1] : vector<64x1xf32> to vector<64xf32>
    %221 = vector.shape_cast %220 : vector<64xf32> to vector<64x1xf32>
    %222 = arith.addf %217, %221 : vector<64x1xf32>
    %cst_137 = arith.constant 5.000000e-01 : f32
    %223 = vector.broadcast %cst_137 : f32 to vector<64x1xf32>
    %224 = arith.mulf %222, %223 : vector<64x1xf32>
    %cst_138 = arith.constant 9.99999974E-6 : f32
    %225 = vector.broadcast %cst_138 : f32 to vector<64x1xf32>
    %226 = arith.addf %224, %225 : vector<64x1xf32>
    %227 = math.rsqrt %226 : vector<64x1xf32>
    %228 = arith.mulf %227, %199 : vector<64x1xf32>
    %229 = arith.mulf %211, %228 : vector<64x1xf32>
    %230 = arith.subf %200, %229 : vector<64x1xf32>
    %231 = arith.mulf %203, %228 : vector<64x1xf32>
    %232 = arith.addf %231, %230 : vector<64x1xf32>
    %c0_139 = arith.constant 0 : index
    %c0_140 = arith.constant 0 : index
    %c0_141 = arith.constant 0 : index
    %233 = vector.load %arg10[%c0_139, %c0_140, %c0_141] : memref<2x64x1xf32, #tpu.memory_space<vmem>>, vector<1x64x1xf32>
    %234 = vector.shape_cast %233 : vector<1x64x1xf32> to vector<64x1xf32>
    %235 = vector.shape_cast %232 : vector<64x1xf32> to vector<1x64x1xf32>
    tpu.vector_store %arg10[%c0_139, %c0_140, %c0_141], %235 {strides = array<i32>} : memref<2x64x1xf32, #tpu.memory_space<vmem>>, vector<1x64x1xf32>,
    %236 = arith.mulf %206, %228 : vector<64x1xf32>
    %237 = arith.addf %236, %230 : vector<64x1xf32>
    %c1_142 = arith.constant 1 : index
    %c0_143 = arith.constant 0 : index
    %c0_144 = arith.constant 0 : index
    %238 = vector.load %arg10[%c1_142, %c0_143, %c0_144] : memref<2x64x1xf32, #tpu.memory_space<vmem>>, vector<1x64x1xf32>
    %239 = vector.shape_cast %238 : vector<1x64x1xf32> to vector<64x1xf32>
    %240 = vector.shape_cast %237 : vector<64x1xf32> to vector<1x64x1xf32>
    tpu.vector_store %arg10[%c1_142, %c0_143, %c0_144], %240 {strides = array<i32>} : memref<2x64x1xf32, #tpu.memory_space<vmem>>, vector<1x64x1xf32>,
    return
  }
}

</mosaic_0001>

<llo_original>
// kernel: baseline_framework_forward.1
$region0: #{baseline_framework_forward.1}
  #allocation0 [shape = 'u32[]', space=smem, size = 0x4, offset = 0x4, fixed_abs, tag = 'smem constant byte address 0x4 - core index']
  #allocation1 [shape = 'u32[72,128]{1,0:T(1,128)}', space=vmem, size = 0x9000, scoped, tag = 'internal scratch']
  %s0 = inlined_call_operand.vmem [shape: f32[2,32,1024], index: 0, kind: input, shape index: {}]
  %s1 = inlined_call_operand.vmem [shape: f32[2,32,256], index: 1, kind: input, shape index: {}]
  %s2 = inlined_call_operand.vmem [shape: f32[2,64,64], index: 2, kind: input, shape index: {}]
  %s3 = inlined_call_operand.vmem [shape: f32[2,64,1], index: 3, kind: input, shape index: {}]
  %s4 = inlined_call_operand.vmem [shape: f32[4,64,64], index: 4, kind: input, shape index: {}]
  %s5 = inlined_call_operand.vmem [shape: f32[4,64,2], index: 5, kind: input, shape index: {}]
  %s6 = inlined_call_operand.vmem [shape: f32[2,16,1024], index: 6, kind: output, shape index: {0}]
  %s7 = inlined_call_operand.vmem [shape: f32[2,16,1024], index: 7, kind: output, shape index: {1}]
  %s8 = inlined_call_operand.vmem [shape: f32[2,32,256], index: 8, kind: output, shape index: {2}]
  %s9 = inlined_call_operand.vmem [shape: f32[2,64,64], index: 9, kind: output, shape index: {3}]
  %s10 = inlined_call_operand.vmem [shape: f32[2,64,1], index: 10, kind: output, shape index: {4}]
  %11 = xla_tuple %s6, %s7, %s8, %s9, %s10
  %s12 = sld [smem:[#allocation0]]
  $region66: #{baseline_framework_forward.1} parent=0
    _
  %s14 = ssub.s32 1, %s12
  %s15 = scalar_select 0, %s14, %s12
  // Predicated region
  $region2: #{baseline_framework_forward.1} parent=0 // pred_check
    _
  $region3: #{baseline_framework_forward.1} parent=0 // pred_check_branch
    %17 = sbr.rel (0) target = $region5
  $region4: #{baseline_framework_forward.1} parent=0 // pred_region
    _
  $region5: #{baseline_framework_forward.1} parent=0 // pred_fallthru
    _
  // Predicated region
  $region6: #{baseline_framework_forward.1} parent=0 // pred_check
    _
  $region7: #{baseline_framework_forward.1} parent=0 // pred_check_branch
    %19 = sbr.rel (0) target = $region9
  $region8: #{baseline_framework_forward.1} parent=0 // pred_region
    _
  $region9: #{baseline_framework_forward.1} parent=0 // pred_fallthru
    _
  // Predicated region
  $region10: #{baseline_framework_forward.1} parent=0 // pred_check
    _
  $region11: #{baseline_framework_forward.1} parent=0 // pred_check_branch
    %21 = sbr.rel (0) target = $region13
  $region12: #{baseline_framework_forward.1} parent=0 // pred_region
    _
  $region13: #{baseline_framework_forward.1} parent=0 // pred_fallthru
    _
  // Predicated region
  $region14: #{baseline_framework_forward.1} parent=0 // pred_check
    _
  $region15: #{baseline_framework_forward.1} parent=0 // pred_check_branch
    %23 = sbr.rel (0) target = $region17
  $region16: #{baseline_framework_forward.1} parent=0 // pred_region
    _
  $region17: #{baseline_framework_forward.1} parent=0 // pred_fallthru
    _
  // Predicated region
  $region18: #{baseline_framework_forward.1} parent=0 // pred_check
    _
  $region19: #{baseline_framework_forward.1} parent=0 // pred_check_branch
    %25 = sbr.rel (0) target = $region21
  $region20: #{baseline_framework_forward.1} parent=0 // pred_region
    _
  $region21: #{baseline_framework_forward.1} parent=0 // pred_fallthru
    _
  // Predicated region
  $region22: #{baseline_framework_forward.1} parent=0 // pred_check
    _
  $region23: #{baseline_framework_forward.1} parent=0 // pred_check_branch
    %27 = sbr.rel (0) target = $region25
  $region24: #{baseline_framework_forward.1} parent=0 // pred_region
    _
  $region25: #{baseline_framework_forward.1} parent=0 // pred_fallthru
    _
  %v28 = vld [vmem:[%s4] sm:$0xff]
  %v29 = vld [vmem:[%s4 + $0x8] sm:$0xff]
  %v30 = vld [vmem:[%s4 + $0x10] sm:$0xff]
  %v31 = vld [vmem:[%s4 + $0x18] sm:$0xff]
  %v32 = vld [vmem:[%s5] sm:$0xff]
  %v33 = vld [vmem:[%s5 + $0x8] sm:$0xff]
  %v34 = vld [vmem:[%s5 + $0x10] sm:$0xff]
  %v35 = vld [vmem:[%s5 + $0x18] sm:$0xff]
  %v36 = vld [vmem:[%s0] sm:$0xff]
  %v37 = vld [vmem:[%s0 + $0x8] sm:$0xff]
  %v38 = vld [vmem:[%s0 + $0x10] sm:$0xff]
  %v39 = vld [vmem:[%s0 + $0x18] sm:$0xff]
  %v40 = vld [vmem:[%s0 + $0x20] sm:$0xff]
  %v41 = vld [vmem:[%s0 + $0x28] sm:$0xff]
  %v42 = vld [vmem:[%s0 + $0x30] sm:$0xff]
  %v43 = vld [vmem:[%s0 + $0x38] sm:$0xff]
  %v44 = vld [vmem:[%s0 + $0x40] sm:$0xff]
  %v45 = vld [vmem:[%s0 + $0x48] sm:$0xff]
  %v46 = vld [vmem:[%s0 + $0x50] sm:$0xff]
  %v47 = vld [vmem:[%s0 + $0x58] sm:$0xff]
  %v48 = vld [vmem:[%s0 + $0x60] sm:$0xff]
  %v49 = vld [vmem:[%s0 + $0x68] sm:$0xff]
  %v50 = vld [vmem:[%s0 + $0x70] sm:$0xff]
  %v51 = vld [vmem:[%s0 + $0x78] sm:$0xff]
  %v52 = vld [vmem:[%s0 + $0x80] sm:$0xff]
  %v53 = vld [vmem:[%s0 + $0x88] sm:$0xff]
  %v54 = vld [vmem:[%s0 + $0x90] sm:$0xff]
  %v55 = vld [vmem:[%s0 + $0x98] sm:$0xff]
  %v56 = vld [vmem:[%s0 + $0xa0] sm:$0xff]
  %v57 = vld [vmem:[%s0 + $0xa8] sm:$0xff]
  %v58 = vld [vmem:[%s0 + $0xb0] sm:$0xff]
  %v59 = vld [vmem:[%s0 + $0xb8] sm:$0xff]
  %v60 = vld [vmem:[%s0 + $0xc0] sm:$0xff]
  %v61 = vld [vmem:[%s0 + $0xc8] sm:$0xff]
  %v62 = vld [vmem:[%s0 + $0xd0] sm:$0xff]
  %v63 = vld [vmem:[%s0 + $0xd8] sm:$0xff]
  %v64 = vld [vmem:[%s0 + $0xe0] sm:$0xff]
  %v65 = vld [vmem:[%s0 + $0xe8] sm:$0xff]
  %v66 = vld [vmem:[%s0 + $0xf0] sm:$0xff]
  %v67 = vld [vmem:[%s0 + $0xf8] sm:$0xff]
  %v68 = vadd.f32 %v36, %v37
  %v69 = vadd.f32 %v68, %v38
  %v70 = vadd.f32 %v69, %v39
  %v71 = vadd.f32 %v70, %v40
  %v72 = vadd.f32 %v71, %v41
  %v73 = vadd.f32 %v72, %v42
  %v74 = vadd.f32 %v73, %v43
  %75 = vadd.xlane.f32.xlu0 %v74
  %v76 = vpop.xlane.xlu0 %75
  %v77 = vadd.f32 %v44, %v45
  %v78 = vadd.f32 %v77, %v46
  %v79 = vadd.f32 %v78, %v47
  %v80 = vadd.f32 %v79, %v48
  %v81 = vadd.f32 %v80, %v49
  %v82 = vadd.f32 %v81, %v50
  %v83 = vadd.f32 %v82, %v51
  %84 = vadd.xlane.f32.xlu0 %v83
  %v85 = vpop.xlane.xlu0 %84
  %v86 = vadd.f32 %v52, %v53
  %v87 = vadd.f32 %v86, %v54
  %v88 = vadd.f32 %v87, %v55
  %v89 = vadd.f32 %v88, %v56
  %v90 = vadd.f32 %v89, %v57
  %v91 = vadd.f32 %v90, %v58
  %v92 = vadd.f32 %v91, %v59
  %93 = vadd.xlane.f32.xlu0 %v92
  %v94 = vpop.xlane.xlu0 %93
  %v95 = vadd.f32 %v60, %v61
  %v96 = vadd.f32 %v95, %v62
  %v97 = vadd.f32 %v96, %v63
  %v98 = vadd.f32 %v97, %v64
  %v99 = vadd.f32 %v98, %v65
  %v100 = vadd.f32 %v99, %v66
  %v101 = vadd.f32 %v100, %v67
  %102 = vadd.xlane.f32.xlu0 %v101
  %v103 = vpop.xlane.xlu0 %102
  %v104 = vadd.f32 %v76, 0.0
  %v105 = vadd.f32 %v85, 0.0
  %v106 = vadd.f32 %v94, 0.0
  %v107 = vadd.f32 %v103, 0.0
  %s108 = scalar_lea.vmem %s0, 256
  %v109 = vld [vmem:[%s108] sm:$0xff]
  %v110 = vld [vmem:[%s108 + $0x8] sm:$0xff]
  %v111 = vld [vmem:[%s108 + $0x10] sm:$0xff]
  %v112 = vld [vmem:[%s108 + $0x18] sm:$0xff]
  %v113 = vld [vmem:[%s108 + $0x20] sm:$0xff]
  %v114 = vld [vmem:[%s108 + $0x28] sm:$0xff]
  %v115 = vld [vmem:[%s108 + $0x30] sm:$0xff]
  %v116 = vld [vmem:[%s108 + $0x38] sm:$0xff]
  %v117 = vld [vmem:[%s108 + $0x40] sm:$0xff]
  %v118 = vld [vmem:[%s108 + $0x48] sm:$0xff]
  %v119 = vld [vmem:[%s108 + $0x50] sm:$0xff]
  %v120 = vld [vmem:[%s108 + $0x58] sm:$0xff]
  %v121 = vld [vmem:[%s108 + $0x60] sm:$0xff]
  %v122 = vld [vmem:[%s108 + $0x68] sm:$0xff]
  %v123 = vld [vmem:[%s108 + $0x70] sm:$0xff]
  %v124 = vld [vmem:[%s108 + $0x78] sm:$0xff]
  %v125 = vld [vmem:[%s108 + $0x80] sm:$0xff]
  %v126 = vld [vmem:[%s108 + $0x88] sm:$0xff]
  %v127 = vld [vmem:[%s108 + $0x90] sm:$0xff]
  %v128 = vld [vmem:[%s108 + $0x98] sm:$0xff]
  %v129 = vld [vmem:[%s108 + $0xa0] sm:$0xff]
  %v130 = vld [vmem:[%s108 + $0xa8] sm:$0xff]
  %v131 = vld [vmem:[%s108 + $0xb0] sm:$0xff]
  %v132 = vld [vmem:[%s108 + $0xb8] sm:$0xff]
  %v133 = vld [vmem:[%s108 + $0xc0] sm:$0xff]
  %v134 = vld [vmem:[%s108 + $0xc8] sm:$0xff]
  %v135 = vld [vmem:[%s108 + $0xd0] sm:$0xff]
  %v136 = vld [vmem:[%s108 + $0xd8] sm:$0xff]
  %v137 = vld [vmem:[%s108 + $0xe0] sm:$0xff]
  %v138 = vld [vmem:[%s108 + $0xe8] sm:$0xff]
  %v139 = vld [vmem:[%s108 + $0xf0] sm:$0xff]
  %v140 = vld [vmem:[%s108 + $0xf8] sm:$0xff]
  %141 = vmatpush.xpose.msra.mxu0 0.0
  %142 = vmatpush.xpose.msra.mxu0 0.0
  %143 = vmatpush.xpose.msra.mxu0 0.0
  %144 = vmatpush.xpose.msra.mxu0 0.0
  %145 = vmatpush.xpose.msra.mxu0 0.0
  %146 = vmatpush.xpose.msra.mxu0 0.0
  %147 = vmatpush.xpose.msra.mxu0 0.0
  %148 = vmatpush.xpose.msra.mxu0 0.0
  %149 = vmatpush.xpose.msra.mxu0 0.0
  %150 = vmatpush.xpose.msra.mxu0 0.0
  %151 = vmatpush.xpose.msra.mxu0 0.0
  %152 = vmatpush.xpose.msra.mxu0 0.0
  %153 = vmatpush.xpose.msra.mxu0 %v133
  %154 = vmatpush.xpose.msra.mxu0 %v125
  %155 = vmatpush.xpose.msra.mxu0 %v117
  %156 = vmatpush.xpose.msra.mxu0 %v109
  %157 = vmatmul.f32.gmra.mxu0 %v109
  %v158 = vpop.f32.mrf.mxu0
  %v159 = vadd.f32 0.0, %v158
  %160 = vmatmul.f32.gmra.mxu0 %v117
  %v161 = vpop.f32.mrf.mxu0
  %v162 = vadd.f32 0.0, %v161
  %163 = vmatmul.f32.gmra.mxu0 %v125
  %v164 = vpop.f32.mrf.mxu0
  %v165 = vadd.f32 0.0, %v164
  %166 = vmatmul.f32.gmra.mxu0 %v133
  %v167 = vpop.f32.mrf.mxu0
  %v168 = vadd.f32 0.0, %v167
  %169 = vdwg.mxu0
  %170 = vmatpush.xpose.msra.mxu0 0.0
  %171 = vmatpush.xpose.msra.mxu0 0.0
  %172 = vmatpush.xpose.msra.mxu0 0.0
  %173 = vmatpush.xpose.msra.mxu0 0.0
  %174 = vmatpush.xpose.msra.mxu0 0.0
  %175 = vmatpush.xpose.msra.mxu0 0.0
  %176 = vmatpush.xpose.msra.mxu0 0.0
  %177 = vmatpush.xpose.msra.mxu0 0.0
  %178 = vmatpush.xpose.msra.mxu0 0.0
  %179 = vmatpush.xpose.msra.mxu0 0.0
  %180 = vmatpush.xpose.msra.mxu0 0.0
  %181 = vmatpush.xpose.msra.mxu0 0.0
  %182 = vmatpush.xpose.msra.mxu0 %v134
  %183 = vmatpush.xpose.msra.mxu0 %v126
  %184 = vmatpush.xpose.msra.mxu0 %v118
  %185 = vmatpush.xpose.msra.mxu0 %v110
  %186 = vmatmul.f32.gmra.mxu0 %v110
  %v187 = vpop.f32.mrf.mxu0
  %v188 = vadd.f32 %v159, %v187
  %189 = vmatmul.f32.gmra.mxu0 %v118
  %v190 = vpop.f32.mrf.mxu0
  %v191 = vadd.f32 %v162, %v190
  %192 = vmatmul.f32.gmra.mxu0 %v126
  %v193 = vpop.f32.mrf.mxu0
  %v194 = vadd.f32 %v165, %v193
  %195 = vmatmul.f32.gmra.mxu0 %v134
  %v196 = vpop.f32.mrf.mxu0
  %v197 = vadd.f32 %v168, %v196
  %198 = vdwg.mxu0
  %199 = vmatpush.xpose.msra.mxu0 0.0
  %200 = vmatpush.xpose.msra.mxu0 0.0
  %201 = vmatpush.xpose.msra.mxu0 0.0
  %202 = vmatpush.xpose.msra.mxu0 0.0
  %203 = vmatpush.xpose.msra.mxu0 0.0
  %204 = vmatpush.xpose.msra.mxu0 0.0
  %205 = vmatpush.xpose.msra.mxu0 0.0
  %206 = vmatpush.xpose.msra.mxu0 0.0
  %207 = vmatpush.xpose.msra.mxu0 0.0
  %208 = vmatpush.xpose.msra.mxu0 0.0
  %209 = vmatpush.xpose.msra.mxu0 0.0
  %210 = vmatpush.xpose.msra.mxu0 0.0
  %211 = vmatpush.xpose.msra.mxu0 %v135
  %212 = vmatpush.xpose.msra.mxu0 %v127
  %213 = vmatpush.xpose.msra.mxu0 %v119
  %214 = vmatpush.xpose.msra.mxu0 %v111
  %215 = vmatmul.f32.gmra.mxu0 %v111
  %v216 = vpop.f32.mrf.mxu0
  %v217 = vadd.f32 %v188, %v216
  %218 = vmatmul.f32.gmra.mxu0 %v119
  %v219 = vpop.f32.mrf.mxu0
  %v220 = vadd.f32 %v191, %v219
  %221 = vmatmul.f32.gmra.mxu0 %v127
  %v222 = vpop.f32.mrf.mxu0
  %v223 = vadd.f32 %v194, %v222
  %224 = vmatmul.f32.gmra.mxu0 %v135
  %v225 = vpop.f32.mrf.mxu0
  %v226 = vadd.f32 %v197, %v225
  %227 = vdwg.mxu0
  %228 = vmatpush.xpose.msra.mxu0 0.0
  %229 = vmatpush.xpose.msra.mxu0 0.0
  %230 = vmatpush.xpose.msra.mxu0 0.0
  %231 = vmatpush.xpose.msra.mxu0 0.0
  %232 = vmatpush.xpose.msra.mxu0 0.0
  %233 = vmatpush.xpose.msra.mxu0 0.0
  %234 = vmatpush.xpose.msra.mxu0 0.0
  %235 = vmatpush.xpose.msra.mxu0 0.0
  %236 = vmatpush.xpose.msra.mxu0 0.0
  %237 = vmatpush.xpose.msra.mxu0 0.0
  %238 = vmatpush.xpose.msra.mxu0 0.0
  %239 = vmatpush.xpose.msra.mxu0 0.0
  %240 = vmatpush.xpose.msra.mxu0 %v136
  %241 = vmatpush.xpose.msra.mxu0 %v128
  %242 = vmatpush.xpose.msra.mxu0 %v120
  %243 = vmatpush.xpose.msra.mxu0 %v112
  %244 = vmatmul.f32.gmra.mxu0 %v112
  %v245 = vpop.f32.mrf.mxu0
  %v246 = vadd.f32 %v217, %v245
  %247 = vmatmul.f32.gmra.mxu0 %v120
  %v248 = vpop.f32.mrf.mxu0
  %v249 = vadd.f32 %v220, %v248
  %250 = vmatmul.f32.gmra.mxu0 %v128
  %v251 = vpop.f32.mrf.mxu0
  %v252 = vadd.f32 %v223, %v251
  %253 = vmatmul.f32.gmra.mxu0 %v136
  %v254 = vpop.f32.mrf.mxu0
  %v255 = vadd.f32 %v226, %v254
  %256 = vdwg.mxu0
  %257 = vmatpush.xpose.msra.mxu0 0.0
  %258 = vmatpush.xpose.msra.mxu0 0.0
  %259 = vmatpush.xpose.msra.mxu0 0.0
  %260 = vmatpush.xpose.msra.mxu0 0.0
  %261 = vmatpush.xpose.msra.mxu0 0.0
  %262 = vmatpush.xpose.msra.mxu0 0.0
  %263 = vmatpush.xpose.msra.mxu0 0.0
  %264 = vmatpush.xpose.msra.mxu0 0.0
  %265 = vmatpush.xpose.msra.mxu0 0.0
  %266 = vmatpush.xpose.msra.mxu0 0.0
  %267 = vmatpush.xpose.msra.mxu0 0.0
  %268 = vmatpush.xpose.msra.mxu0 0.0
  %269 = vmatpush.xpose.msra.mxu0 %v137
  %270 = vmatpush.xpose.msra.mxu0 %v129
  %271 = vmatpush.xpose.msra.mxu0 %v121
  %272 = vmatpush.xpose.msra.mxu0 %v113
  %273 = vmatmul.f32.gmra.mxu0 %v113
  %v274 = vpop.f32.mrf.mxu0
  %v275 = vadd.f32 %v246, %v274
  %276 = vmatmul.f32.gmra.mxu0 %v121
  %v277 = vpop.f32.mrf.mxu0
  %v278 = vadd.f32 %v249, %v277
  %279 = vmatmul.f32.gmra.mxu0 %v129
  %v280 = vpop.f32.mrf.mxu0
  %v281 = vadd.f32 %v252, %v280
  %282 = vmatmul.f32.gmra.mxu0 %v137
  %v283 = vpop.f32.mrf.mxu0
  %v284 = vadd.f32 %v255, %v283
  %285 = vdwg.mxu0
  %286 = vmatpush.xpose.msra.mxu0 0.0
  %287 = vmatpush.xpose.msra.mxu0 0.0
  %288 = vmatpush.xpose.msra.mxu0 0.0
  %289 = vmatpush.xpose.msra.mxu0 0.0
  %290 = vmatpush.xpose.msra.mxu0 0.0
  %291 = vmatpush.xpose.msra.mxu0 0.0
  %292 = vmatpush.xpose.msra.mxu0 0.0
  %293 = vmatpush.xpose.msra.mxu0 0.0
  %294 = vmatpush.xpose.msra.mxu0 0.0
  %295 = vmatpush.xpose.msra.mxu0 0.0
  %296 = vmatpush.xpose.msra.mxu0 0.0
  %297 = vmatpush.xpose.msra.mxu0 0.0
  %298 = vmatpush.xpose.msra.mxu0 %v138
  %299 = vmatpush.xpose.msra.mxu0 %v130
  %300 = vmatpush.xpose.msra.mxu0 %v122
  %301 = vmatpush.xpose.msra.mxu0 %v114
  %302 = vmatmul.f32.gmra.mxu0 %v114
  %v303 = vpop.f32.mrf.mxu0
  %v304 = vadd.f32 %v275, %v303
  %305 = vmatmul.f32.gmra.mxu0 %v122
  %v306 = vpop.f32.mrf.mxu0
  %v307 = vadd.f32 %v278, %v306
  %308 = vmatmul.f32.gmra.mxu0 %v130
  %v309 = vpop.f32.mrf.mxu0
  %v310 = vadd.f32 %v281, %v309
  %311 = vmatmul.f32.gmra.mxu0 %v138
  %v312 = vpop.f32.mrf.mxu0
  %v313 = vadd.f32 %v284, %v312
  %314 = vdwg.mxu0
  %315 = vmatpush.xpose.msra.mxu0 0.0
  %316 = vmatpush.xpose.msra.mxu0 0.0
  %317 = vmatpush.xpose.msra.mxu0 0.0
  %318 = vmatpush.xpose.msra.mxu0 0.0
  %319 = vmatpush.xpose.msra.mxu0 0.0
  %320 = vmatpush.xpose.msra.mxu0 0.0
  %321 = vmatpush.xpose.msra.mxu0 0.0
  %322 = vmatpush.xpose.msra.mxu0 0.0
  %323 = vmatpush.xpose.msra.mxu0 0.0
  %324 = vmatpush.xpose.msra.mxu0 0.0
  %325 = vmatpush.xpose.msra.mxu0 0.0
  %326 = vmatpush.xpose.msra.mxu0 0.0
  %327 = vmatpush.xpose.msra.mxu0 %v139
  %328 = vmatpush.xpose.msra.mxu0 %v131
  %329 = vmatpush.xpose.msra.mxu0 %v123
  %330 = vmatpush.xpose.msra.mxu0 %v115
  %331 = vmatmul.f32.gmra.mxu0 %v115
  %v332 = vpop.f32.mrf.mxu0
  %v333 = vadd.f32 %v304, %v332
  %334 = vmatmul.f32.gmra.mxu0 %v123
  %v335 = vpop.f32.mrf.mxu0
  %v336 = vadd.f32 %v307, %v335
  %337 = vmatmul.f32.gmra.mxu0 %v131
  %v338 = vpop.f32.mrf.mxu0
  %v339 = vadd.f32 %v310, %v338
  %340 = vmatmul.f32.gmra.mxu0 %v139
  %v341 = vpop.f32.mrf.mxu0
  %v342 = vadd.f32 %v313, %v341
  %343 = vdwg.mxu0
  %344 = vmatpush.xpose.msra.mxu0 0.0
  %345 = vmatpush.xpose.msra.mxu0 0.0
  %346 = vmatpush.xpose.msra.mxu0 0.0
  %347 = vmatpush.xpose.msra.mxu0 0.0
  %348 = vmatpush.xpose.msra.mxu0 0.0
  %349 = vmatpush.xpose.msra.mxu0 0.0
  %350 = vmatpush.xpose.msra.mxu0 0.0
  %351 = vmatpush.xpose.msra.mxu0 0.0
  %352 = vmatpush.xpose.msra.mxu0 0.0
  %353 = vmatpush.xpose.msra.mxu0 0.0
  %354 = vmatpush.xpose.msra.mxu0 0.0
  %355 = vmatpush.xpose.msra.mxu0 0.0
  %356 = vmatpush.xpose.msra.mxu0 %v140
  %357 = vmatpush.xpose.msra.mxu0 %v132
  %358 = vmatpush.xpose.msra.mxu0 %v124
  %359 = vmatpush.xpose.msra.mxu0 %v116
  %360 = vmatmul.f32.gmra.mxu0 %v116
  %v361 = vpop.f32.mrf.mxu0
  %v362 = vadd.f32 %v333, %v361
  %363 = vmatmul.f32.gmra.mxu0 %v124
  %v364 = vpop.f32.mrf.mxu0
  %v365 = vadd.f32 %v336, %v364
  %366 = vmatmul.f32.gmra.mxu0 %v132
  %v367 = vpop.f32.mrf.mxu0
  %v368 = vadd.f32 %v339, %v367
  %369 = vmatmul.f32.gmra.mxu0 %v140
  %v370 = vpop.f32.mrf.mxu0
  %v371 = vadd.f32 %v342, %v370
  %372 = vdwg.mxu0
  %373 = vmatpush.xpose.msra.mxu0 0.0
  %374 = vmatpush.xpose.msra.mxu0 0.0
  %375 = vmatpush.xpose.msra.mxu0 0.0
  %376 = vmatpush.xpose.msra.mxu0 0.0
  %377 = vmatpush.xpose.msra.mxu0 0.0
  %378 = vmatpush.xpose.msra.mxu0 0.0
  %379 = vmatpush.xpose.msra.mxu0 0.0
  %380 = vmatpush.xpose.msra.mxu0 0.0
  %381 = vmatpush.xpose.msra.mxu0 0.0
  %382 = vmatpush.xpose.msra.mxu0 0.0
  %383 = vmatpush.xpose.msra.mxu0 0.0
  %384 = vmatpush.xpose.msra.mxu0 0.0
  %385 = vmatpush.xpose.msra.mxu0 %v60
  %386 = vmatpush.xpose.msra.mxu0 %v52
  %387 = vmatpush.xpose.msra.mxu0 %v44
  %388 = vmatpush.xpose.msra.mxu0 %v36
  %389 = vmatmul.f32.gmra.mxu0 %v36
  %v390 = vpop.f32.mrf.mxu0
  %v391 = vadd.f32 %v362, %v390
  %392 = vmatmul.f32.gmra.mxu0 %v44
  %v393 = vpop.f32.mrf.mxu0
  %v394 = vadd.f32 %v365, %v393
  %395 = vmatmul.f32.gmra.mxu0 %v52
  %v396 = vpop.f32.mrf.mxu0
  %v397 = vadd.f32 %v368, %v396
  %398 = vmatmul.f32.gmra.mxu0 %v60
  %v399 = vpop.f32.mrf.mxu0
  %v400 = vadd.f32 %v371, %v399
  %401 = vdwg.mxu0
  %402 = vmatpush.xpose.msra.mxu0 0.0
  %403 = vmatpush.xpose.msra.mxu0 0.0
  %404 = vmatpush.xpose.msra.mxu0 0.0
  %405 = vmatpush.xpose.msra.mxu0 0.0
  %406 = vmatpush.xpose.msra.mxu0 0.0
  %407 = vmatpush.xpose.msra.mxu0 0.0
  %408 = vmatpush.xpose.msra.mxu0 0.0
  %409 = vmatpush.xpose.msra.mxu0 0.0
  %410 = vmatpush.xpose.msra.mxu0 0.0
  %411 = vmatpush.xpose.msra.mxu0 0.0
  %412 = vmatpush.xpose.msra.mxu0 0.0
  %413 = vmatpush.xpose.msra.mxu0 0.0
  %414 = vmatpush.xpose.msra.mxu0 %v61
  %415 = vmatpush.xpose.msra.mxu0 %v53
  %416 = vmatpush.xpose.msra.mxu0 %v45
  %417 = vmatpush.xpose.msra.mxu0 %v37
  %418 = vmatmul.f32.gmra.mxu0 %v37
  %v419 = vpop.f32.mrf.mxu0
  %v420 = vadd.f32 %v391, %v419
  %421 = vmatmul.f32.gmra.mxu0 %v45
  %v422 = vpop.f32.mrf.mxu0
  %v423 = vadd.f32 %v394, %v422
  %424 = vmatmul.f32.gmra.mxu0 %v53
  %v425 = vpop.f32.mrf.mxu0
  %v426 = vadd.f32 %v397, %v425
  %427 = vmatmul.f32.gmra.mxu0 %v61
  %v428 = vpop.f32.mrf.mxu0
  %v429 = vadd.f32 %v400, %v428
  %430 = vdwg.mxu0
  %431 = vmatpush.xpose.msra.mxu0 0.0
  %432 = vmatpush.xpose.msra.mxu0 0.0
  %433 = vmatpush.xpose.msra.mxu0 0.0
  %434 = vmatpush.xpose.msra.mxu0 0.0
  %435 = vmatpush.xpose.msra.mxu0 0.0
  %436 = vmatpush.xpose.msra.mxu0 0.0
  %437 = vmatpush.xpose.msra.mxu0 0.0
  %438 = vmatpush.xpose.msra.mxu0 0.0
  %439 = vmatpush.xpose.msra.mxu0 0.0
  %440 = vmatpush.xpose.msra.mxu0 0.0
  %441 = vmatpush.xpose.msra.mxu0 0.0
  %442 = vmatpush.xpose.msra.mxu0 0.0
  %443 = vmatpush.xpose.msra.mxu0 %v62
  %444 = vmatpush.xpose.msra.mxu0 %v54
  %445 = vmatpush.xpose.msra.mxu0 %v46
  %446 = vmatpush.xpose.msra.mxu0 %v38
  %447 = vmatmul.f32.gmra.mxu0 %v38
  %v448 = vpop.f32.mrf.mxu0
  %v449 = vadd.f32 %v420, %v448
  %450 = vmatmul.f32.gmra.mxu0 %v46
  %v451 = vpop.f32.mrf.mxu0
  %v452 = vadd.f32 %v423, %v451
  %453 = vmatmul.f32.gmra.mxu0 %v54
  %v454 = vpop.f32.mrf.mxu0
  %v455 = vadd.f32 %v426, %v454
  %456 = vmatmul.f32.gmra.mxu0 %v62
  %v457 = vpop.f32.mrf.mxu0
  %v458 = vadd.f32 %v429, %v457
  %459 = vdwg.mxu0
  %460 = vmatpush.xpose.msra.mxu0 0.0
  %461 = vmatpush.xpose.msra.mxu0 0.0
  %462 = vmatpush.xpose.msra.mxu0 0.0
  %463 = vmatpush.xpose.msra.mxu0 0.0
  %464 = vmatpush.xpose.msra.mxu0 0.0
  %465 = vmatpush.xpose.msra.mxu0 0.0
  %466 = vmatpush.xpose.msra.mxu0 0.0
  %467 = vmatpush.xpose.msra.mxu0 0.0
  %468 = vmatpush.xpose.msra.mxu0 0.0
  %469 = vmatpush.xpose.msra.mxu0 0.0
  %470 = vmatpush.xpose.msra.mxu0 0.0
  %471 = vmatpush.xpose.msra.mxu0 0.0
  %472 = vmatpush.xpose.msra.mxu0 %v63
  %473 = vmatpush.xpose.msra.mxu0 %v55
  %474 = vmatpush.xpose.msra.mxu0 %v47
  %475 = vmatpush.xpose.msra.mxu0 %v39
  %476 = vmatmul.f32.gmra.mxu0 %v39
  %v477 = vpop.f32.mrf.mxu0
  %v478 = vadd.f32 %v449, %v477
  %479 = vmatmul.f32.gmra.mxu0 %v47
  %v480 = vpop.f32.mrf.mxu0
  %v481 = vadd.f32 %v452, %v480
  %482 = vmatmul.f32.gmra.mxu0 %v55
  %v483 = vpop.f32.mrf.mxu0
  %v484 = vadd.f32 %v455, %v483
  %485 = vmatmul.f32.gmra.mxu0 %v63
  %v486 = vpop.f32.mrf.mxu0
  %v487 = vadd.f32 %v458, %v486
  %488 = vdwg.mxu0
  %489 = vmatpush.xpose.msra.mxu0 0.0
  %490 = vmatpush.xpose.msra.mxu0 0.0
  %491 = vmatpush.xpose.msra.mxu0 0.0
  %492 = vmatpush.xpose.msra.mxu0 0.0
  %493 = vmatpush.xpose.msra.mxu0 0.0
  %494 = vmatpush.xpose.msra.mxu0 0.0
  %495 = vmatpush.xpose.msra.mxu0 0.0
  %496 = vmatpush.xpose.msra.mxu0 0.0
  %497 = vmatpush.xpose.msra.mxu0 0.0
  %498 = vmatpush.xpose.msra.mxu0 0.0
  %499 = vmatpush.xpose.msra.mxu0 0.0
  %500 = vmatpush.xpose.msra.mxu0 0.0
  %501 = vmatpush.xpose.msra.mxu0 %v64
  %502 = vmatpush.xpose.msra.mxu0 %v56
  %503 = vmatpush.xpose.msra.mxu0 %v48
  %504 = vmatpush.xpose.msra.mxu0 %v40
  %505 = vmatmul.f32.gmra.mxu0 %v40
  %v506 = vpop.f32.mrf.mxu0
  %v507 = vadd.f32 %v478, %v506
  %508 = vmatmul.f32.gmra.mxu0 %v48
  %v509 = vpop.f32.mrf.mxu0
  %v510 = vadd.f32 %v481, %v509
  %511 = vmatmul.f32.gmra.mxu0 %v56
  %v512 = vpop.f32.mrf.mxu0
  %v513 = vadd.f32 %v484, %v512
  %514 = vmatmul.f32.gmra.mxu0 %v64
  %v515 = vpop.f32.mrf.mxu0
  %v516 = vadd.f32 %v487, %v515
  %517 = vdwg.mxu0
  %518 = vmatpush.xpose.msra.mxu0 0.0
  %519 = vmatpush.xpose.msra.mxu0 0.0
  %520 = vmatpush.xpose.msra.mxu0 0.0
  %521 = vmatpush.xpose.msra.mxu0 0.0
  %522 = vmatpush.xpose.msra.mxu0 0.0
  %523 = vmatpush.xpose.msra.mxu0 0.0
  %524 = vmatpush.xpose.msra.mxu0 0.0
  %525 = vmatpush.xpose.msra.mxu0 0.0
  %526 = vmatpush.xpose.msra.mxu0 0.0
  %527 = vmatpush.xpose.msra.mxu0 0.0
  %528 = vmatpush.xpose.msra.mxu0 0.0
  %529 = vmatpush.xpose.msra.mxu0 0.0
  %530 = vmatpush.xpose.msra.mxu0 %v65
  %531 = vmatpush.xpose.msra.mxu0 %v57
  %532 = vmatpush.xpose.msra.mxu0 %v49
  %533 = vmatpush.xpose.msra.mxu0 %v41
  %534 = vmatmul.f32.gmra.mxu0 %v41
  %v535 = vpop.f32.mrf.mxu0
  %v536 = vadd.f32 %v507, %v535
  %537 = vmatmul.f32.gmra.mxu0 %v49
  %v538 = vpop.f32.mrf.mxu0
  %v539 = vadd.f32 %v510, %v538
  %540 = vmatmul.f32.gmra.mxu0 %v57
  %v541 = vpop.f32.mrf.mxu0
  %v542 = vadd.f32 %v513, %v541
  %543 = vmatmul.f32.gmra.mxu0 %v65
  %v544 = vpop.f32.mrf.mxu0
  %v545 = vadd.f32 %v516, %v544
  %546 = vdwg.mxu0
  %547 = vmatpush.xpose.msra.mxu0 0.0
  %548 = vmatpush.xpose.msra.mxu0 0.0
  %549 = vmatpush.xpose.msra.mxu0 0.0
  %550 = vmatpush.xpose.msra.mxu0 0.0
  %551 = vmatpush.xpose.msra.mxu0 0.0
  %552 = vmatpush.xpose.msra.mxu0 0.0
  %553 = vmatpush.xpose.msra.mxu0 0.0
  %554 = vmatpush.xpose.msra.mxu0 0.0
  %555 = vmatpush.xpose.msra.mxu0 0.0
  %556 = vmatpush.xpose.msra.mxu0 0.0
  %557 = vmatpush.xpose.msra.mxu0 0.0
  %558 = vmatpush.xpose.msra.mxu0 0.0
  %559 = vmatpush.xpose.msra.mxu0 %v66
  %560 = vmatpush.xpose.msra.mxu0 %v58
  %561 = vmatpush.xpose.msra.mxu0 %v50
  %562 = vmatpush.xpose.msra.mxu0 %v42
  %563 = vmatmul.f32.gmra.mxu0 %v42
  %v564 = vpop.f32.mrf.mxu0
  %v565 = vadd.f32 %v536, %v564
  %566 = vmatmul.f32.gmra.mxu0 %v50
  %v567 = vpop.f32.mrf.mxu0
  %v568 = vadd.f32 %v539, %v567
  %569 = vmatmul.f32.gmra.mxu0 %v58
  %v570 = vpop.f32.mrf.mxu0
  %v571 = vadd.f32 %v542, %v570
  %572 = vmatmul.f32.gmra.mxu0 %v66
  %v573 = vpop.f32.mrf.mxu0
  %v574 = vadd.f32 %v545, %v573
  %575 = vdwg.mxu0
  %576 = vmatpush.xpose.msra.mxu0 0.0
  %577 = vmatpush.xpose.msra.mxu0 0.0
  %578 = vmatpush.xpose.msra.mxu0 0.0
  %579 = vmatpush.xpose.msra.mxu0 0.0
  %580 = vmatpush.xpose.msra.mxu0 0.0
  %581 = vmatpush.xpose.msra.mxu0 0.0
  %582 = vmatpush.xpose.msra.mxu0 0.0
  %583 = vmatpush.xpose.msra.mxu0 0.0
  %584 = vmatpush.xpose.msra.mxu0 0.0
  %585 = vmatpush.xpose.msra.mxu0 0.0
  %586 = vmatpush.xpose.msra.mxu0 0.0
  %587 = vmatpush.xpose.msra.mxu0 0.0
  %588 = vmatpush.xpose.msra.mxu0 %v67
  %589 = vmatpush.xpose.msra.mxu0 %v59
  %590 = vmatpush.xpose.msra.mxu0 %v51
  %591 = vmatpush.xpose.msra.mxu0 %v43
  %592 = vmatmul.f32.gmra.mxu0 %v43
  %v593 = vpop.f32.mrf.mxu0
  %v594 = vadd.f32 %v565, %v593
  %595 = vmatmul.f32.gmra.mxu0 %v51
  %v596 = vpop.f32.mrf.mxu0
  %v597 = vadd.f32 %v568, %v596
  %598 = vmatmul.f32.gmra.mxu0 %v59
  %v599 = vpop.f32.mrf.mxu0
  %v600 = vadd.f32 %v571, %v599
  %601 = vmatmul.f32.gmra.mxu0 %v67
  %v602 = vpop.f32.mrf.mxu0
  %v603 = vadd.f32 %v574, %v602
  %604 = vdwg.mxu0
  %v605 = vadd.f32 %v109, %v110
  %v606 = vadd.f32 %v605, %v111
  %v607 = vadd.f32 %v606, %v112
  %v608 = vadd.f32 %v607, %v113
  %v609 = vadd.f32 %v608, %v114
  %v610 = vadd.f32 %v609, %v115
  %v611 = vadd.f32 %v610, %v116
  %612 = vadd.xlane.f32.xlu0 %v611
  %v613 = vpop.xlane.xlu0 %612
  %v614 = vadd.f32 %v117, %v118
  %v615 = vadd.f32 %v614, %v119
  %v616 = vadd.f32 %v615, %v120
  %v617 = vadd.f32 %v616, %v121
  %v618 = vadd.f32 %v617, %v122
  %v619 = vadd.f32 %v618, %v123
  %v620 = vadd.f32 %v619, %v124
  %621 = vadd.xlane.f32.xlu0 %v620
  %v622 = vpop.xlane.xlu0 %621
  %v623 = vadd.f32 %v125, %v126
  %v624 = vadd.f32 %v623, %v127
  %v625 = vadd.f32 %v624, %v128
  %v626 = vadd.f32 %v625, %v129
  %v627 = vadd.f32 %v626, %v130
  %v628 = vadd.f32 %v627, %v131
  %v629 = vadd.f32 %v628, %v132
  %630 = vadd.xlane.f32.xlu0 %v629
  %v631 = vpop.xlane.xlu0 %630
  %v632 = vadd.f32 %v133, %v134
  %v633 = vadd.f32 %v632, %v135
  %v634 = vadd.f32 %v633, %v136
  %v635 = vadd.f32 %v634, %v137
  %v636 = vadd.f32 %v635, %v138
  %v637 = vadd.f32 %v636, %v139
  %v638 = vadd.f32 %v637, %v140
  %639 = vadd.xlane.f32.xlu0 %v638
  %v640 = vpop.xlane.xlu0 %639
  %v641 = vadd.f32 %v104, %v613
  %v642 = vadd.f32 %v105, %v622
  %v643 = vadd.f32 %v106, %v631
  %v644 = vadd.f32 %v107, %v640
  %vm645 = vcmask 261120
  %v647 = vsel %vm645, %v28, 0
  %v650 = vsel %vm645, %v29, 0
  %v653 = vsel %vm645, %v30, 0
  %v656 = vsel %vm645, %v31, 0
  %658 = vmatpush.msra.mxu0 0.0
  %659 = vmatpush.msra.mxu0 0.0
  %660 = vmatpush.msra.mxu0 0.0
  %661 = vmatpush.msra.mxu0 0.0
  %662 = vmatpush.msra.mxu0 0.0
  %663 = vmatpush.msra.mxu0 0.0
  %664 = vmatpush.msra.mxu0 0.0
  %665 = vmatpush.msra.mxu0 0.0
  %666 = vmatpush.msra.mxu0 0.0
  %667 = vmatpush.msra.mxu0 0.0
  %668 = vmatpush.msra.mxu0 0.0
  %669 = vmatpush.msra.mxu0 0.0
  %670 = vmatpush.msra.mxu0 %v644
  %671 = vmatpush.msra.mxu0 %v643
  %672 = vmatpush.msra.mxu0 %v642
  %673 = vmatpush.msra.mxu0 %v641
  %674 = vmatmul.f32.gmra.mxu0 %v647
  %v675 = vpop.f32.mrf.mxu0
  %v676 = vadd.f32 0.0, %v675
  %677 = vmatmul.f32.gmra.mxu0 %v650
  %v678 = vpop.f32.mrf.mxu0
  %v679 = vadd.f32 0.0, %v678
  %680 = vmatmul.f32.gmra.mxu0 %v653
  %v681 = vpop.f32.mrf.mxu0
  %v682 = vadd.f32 0.0, %v681
  %683 = vmatmul.f32.gmra.mxu0 %v656
  %v684 = vpop.f32.mrf.mxu0
  %v685 = vadd.f32 0.0, %v684
  %686 = vdwg.mxu0
  %v687 = vmul.f32 %v676, 0.00048828125
  %v688 = vmul.f32 %v679, 0.00048828125
  %v689 = vmul.f32 %v682, 0.00048828125
  %v690 = vmul.f32 %v685, 0.00048828125
  %691 = vmatpush.msra.mxu0 0.0
  %692 = vmatpush.msra.mxu0 0.0
  %693 = vmatpush.msra.mxu0 0.0
  %694 = vmatpush.msra.mxu0 0.0
  %695 = vmatpush.msra.mxu0 0.0
  %696 = vmatpush.msra.mxu0 0.0
  %697 = vmatpush.msra.mxu0 0.0
  %698 = vmatpush.msra.mxu0 0.0
  %699 = vmatpush.msra.mxu0 0.0
  %700 = vmatpush.msra.mxu0 0.0
  %701 = vmatpush.msra.mxu0 0.0
  %702 = vmatpush.msra.mxu0 0.0
  %703 = vmatpush.msra.mxu0 %v603
  %704 = vmatpush.msra.mxu0 %v600
  %705 = vmatpush.msra.mxu0 %v597
  %706 = vmatpush.msra.mxu0 %v594
  %707 = vmatmul.f32.gmra.mxu0 %v647
  %v708 = vpop.f32.mrf.mxu0
  %v709 = vadd.f32 0.0, %v708
  %710 = vmatmul.f32.gmra.mxu0 %v650
  %v711 = vpop.f32.mrf.mxu0
  %v712 = vadd.f32 0.0, %v711
  %713 = vmatmul.f32.gmra.mxu0 %v653
  %v714 = vpop.f32.mrf.mxu0
  %v715 = vadd.f32 0.0, %v714
  %716 = vmatmul.f32.gmra.mxu0 %v656
  %v717 = vpop.f32.mrf.mxu0
  %v718 = vadd.f32 0.0, %v717
  %719 = vdwg.mxu0
  %v720 = vmul.f32 %v709, %v28
  %v721 = vmul.f32 %v712, %v29
  %v722 = vmul.f32 %v715, %v30
  %v723 = vmul.f32 %v718, %v31
  %v724 = vsel %vm645, %v720, 0.0
  %725 = vadd.xlane.f32.xlu0 %v724
  %v726 = vpop.xlane.xlu0 %725
  %v727 = vsel %vm645, %v721, 0.0
  %728 = vadd.xlane.f32.xlu0 %v727
  %v729 = vpop.xlane.xlu0 %728
  %v730 = vsel %vm645, %v722, 0.0
  %731 = vadd.xlane.f32.xlu0 %v730
  %v732 = vpop.xlane.xlu0 %731
  %v733 = vsel %vm645, %v723, 0.0
  %734 = vadd.xlane.f32.xlu0 %v733
  %v735 = vpop.xlane.xlu0 %734
  %v736 = vmul.f32 %v726, 0.00048828125
  %v737 = vmul.f32 %v729, 0.00048828125
  %v738 = vmul.f32 %v732, 0.00048828125
  %v739 = vmul.f32 %v735, 0.00048828125
  %v740 = vmul.f32 %v687, %v687
  %v741 = vmul.f32 %v688, %v688
  %v742 = vmul.f32 %v689, %v689
  %v743 = vmul.f32 %v690, %v690
  %v744 = vsub.f32 %v736, %v740
  %v745 = vsub.f32 %v737, %v741
  %v746 = vsub.f32 %v738, %v742
  %v747 = vsub.f32 %v739, %v743
  %v748 = vmax.f32 %v744, 0.0
  %v749 = vmax.f32 %v745, 0.0
  %v750 = vmax.f32 %v746, 0.0
  %v751 = vmax.f32 %v747, 0.0
  %v752 = vadd.f32 %v748, 1e-05
  %v753 = vadd.f32 %v749, 1e-05
  %v754 = vadd.f32 %v750, 1e-05
  %v755 = vadd.f32 %v751, 1e-05
  %v756 = vrsqrt.pop %v752
  %v757 = vmul.f32 %v756, %v752
  %v758 = vmul.f32 %v757, %v756
  %v759 = vmul.f32 0.5, %v758
  %v760 = vsub.f32 1.5, %v759
  %v761 = vmul.f32 %v756, %v760
  %vm762 = vweird.f32 %v752
  %vm763 = vweird.f32 %v756
  %vm764 = vmor %vm762, %vm763
  %v765 = vsel %vm764, %v756, %v761
  %v766 = vrsqrt.pop %v753
  %v767 = vmul.f32 %v766, %v753
  %v768 = vmul.f32 %v767, %v766
  %v769 = vmul.f32 0.5, %v768
  %v770 = vsub.f32 1.5, %v769
  %v771 = vmul.f32 %v766, %v770
  %vm772 = vweird.f32 %v753
  %vm773 = vweird.f32 %v766
  %vm774 = vmor %vm772, %vm773
  %v775 = vsel %vm774, %v766, %v771
  %v776 = vrsqrt.pop %v754
  %v777 = vmul.f32 %v776, %v754
  %v778 = vmul.f32 %v777, %v776
  %v779 = vmul.f32 0.5, %v778
  %v780 = vsub.f32 1.5, %v779
  %v781 = vmul.f32 %v776, %v780
  %vm782 = vweird.f32 %v754
  %vm783 = vweird.f32 %v776
  %vm784 = vmor %vm782, %vm783
  %v785 = vsel %vm784, %v776, %v781
  %v786 = vrsqrt.pop %v755
  %v787 = vmul.f32 %v786, %v755
  %v788 = vmul.f32 %v787, %v786
  %v789 = vmul.f32 0.5, %v788
  %v790 = vsub.f32 1.5, %v789
  %v791 = vmul.f32 %v786, %v790
  %vm792 = vweird.f32 %v755
  %vm793 = vweird.f32 %v786
  %vm794 = vmor %vm792, %vm793
  %v795 = vsel %vm794, %v786, %v791
  %v796 = vmul.f32 %v765, %v32
  %v797 = vmul.f32 %v775, %v33
  %v798 = vmul.f32 %v785, %v34
  %v799 = vmul.f32 %v795, %v35
  %v800 = vmul.f32 %v687, %v796
  %v801 = vmul.f32 %v688, %v797
  %v802 = vmul.f32 %v689, %v798
  %v803 = vmul.f32 %v690, %v799
  %808 = vrot.lane.b32.xlu0 %v800, 1
  %v809 = vpop.permute.xlu0 %808
  %810 = vrot.lane.b32.xlu0 %v801, 1
  %v811 = vpop.permute.xlu0 %810
  %812 = vrot.lane.b32.xlu0 %v802, 1
  %v813 = vpop.permute.xlu0 %812
  %814 = vrot.lane.b32.xlu0 %v803, 1
  %v815 = vpop.permute.xlu0 %814
  %v820 = vsub.f32 %v32, %v809
  %v821 = vsub.f32 %v33, %v811
  %v822 = vsub.f32 %v34, %v813
  %v823 = vsub.f32 %v35, %v815
  %824 = vmatpush.msra.mxu0 0.0
  %825 = vmatpush.msra.mxu0 0.0
  %826 = vmatpush.msra.mxu0 0.0
  %827 = vmatpush.msra.mxu0 0.0
  %828 = vmatpush.msra.mxu0 0.0
  %829 = vmatpush.msra.mxu0 0.0
  %830 = vmatpush.msra.mxu0 0.0
  %831 = vmatpush.msra.mxu0 0.0
  %832 = vmatpush.msra.mxu0 0.0
  %833 = vmatpush.msra.mxu0 0.0
  %834 = vmatpush.msra.mxu0 0.0
  %835 = vmatpush.msra.mxu0 0.0
  %836 = vmatpush.msra.mxu0 %v60
  %837 = vmatpush.msra.mxu0 %v52
  %838 = vmatpush.msra.mxu0 %v44
  %839 = vmatpush.msra.mxu0 %v36
  %840 = vmatmul.f32.gmra.mxu0 %v647
  %v841 = vpop.f32.mrf.mxu0
  %v842 = vadd.f32 0.0, %v841
  %843 = vmatmul.f32.gmra.mxu0 %v650
  %v844 = vpop.f32.mrf.mxu0
  %v845 = vadd.f32 0.0, %v844
  %846 = vmatmul.f32.gmra.mxu0 %v653
  %v847 = vpop.f32.mrf.mxu0
  %v848 = vadd.f32 0.0, %v847
  %849 = vmatmul.f32.gmra.mxu0 %v656
  %v850 = vpop.f32.mrf.mxu0
  %v851 = vadd.f32 0.0, %v850
  %852 = vdwg.mxu0
  %853 = vmatpush.msra.mxu0 0.0
  %854 = vmatpush.msra.mxu0 0.0
  %855 = vmatpush.msra.mxu0 0.0
  %856 = vmatpush.msra.mxu0 0.0
  %857 = vmatpush.msra.mxu0 0.0
  %858 = vmatpush.msra.mxu0 0.0
  %859 = vmatpush.msra.mxu0 0.0
  %860 = vmatpush.msra.mxu0 0.0
  %861 = vmatpush.msra.mxu0 0.0
  %862 = vmatpush.msra.mxu0 0.0
  %863 = vmatpush.msra.mxu0 0.0
  %864 = vmatpush.msra.mxu0 0.0
  %865 = vmatpush.msra.mxu0 %v61
  %866 = vmatpush.msra.mxu0 %v53
  %867 = vmatpush.msra.mxu0 %v45
  %868 = vmatpush.msra.mxu0 %v37
  %869 = vmatmul.f32.gmra.mxu0 %v647
  %v870 = vpop.f32.mrf.mxu0
  %v871 = vadd.f32 0.0, %v870
  %872 = vmatmul.f32.gmra.mxu0 %v650
  %v873 = vpop.f32.mrf.mxu0
  %v874 = vadd.f32 0.0, %v873
  %875 = vmatmul.f32.gmra.mxu0 %v653
  %v876 = vpop.f32.mrf.mxu0
  %v877 = vadd.f32 0.0, %v876
  %878 = vmatmul.f32.gmra.mxu0 %v656
  %v879 = vpop.f32.mrf.mxu0
  %v880 = vadd.f32 0.0, %v879
  %881 = vdwg.mxu0
  %882 = vmatpush.msra.mxu0 0.0
  %883 = vmatpush.msra.mxu0 0.0
  %884 = vmatpush.msra.mxu0 0.0
  %885 = vmatpush.msra.mxu0 0.0
  %886 = vmatpush.msra.mxu0 0.0
  %887 = vmatpush.msra.mxu0 0.0
  %888 = vmatpush.msra.mxu0 0.0
  %889 = vmatpush.msra.mxu0 0.0
  %890 = vmatpush.msra.mxu0 0.0
  %891 = vmatpush.msra.mxu0 0.0
  %892 = vmatpush.msra.mxu0 0.0
  %893 = vmatpush.msra.mxu0 0.0
  %894 = vmatpush.msra.mxu0 %v62
  %895 = vmatpush.msra.mxu0 %v54
  %896 = vmatpush.msra.mxu0 %v46
  %897 = vmatpush.msra.mxu0 %v38
  %898 = vmatmul.f32.gmra.mxu0 %v647
  %v899 = vpop.f32.mrf.mxu0
  %v900 = vadd.f32 0.0, %v899
  %901 = vmatmul.f32.gmra.mxu0 %v650
  %v902 = vpop.f32.mrf.mxu0
  %v903 = vadd.f32 0.0, %v902
  %904 = vmatmul.f32.gmra.mxu0 %v653
  %v905 = vpop.f32.mrf.mxu0
  %v906 = vadd.f32 0.0, %v905
  %907 = vmatmul.f32.gmra.mxu0 %v656
  %v908 = vpop.f32.mrf.mxu0
  %v909 = vadd.f32 0.0, %v908
  %910 = vdwg.mxu0
  %911 = vmatpush.msra.mxu0 0.0
  %912 = vmatpush.msra.mxu0 0.0
  %913 = vmatpush.msra.mxu0 0.0
  %914 = vmatpush.msra.mxu0 0.0
  %915 = vmatpush.msra.mxu0 0.0
  %916 = vmatpush.msra.mxu0 0.0
  %917 = vmatpush.msra.mxu0 0.0
  %918 = vmatpush.msra.mxu0 0.0
  %919 = vmatpush.msra.mxu0 0.0
  %920 = vmatpush.msra.mxu0 0.0
  %921 = vmatpush.msra.mxu0 0.0
  %922 = vmatpush.msra.mxu0 0.0
  %923 = vmatpush.msra.mxu0 %v63
  %924 = vmatpush.msra.mxu0 %v55
  %925 = vmatpush.msra.mxu0 %v47
  %926 = vmatpush.msra.mxu0 %v39
  %927 = vmatmul.f32.gmra.mxu0 %v647
  %v928 = vpop.f32.mrf.mxu0
  %v929 = vadd.f32 0.0, %v928
  %930 = vmatmul.f32.gmra.mxu0 %v650
  %v931 = vpop.f32.mrf.mxu0
  %v932 = vadd.f32 0.0, %v931
  %933 = vmatmul.f32.gmra.mxu0 %v653
  %v934 = vpop.f32.mrf.mxu0
  %v935 = vadd.f32 0.0, %v934
  %936 = vmatmul.f32.gmra.mxu0 %v656
  %v937 = vpop.f32.mrf.mxu0
  %v938 = vadd.f32 0.0, %v937
  %939 = vdwg.mxu0
  %940 = vmatpush.msra.mxu0 0.0
  %941 = vmatpush.msra.mxu0 0.0
  %942 = vmatpush.msra.mxu0 0.0
  %943 = vmatpush.msra.mxu0 0.0
  %944 = vmatpush.msra.mxu0 0.0
  %945 = vmatpush.msra.mxu0 0.0
  %946 = vmatpush.msra.mxu0 0.0
  %947 = vmatpush.msra.mxu0 0.0
  %948 = vmatpush.msra.mxu0 0.0
  %949 = vmatpush.msra.mxu0 0.0
  %950 = vmatpush.msra.mxu0 0.0
  %951 = vmatpush.msra.mxu0 0.0
  %952 = vmatpush.msra.mxu0 %v64
  %953 = vmatpush.msra.mxu0 %v56
  %954 = vmatpush.msra.mxu0 %v48
  %955 = vmatpush.msra.mxu0 %v40
  %956 = vmatmul.f32.gmra.mxu0 %v647
  %v957 = vpop.f32.mrf.mxu0
  %v958 = vadd.f32 0.0, %v957
  %959 = vmatmul.f32.gmra.mxu0 %v650
  %v960 = vpop.f32.mrf.mxu0
  %v961 = vadd.f32 0.0, %v960
  %962 = vmatmul.f32.gmra.mxu0 %v653
  %v963 = vpop.f32.mrf.mxu0
  %v964 = vadd.f32 0.0, %v963
  %965 = vmatmul.f32.gmra.mxu0 %v656
  %v966 = vpop.f32.mrf.mxu0
  %v967 = vadd.f32 0.0, %v966
  %968 = vdwg.mxu0
  %969 = vmatpush.msra.mxu0 0.0
  %970 = vmatpush.msra.mxu0 0.0
  %971 = vmatpush.msra.mxu0 0.0
  %972 = vmatpush.msra.mxu0 0.0
  %973 = vmatpush.msra.mxu0 0.0
  %974 = vmatpush.msra.mxu0 0.0
  %975 = vmatpush.msra.mxu0 0.0
  %976 = vmatpush.msra.mxu0 0.0
  %977 = vmatpush.msra.mxu0 0.0
  %978 = vmatpush.msra.mxu0 0.0
  %979 = vmatpush.msra.mxu0 0.0
  %980 = vmatpush.msra.mxu0 0.0
  %981 = vmatpush.msra.mxu0 %v65
  %982 = vmatpush.msra.mxu0 %v57
  %983 = vmatpush.msra.mxu0 %v49
  %984 = vmatpush.msra.mxu0 %v41
  %985 = vmatmul.f32.gmra.mxu0 %v647
  %v986 = vpop.f32.mrf.mxu0
  %v987 = vadd.f32 0.0, %v986
  %988 = vmatmul.f32.gmra.mxu0 %v650
  %v989 = vpop.f32.mrf.mxu0
  %v990 = vadd.f32 0.0, %v989
  %991 = vmatmul.f32.gmra.mxu0 %v653
  %v992 = vpop.f32.mrf.mxu0
  %v993 = vadd.f32 0.0, %v992
  %994 = vmatmul.f32.gmra.mxu0 %v656
  %v995 = vpop.f32.mrf.mxu0
  %v996 = vadd.f32 0.0, %v995
  %997 = vdwg.mxu0
  %998 = vmatpush.msra.mxu0 0.0
  %999 = vmatpush.msra.mxu0 0.0
  %1000 = vmatpush.msra.mxu0 0.0
  %1001 = vmatpush.msra.mxu0 0.0
  %1002 = vmatpush.msra.mxu0 0.0
  %1003 = vmatpush.msra.mxu0 0.0
  %1004 = vmatpush.msra.mxu0 0.0
  %1005 = vmatpush.msra.mxu0 0.0
  %1006 = vmatpush.msra.mxu0 0.0
  %1007 = vmatpush.msra.mxu0 0.0
  %1008 = vmatpush.msra.mxu0 0.0
  %1009 = vmatpush.msra.mxu0 0.0
  %1010 = vmatpush.msra.mxu0 %v66
  %1011 = vmatpush.msra.mxu0 %v58
  %1012 = vmatpush.msra.mxu0 %v50
  %1013 = vmatpush.msra.mxu0 %v42
  %1014 = vmatmul.f32.gmra.mxu0 %v647
  %v1015 = vpop.f32.mrf.mxu0
  %v1016 = vadd.f32 0.0, %v1015
  %1017 = vmatmul.f32.gmra.mxu0 %v650
  %v1018 = vpop.f32.mrf.mxu0
  %v1019 = vadd.f32 0.0, %v1018
  %1020 = vmatmul.f32.gmra.mxu0 %v653
  %v1021 = vpop.f32.mrf.mxu0
  %v1022 = vadd.f32 0.0, %v1021
  %1023 = vmatmul.f32.gmra.mxu0 %v656
  %v1024 = vpop.f32.mrf.mxu0
  %v1025 = vadd.f32 0.0, %v1024
  %1026 = vdwg.mxu0
  %1027 = vmatpush.msra.mxu0 0.0
  %1028 = vmatpush.msra.mxu0 0.0
  %1029 = vmatpush.msra.mxu0 0.0
  %1030 = vmatpush.msra.mxu0 0.0
  %1031 = vmatpush.msra.mxu0 0.0
  %1032 = vmatpush.msra.mxu0 0.0
  %1033 = vmatpush.msra.mxu0 0.0
  %1034 = vmatpush.msra.mxu0 0.0
  %1035 = vmatpush.msra.mxu0 0.0
  %1036 = vmatpush.msra.mxu0 0.0
  %1037 = vmatpush.msra.mxu0 0.0
  %1038 = vmatpush.msra.mxu0 0.0
  %1039 = vmatpush.msra.mxu0 %v67
  %1040 = vmatpush.msra.mxu0 %v59
  %1041 = vmatpush.msra.mxu0 %v51
  %1042 = vmatpush.msra.mxu0 %v43
  %1043 = vmatmul.f32.gmra.mxu0 %v647
  %v1044 = vpop.f32.mrf.mxu0
  %v1045 = vadd.f32 0.0, %v1044
  %1046 = vmatmul.f32.gmra.mxu0 %v650
  %v1047 = vpop.f32.mrf.mxu0
  %v1048 = vadd.f32 0.0, %v1047
  %1049 = vmatmul.f32.gmra.mxu0 %v653
  %v1050 = vpop.f32.mrf.mxu0
  %v1051 = vadd.f32 0.0, %v1050
  %1052 = vmatmul.f32.gmra.mxu0 %v656
  %v1053 = vpop.f32.mrf.mxu0
  %v1054 = vadd.f32 0.0, %v1053
  %1055 = vdwg.mxu0
  %1057 = vset.pattern.permute.xlu0 0
  %1058 = vperm.xlu0 %1057, %v796
  %v1059 = vpop.permute.xlu0 %1058
  %1062 = vset.pattern.permute.xlu0 0
  %1063 = vperm.xlu0 %1062, %v797
  %v1064 = vpop.permute.xlu0 %1063
  %1067 = vset.pattern.permute.xlu0 0
  %1068 = vperm.xlu0 %1067, %v798
  %v1069 = vpop.permute.xlu0 %1068
  %1072 = vset.pattern.permute.xlu0 0
  %1073 = vperm.xlu0 %1072, %v799
  %v1074 = vpop.permute.xlu0 %1073
  %v1076 = vmul.f32 %v842, %v1059
  %v1077 = vmul.f32 %v871, %v1059
  %v1078 = vmul.f32 %v900, %v1059
  %v1079 = vmul.f32 %v929, %v1059
  %v1080 = vmul.f32 %v958, %v1059
  %v1081 = vmul.f32 %v987, %v1059
  %v1082 = vmul.f32 %v1016, %v1059
  %v1083 = vmul.f32 %v1045, %v1059
  %v1084 = vmul.f32 %v845, %v1064
  %v1085 = vmul.f32 %v874, %v1064
  %v1086 = vmul.f32 %v903, %v1064
  %v1087 = vmul.f32 %v932, %v1064
  %v1088 = vmul.f32 %v961, %v1064
  %v1089 = vmul.f32 %v990, %v1064
  %v1090 = vmul.f32 %v1019, %v1064
  %v1091 = vmul.f32 %v1048, %v1064
  %v1092 = vmul.f32 %v848, %v1069
  %v1093 = vmul.f32 %v877, %v1069
  %v1094 = vmul.f32 %v906, %v1069
  %v1095 = vmul.f32 %v935, %v1069
  %v1096 = vmul.f32 %v964, %v1069
  %v1097 = vmul.f32 %v993, %v1069
  %v1098 = vmul.f32 %v1022, %v1069
  %v1099 = vmul.f32 %v1051, %v1069
  %v1100 = vmul.f32 %v851, %v1074
  %v1101 = vmul.f32 %v880, %v1074
  %v1102 = vmul.f32 %v909, %v1074
  %v1103 = vmul.f32 %v938, %v1074
  %v1104 = vmul.f32 %v967, %v1074
  %v1105 = vmul.f32 %v996, %v1074
  %v1106 = vmul.f32 %v1025, %v1074
  %v1107 = vmul.f32 %v1054, %v1074
  %1109 = vset.pattern.permute.xlu0 1
  %1110 = vperm.xlu0 %1109, %v820
  %v1111 = vpop.permute.xlu0 %1110
  %1114 = vset.pattern.permute.xlu0 1
  %1115 = vperm.xlu0 %1114, %v821
  %v1116 = vpop.permute.xlu0 %1115
  %1119 = vset.pattern.permute.xlu0 1
  %1120 = vperm.xlu0 %1119, %v822
  %v1121 = vpop.permute.xlu0 %1120
  %1124 = vset.pattern.permute.xlu0 1
  %1125 = vperm.xlu0 %1124, %v823
  %v1126 = vpop.permute.xlu0 %1125
  %v1128 = vadd.f32 %v1076, %v1111
  %v1129 = vadd.f32 %v1077, %v1111
  %v1130 = vadd.f32 %v1078, %v1111
  %v1131 = vadd.f32 %v1079, %v1111
  %v1132 = vadd.f32 %v1080, %v1111
  %v1133 = vadd.f32 %v1081, %v1111
  %v1134 = vadd.f32 %v1082, %v1111
  %v1135 = vadd.f32 %v1083, %v1111
  %v1136 = vadd.f32 %v1084, %v1116
  %v1137 = vadd.f32 %v1085, %v1116
  %v1138 = vadd.f32 %v1086, %v1116
  %v1139 = vadd.f32 %v1087, %v1116
  %v1140 = vadd.f32 %v1088, %v1116
  %v1141 = vadd.f32 %v1089, %v1116
  %v1142 = vadd.f32 %v1090, %v1116
  %v1143 = vadd.f32 %v1091, %v1116
  %v1144 = vadd.f32 %v1092, %v1121
  %v1145 = vadd.f32 %v1093, %v1121
  %v1146 = vadd.f32 %v1094, %v1121
  %v1147 = vadd.f32 %v1095, %v1121
  %v1148 = vadd.f32 %v1096, %v1121
  %v1149 = vadd.f32 %v1097, %v1121
  %v1150 = vadd.f32 %v1098, %v1121
  %v1151 = vadd.f32 %v1099, %v1121
  %v1152 = vadd.f32 %v1100, %v1126
  %v1153 = vadd.f32 %v1101, %v1126
  %v1154 = vadd.f32 %v1102, %v1126
  %v1155 = vadd.f32 %v1103, %v1126
  %v1156 = vadd.f32 %v1104, %v1126
  %v1157 = vadd.f32 %v1105, %v1126
  %v1158 = vadd.f32 %v1106, %v1126
  %v1159 = vadd.f32 %v1107, %v1126
  %1160 = vst [vmem:[%s6] sm:$0xff] %v1128
  %1161 = vst [vmem:[%s6 + $0x8] sm:$0xff] %v1129
  %1162 = vst [vmem:[%s6 + $0x10] sm:$0xff] %v1130
  %1163 = vst [vmem:[%s6 + $0x18] sm:$0xff] %v1131
  %1164 = vst [vmem:[%s6 + $0x20] sm:$0xff] %v1132
  %1165 = vst [vmem:[%s6 + $0x28] sm:$0xff] %v1133
  %1166 = vst [vmem:[%s6 + $0x30] sm:$0xff] %v1134
  %1167 = vst [vmem:[%s6 + $0x38] sm:$0xff] %v1135
  %1168 = vst [vmem:[%s6 + $0x40] sm:$0xff] %v1136
  %1169 = vst [vmem:[%s6 + $0x48] sm:$0xff] %v1137
  %1170 = vst [vmem:[%s6 + $0x50] sm:$0xff] %v1138
  %1171 = vst [vmem:[%s6 + $0x58] sm:$0xff] %v1139
  %1172 = vst [vmem:[%s6 + $0x60] sm:$0xff] %v1140
  %1173 = vst [vmem:[%s6 + $0x68] sm:$0xff] %v1141
  %1174 = vst [vmem:[%s6 + $0x70] sm:$0xff] %v1142
  %1175 = vst [vmem:[%s6 + $0x78] sm:$0xff] %v1143
  %1176 = vst [vmem:[%s7] sm:$0xff] %v1144
  %1177 = vst [vmem:[%s7 + $0x8] sm:$0xff] %v1145
  %1178 = vst [vmem:[%s7 + $0x10] sm:$0xff] %v1146
  %1179 = vst [vmem:[%s7 + $0x18] sm:$0xff] %v1147
  %1180 = vst [vmem:[%s7 + $0x20] sm:$0xff] %v1148
  %1181 = vst [vmem:[%s7 + $0x28] sm:$0xff] %v1149
  %1182 = vst [vmem:[%s7 + $0x30] sm:$0xff] %v1150
  %1183 = vst [vmem:[%s7 + $0x38] sm:$0xff] %v1151
  %1184 = vst [vmem:[%s7 + $0x40] sm:$0xff] %v1152
  %1185 = vst [vmem:[%s7 + $0x48] sm:$0xff] %v1153
  %1186 = vst [vmem:[%s7 + $0x50] sm:$0xff] %v1154
  %1187 = vst [vmem:[%s7 + $0x58] sm:$0xff] %v1155
  %1188 = vst [vmem:[%s7 + $0x60] sm:$0xff] %v1156
  %1189 = vst [vmem:[%s7 + $0x68] sm:$0xff] %v1157
  %1190 = vst [vmem:[%s7 + $0x70] sm:$0xff] %v1158
  %1191 = vst [vmem:[%s7 + $0x78] sm:$0xff] %v1159
  %v1192 = vld [vmem:[%s108] sm:$0xff]
  %v1193 = vld [vmem:[%s108 + $0x8] sm:$0xff]
  %v1194 = vld [vmem:[%s108 + $0x10] sm:$0xff]
  %v1195 = vld [vmem:[%s108 + $0x18] sm:$0xff]
  %v1196 = vld [vmem:[%s108 + $0x20] sm:$0xff]
  %v1197 = vld [vmem:[%s108 + $0x28] sm:$0xff]
  %v1198 = vld [vmem:[%s108 + $0x30] sm:$0xff]
  %v1199 = vld [vmem:[%s108 + $0x38] sm:$0xff]
  %v1200 = vld [vmem:[%s108 + $0x40] sm:$0xff]
  %v1201 = vld [vmem:[%s108 + $0x48] sm:$0xff]
  %v1202 = vld [vmem:[%s108 + $0x50] sm:$0xff]
  %v1203 = vld [vmem:[%s108 + $0x58] sm:$0xff]
  %v1204 = vld [vmem:[%s108 + $0x60] sm:$0xff]
  %v1205 = vld [vmem:[%s108 + $0x68] sm:$0xff]
  %v1206 = vld [vmem:[%s108 + $0x70] sm:$0xff]
  %v1207 = vld [vmem:[%s108 + $0x78] sm:$0xff]
  %v1208 = vld [vmem:[%s108 + $0x80] sm:$0xff]
  %v1209 = vld [vmem:[%s108 + $0x88] sm:$0xff]
  %v1210 = vld [vmem:[%s108 + $0x90] sm:$0xff]
  %v1211 = vld [vmem:[%s108 + $0x98] sm:$0xff]
  %v1212 = vld [vmem:[%s108 + $0xa0] sm:$0xff]
  %v1213 = vld [vmem:[%s108 + $0xa8] sm:$0xff]
  %v1214 = vld [vmem:[%s108 + $0xb0] sm:$0xff]
  %v1215 = vld [vmem:[%s108 + $0xb8] sm:$0xff]
  %v1216 = vld [vmem:[%s108 + $0xc0] sm:$0xff]
  %v1217 = vld [vmem:[%s108 + $0xc8] sm:$0xff]
  %v1218 = vld [vmem:[%s108 + $0xd0] sm:$0xff]
  %v1219 = vld [vmem:[%s108 + $0xd8] sm:$0xff]
  %v1220 = vld [vmem:[%s108 + $0xe0] sm:$0xff]
  %v1221 = vld [vmem:[%s108 + $0xe8] sm:$0xff]
  %v1222 = vld [vmem:[%s108 + $0xf0] sm:$0xff]
  %v1223 = vld [vmem:[%s108 + $0xf8] sm:$0xff]
  %1224 = vmatpush.msra.mxu0 0.0
  %1225 = vmatpush.msra.mxu0 0.0
  %1226 = vmatpush.msra.mxu0 0.0
  %1227 = vmatpush.msra.mxu0 0.0
  %1228 = vmatpush.msra.mxu0 0.0
  %1229 = vmatpush.msra.mxu0 0.0
  %1230 = vmatpush.msra.mxu0 0.0
  %1231 = vmatpush.msra.mxu0 0.0
  %1232 = vmatpush.msra.mxu0 0.0
  %1233 = vmatpush.msra.mxu0 0.0
  %1234 = vmatpush.msra.mxu0 0.0
  %1235 = vmatpush.msra.mxu0 0.0
  %1236 = vmatpush.msra.mxu0 %v1216
  %1237 = vmatpush.msra.mxu0 %v1208
  %1238 = vmatpush.msra.mxu0 %v1200
  %1239 = vmatpush.msra.mxu0 %v1192
  %1240 = vmatmul.f32.gmra.mxu0 %v647
  %v1241 = vpop.f32.mrf.mxu0
  %v1242 = vadd.f32 0.0, %v1241
  %1243 = vmatmul.f32.gmra.mxu0 %v650
  %v1244 = vpop.f32.mrf.mxu0
  %v1245 = vadd.f32 0.0, %v1244
  %1246 = vmatmul.f32.gmra.mxu0 %v653
  %v1247 = vpop.f32.mrf.mxu0
  %v1248 = vadd.f32 0.0, %v1247
  %1249 = vmatmul.f32.gmra.mxu0 %v656
  %v1250 = vpop.f32.mrf.mxu0
  %v1251 = vadd.f32 0.0, %v1250
  %1252 = vdwg.mxu0
  %1253 = vmatpush.msra.mxu0 0.0
  %1254 = vmatpush.msra.mxu0 0.0
  %1255 = vmatpush.msra.mxu0 0.0
  %1256 = vmatpush.msra.mxu0 0.0
  %1257 = vmatpush.msra.mxu0 0.0
  %1258 = vmatpush.msra.mxu0 0.0
  %1259 = vmatpush.msra.mxu0 0.0
  %1260 = vmatpush.msra.mxu0 0.0
  %1261 = vmatpush.msra.mxu0 0.0
  %1262 = vmatpush.msra.mxu0 0.0
  %1263 = vmatpush.msra.mxu0 0.0
  %1264 = vmatpush.msra.mxu0 0.0
  %1265 = vmatpush.msra.mxu0 %v1217
  %1266 = vmatpush.msra.mxu0 %v1209
  %1267 = vmatpush.msra.mxu0 %v1201
  %1268 = vmatpush.msra.mxu0 %v1193
  %1269 = vmatmul.f32.gmra.mxu0 %v647
  %v1270 = vpop.f32.mrf.mxu0
  %v1271 = vadd.f32 0.0, %v1270
  %1272 = vmatmul.f32.gmra.mxu0 %v650
  %v1273 = vpop.f32.mrf.mxu0
  %v1274 = vadd.f32 0.0, %v1273
  %1275 = vmatmul.f32.gmra.mxu0 %v653
  %v1276 = vpop.f32.mrf.mxu0
  %v1277 = vadd.f32 0.0, %v1276
  %1278 = vmatmul.f32.gmra.mxu0 %v656
  %v1279 = vpop.f32.mrf.mxu0
  %v1280 = vadd.f32 0.0, %v1279
  %1281 = vdwg.mxu0
  %1282 = vmatpush.msra.mxu0 0.0
  %1283 = vmatpush.msra.mxu0 0.0
  %1284 = vmatpush.msra.mxu0 0.0
  %1285 = vmatpush.msra.mxu0 0.0
  %1286 = vmatpush.msra.mxu0 0.0
  %1287 = vmatpush.msra.mxu0 0.0
  %1288 = vmatpush.msra.mxu0 0.0
  %1289 = vmatpush.msra.mxu0 0.0
  %1290 = vmatpush.msra.mxu0 0.0
  %1291 = vmatpush.msra.mxu0 0.0
  %1292 = vmatpush.msra.mxu0 0.0
  %1293 = vmatpush.msra.mxu0 0.0
  %1294 = vmatpush.msra.mxu0 %v1218
  %1295 = vmatpush.msra.mxu0 %v1210
  %1296 = vmatpush.msra.mxu0 %v1202
  %1297 = vmatpush.msra.mxu0 %v1194
  %1298 = vmatmul.f32.gmra.mxu0 %v647
  %v1299 = vpop.f32.mrf.mxu0
  %v1300 = vadd.f32 0.0, %v1299
  %1301 = vmatmul.f32.gmra.mxu0 %v650
  %v1302 = vpop.f32.mrf.mxu0
  %v1303 = vadd.f32 0.0, %v1302
  %1304 = vmatmul.f32.gmra.mxu0 %v653
  %v1305 = vpop.f32.mrf.mxu0
  %v1306 = vadd.f32 0.0, %v1305
  %1307 = vmatmul.f32.gmra.mxu0 %v656
  %v1308 = vpop.f32.mrf.mxu0
  %v1309 = vadd.f32 0.0, %v1308
  %1310 = vdwg.mxu0
  %1311 = vmatpush.msra.mxu0 0.0
  %1312 = vmatpush.msra.mxu0 0.0
  %1313 = vmatpush.msra.mxu0 0.0
  %1314 = vmatpush.msra.mxu0 0.0
  %1315 = vmatpush.msra.mxu0 0.0
  %1316 = vmatpush.msra.mxu0 0.0
  %1317 = vmatpush.msra.mxu0 0.0
  %1318 = vmatpush.msra.mxu0 0.0
  %1319 = vmatpush.msra.mxu0 0.0
  %1320 = vmatpush.msra.mxu0 0.0
  %1321 = vmatpush.msra.mxu0 0.0
  %1322 = vmatpush.msra.mxu0 0.0
  %1323 = vmatpush.msra.mxu0 %v1219
  %1324 = vmatpush.msra.mxu0 %v1211
  %1325 = vmatpush.msra.mxu0 %v1203
  %1326 = vmatpush.msra.mxu0 %v1195
  %1327 = vmatmul.f32.gmra.mxu0 %v647
  %v1328 = vpop.f32.mrf.mxu0
  %v1329 = vadd.f32 0.0, %v1328
  %1330 = vmatmul.f32.gmra.mxu0 %v650
  %v1331 = vpop.f32.mrf.mxu0
  %v1332 = vadd.f32 0.0, %v1331
  %1333 = vmatmul.f32.gmra.mxu0 %v653
  %v1334 = vpop.f32.mrf.mxu0
  %v1335 = vadd.f32 0.0, %v1334
  %1336 = vmatmul.f32.gmra.mxu0 %v656
  %v1337 = vpop.f32.mrf.mxu0
  %v1338 = vadd.f32 0.0, %v1337
  %1339 = vdwg.mxu0
  %1340 = vmatpush.msra.mxu0 0.0
  %1341 = vmatpush.msra.mxu0 0.0
  %1342 = vmatpush.msra.mxu0 0.0
  %1343 = vmatpush.msra.mxu0 0.0
  %1344 = vmatpush.msra.mxu0 0.0
  %1345 = vmatpush.msra.mxu0 0.0
  %1346 = vmatpush.msra.mxu0 0.0
  %1347 = vmatpush.msra.mxu0 0.0
  %1348 = vmatpush.msra.mxu0 0.0
  %1349 = vmatpush.msra.mxu0 0.0
  %1350 = vmatpush.msra.mxu0 0.0
  %1351 = vmatpush.msra.mxu0 0.0
  %1352 = vmatpush.msra.mxu0 %v1220
  %1353 = vmatpush.msra.mxu0 %v1212
  %1354 = vmatpush.msra.mxu0 %v1204
  %1355 = vmatpush.msra.mxu0 %v1196
  %1356 = vmatmul.f32.gmra.mxu0 %v647
  %v1357 = vpop.f32.mrf.mxu0
  %v1358 = vadd.f32 0.0, %v1357
  %1359 = vmatmul.f32.gmra.mxu0 %v650
  %v1360 = vpop.f32.mrf.mxu0
  %v1361 = vadd.f32 0.0, %v1360
  %1362 = vmatmul.f32.gmra.mxu0 %v653
  %v1363 = vpop.f32.mrf.mxu0
  %v1364 = vadd.f32 0.0, %v1363
  %1365 = vmatmul.f32.gmra.mxu0 %v656
  %v1366 = vpop.f32.mrf.mxu0
  %v1367 = vadd.f32 0.0, %v1366
  %1368 = vdwg.mxu0
  %1369 = vmatpush.msra.mxu0 0.0
  %1370 = vmatpush.msra.mxu0 0.0
  %1371 = vmatpush.msra.mxu0 0.0
  %1372 = vmatpush.msra.mxu0 0.0
  %1373 = vmatpush.msra.mxu0 0.0
  %1374 = vmatpush.msra.mxu0 0.0
  %1375 = vmatpush.msra.mxu0 0.0
  %1376 = vmatpush.msra.mxu0 0.0
  %1377 = vmatpush.msra.mxu0 0.0
  %1378 = vmatpush.msra.mxu0 0.0
  %1379 = vmatpush.msra.mxu0 0.0
  %1380 = vmatpush.msra.mxu0 0.0
  %1381 = vmatpush.msra.mxu0 %v1221
  %1382 = vmatpush.msra.mxu0 %v1213
  %1383 = vmatpush.msra.mxu0 %v1205
  %1384 = vmatpush.msra.mxu0 %v1197
  %1385 = vmatmul.f32.gmra.mxu0 %v647
  %v1386 = vpop.f32.mrf.mxu0
  %v1387 = vadd.f32 0.0, %v1386
  %1388 = vmatmul.f32.gmra.mxu0 %v650
  %v1389 = vpop.f32.mrf.mxu0
  %v1390 = vadd.f32 0.0, %v1389
  %1391 = vmatmul.f32.gmra.mxu0 %v653
  %v1392 = vpop.f32.mrf.mxu0
  %v1393 = vadd.f32 0.0, %v1392
  %1394 = vmatmul.f32.gmra.mxu0 %v656
  %v1395 = vpop.f32.mrf.mxu0
  %v1396 = vadd.f32 0.0, %v1395
  %1397 = vdwg.mxu0
  %1398 = vmatpush.msra.mxu0 0.0
  %1399 = vmatpush.msra.mxu0 0.0
  %1400 = vmatpush.msra.mxu0 0.0
  %1401 = vmatpush.msra.mxu0 0.0
  %1402 = vmatpush.msra.mxu0 0.0
  %1403 = vmatpush.msra.mxu0 0.0
  %1404 = vmatpush.msra.mxu0 0.0
  %1405 = vmatpush.msra.mxu0 0.0
  %1406 = vmatpush.msra.mxu0 0.0
  %1407 = vmatpush.msra.mxu0 0.0
  %1408 = vmatpush.msra.mxu0 0.0
  %1409 = vmatpush.msra.mxu0 0.0
  %1410 = vmatpush.msra.mxu0 %v1222
  %1411 = vmatpush.msra.mxu0 %v1214
  %1412 = vmatpush.msra.mxu0 %v1206
  %1413 = vmatpush.msra.mxu0 %v1198
  %1414 = vmatmul.f32.gmra.mxu0 %v647
  %v1415 = vpop.f32.mrf.mxu0
  %v1416 = vadd.f32 0.0, %v1415
  %1417 = vmatmul.f32.gmra.mxu0 %v650
  %v1418 = vpop.f32.mrf.mxu0
  %v1419 = vadd.f32 0.0, %v1418
  %1420 = vmatmul.f32.gmra.mxu0 %v653
  %v1421 = vpop.f32.mrf.mxu0
  %v1422 = vadd.f32 0.0, %v1421
  %1423 = vmatmul.f32.gmra.mxu0 %v656
  %v1424 = vpop.f32.mrf.mxu0
  %v1425 = vadd.f32 0.0, %v1424
  %1426 = vdwg.mxu0
  %1427 = vmatpush.msra.mxu0 0.0
  %1428 = vmatpush.msra.mxu0 0.0
  %1429 = vmatpush.msra.mxu0 0.0
  %1430 = vmatpush.msra.mxu0 0.0
  %1431 = vmatpush.msra.mxu0 0.0
  %1432 = vmatpush.msra.mxu0 0.0
  %1433 = vmatpush.msra.mxu0 0.0
  %1434 = vmatpush.msra.mxu0 0.0
  %1435 = vmatpush.msra.mxu0 0.0
  %1436 = vmatpush.msra.mxu0 0.0
  %1437 = vmatpush.msra.mxu0 0.0
  %1438 = vmatpush.msra.mxu0 0.0
  %1439 = vmatpush.msra.mxu0 %v1223
  %1440 = vmatpush.msra.mxu0 %v1215
  %1441 = vmatpush.msra.mxu0 %v1207
  %1442 = vmatpush.msra.mxu0 %v1199
  %1443 = vmatmul.f32.gmra.mxu0 %v647
  %v1444 = vpop.f32.mrf.mxu0
  %v1445 = vadd.f32 0.0, %v1444
  %1446 = vmatmul.f32.gmra.mxu0 %v650
  %v1447 = vpop.f32.mrf.mxu0
  %v1448 = vadd.f32 0.0, %v1447
  %1449 = vmatmul.f32.gmra.mxu0 %v653
  %v1450 = vpop.f32.mrf.mxu0
  %v1451 = vadd.f32 0.0, %v1450
  %1452 = vmatmul.f32.gmra.mxu0 %v656
  %v1453 = vpop.f32.mrf.mxu0
  %v1454 = vadd.f32 0.0, %v1453
  %1455 = vdwg.mxu0
  %v1456 = vmul.f32 %v1242, %v1059
  %v1457 = vmul.f32 %v1271, %v1059
  %v1458 = vmul.f32 %v1300, %v1059
  %v1459 = vmul.f32 %v1329, %v1059
  %v1460 = vmul.f32 %v1358, %v1059
  %v1461 = vmul.f32 %v1387, %v1059
  %v1462 = vmul.f32 %v1416, %v1059
  %v1463 = vmul.f32 %v1445, %v1059
  %v1464 = vmul.f32 %v1245, %v1064
  %v1465 = vmul.f32 %v1274, %v1064
  %v1466 = vmul.f32 %v1303, %v1064
  %v1467 = vmul.f32 %v1332, %v1064
  %v1468 = vmul.f32 %v1361, %v1064
  %v1469 = vmul.f32 %v1390, %v1064
  %v1470 = vmul.f32 %v1419, %v1064
  %v1471 = vmul.f32 %v1448, %v1064
  %v1472 = vmul.f32 %v1248, %v1069
  %v1473 = vmul.f32 %v1277, %v1069
  %v1474 = vmul.f32 %v1306, %v1069
  %v1475 = vmul.f32 %v1335, %v1069
  %v1476 = vmul.f32 %v1364, %v1069
  %v1477 = vmul.f32 %v1393, %v1069
  %v1478 = vmul.f32 %v1422, %v1069
  %v1479 = vmul.f32 %v1451, %v1069
  %v1480 = vmul.f32 %v1251, %v1074
  %v1481 = vmul.f32 %v1280, %v1074
  %v1482 = vmul.f32 %v1309, %v1074
  %v1483 = vmul.f32 %v1338, %v1074
  %v1484 = vmul.f32 %v1367, %v1074
  %v1485 = vmul.f32 %v1396, %v1074
  %v1486 = vmul.f32 %v1425, %v1074
  %v1487 = vmul.f32 %v1454, %v1074
  %v1488 = vadd.f32 %v1456, %v1111
  %v1489 = vadd.f32 %v1457, %v1111
  %v1490 = vadd.f32 %v1458, %v1111
  %v1491 = vadd.f32 %v1459, %v1111
  %v1492 = vadd.f32 %v1460, %v1111
  %v1493 = vadd.f32 %v1461, %v1111
  %v1494 = vadd.f32 %v1462, %v1111
  %v1495 = vadd.f32 %v1463, %v1111
  %v1496 = vadd.f32 %v1464, %v1116
  %v1497 = vadd.f32 %v1465, %v1116
  %v1498 = vadd.f32 %v1466, %v1116
  %v1499 = vadd.f32 %v1467, %v1116
  %v1500 = vadd.f32 %v1468, %v1116
  %v1501 = vadd.f32 %v1469, %v1116
  %v1502 = vadd.f32 %v1470, %v1116
  %v1503 = vadd.f32 %v1471, %v1116
  %v1504 = vadd.f32 %v1472, %v1121
  %v1505 = vadd.f32 %v1473, %v1121
  %v1506 = vadd.f32 %v1474, %v1121
  %v1507 = vadd.f32 %v1475, %v1121
  %v1508 = vadd.f32 %v1476, %v1121
  %v1509 = vadd.f32 %v1477, %v1121
  %v1510 = vadd.f32 %v1478, %v1121
  %v1511 = vadd.f32 %v1479, %v1121
  %v1512 = vadd.f32 %v1480, %v1126
  %v1513 = vadd.f32 %v1481, %v1126
  %v1514 = vadd.f32 %v1482, %v1126
  %v1515 = vadd.f32 %v1483, %v1126
  %v1516 = vadd.f32 %v1484, %v1126
  %v1517 = vadd.f32 %v1485, %v1126
  %v1518 = vadd.f32 %v1486, %v1126
  %v1519 = vadd.f32 %v1487, %v1126
  %s1520 = scalar_lea.vmem %s6, 128
  %1521 = vst [vmem:[%s1520] sm:$0xff] %v1488
  %1522 = vst [vmem:[%s1520 + $0x8] sm:$0xff] %v1489
  %1523 = vst [vmem:[%s1520 + $0x10] sm:$0xff] %v1490
  %1524 = vst [vmem:[%s1520 + $0x18] sm:$0xff] %v1491
  %1525 = vst [vmem:[%s1520 + $0x20] sm:$0xff] %v1492
  %1526 = vst [vmem:[%s1520 + $0x28] sm:$0xff] %v1493
  %1527 = vst [vmem:[%s1520 + $0x30] sm:$0xff] %v1494
  %1528 = vst [vmem:[%s1520 + $0x38] sm:$0xff] %v1495
  %1529 = vst [vmem:[%s1520 + $0x40] sm:$0xff] %v1496
  %1530 = vst [vmem:[%s1520 + $0x48] sm:$0xff] %v1497
  %1531 = vst [vmem:[%s1520 + $0x50] sm:$0xff] %v1498
  %1532 = vst [vmem:[%s1520 + $0x58] sm:$0xff] %v1499
  %1533 = vst [vmem:[%s1520 + $0x60] sm:$0xff] %v1500
  %1534 = vst [vmem:[%s1520 + $0x68] sm:$0xff] %v1501
  %1535 = vst [vmem:[%s1520 + $0x70] sm:$0xff] %v1502
  %1536 = vst [vmem:[%s1520 + $0x78] sm:$0xff] %v1503
  %s1537 = scalar_lea.vmem %s7, 128
  %1538 = vst [vmem:[%s1537] sm:$0xff] %v1504
  %1539 = vst [vmem:[%s1537 + $0x8] sm:$0xff] %v1505
  %1540 = vst [vmem:[%s1537 + $0x10] sm:$0xff] %v1506
  %1541 = vst [vmem:[%s1537 + $0x18] sm:$0xff] %v1507
  %1542 = vst [vmem:[%s1537 + $0x20] sm:$0xff] %v1508
  %1543 = vst [vmem:[%s1537 + $0x28] sm:$0xff] %v1509
  %1544 = vst [vmem:[%s1537 + $0x30] sm:$0xff] %v1510
  %1545 = vst [vmem:[%s1537 + $0x38] sm:$0xff] %v1511
  %1546 = vst [vmem:[%s1537 + $0x40] sm:$0xff] %v1512
  %1547 = vst [vmem:[%s1537 + $0x48] sm:$0xff] %v1513
  %1548 = vst [vmem:[%s1537 + $0x50] sm:$0xff] %v1514
  %1549 = vst [vmem:[%s1537 + $0x58] sm:$0xff] %v1515
  %1550 = vst [vmem:[%s1537 + $0x60] sm:$0xff] %v1516
  %1551 = vst [vmem:[%s1537 + $0x68] sm:$0xff] %v1517
  %1552 = vst [vmem:[%s1537 + $0x70] sm:$0xff] %v1518
  %1553 = vst [vmem:[%s1537 + $0x78] sm:$0xff] %v1519
  %s1554 = scalar_lea.vmem %s4, 64
  %v1555 = vld [vmem:[%s1554] sm:$0xff]
  %v1556 = vld [vmem:[%s1554 + $0x8] sm:$0xff]
  %v1557 = vld [vmem:[%s1554 + $0x10] sm:$0xff]
  %v1558 = vld [vmem:[%s1554 + $0x18] sm:$0xff]
  %s1559 = scalar_lea.vmem %s5, 64
  %v1560 = vld [vmem:[%s1559] sm:$0xff]
  %v1561 = vld [vmem:[%s1559 + $0x8] sm:$0xff]
  %v1562 = vld [vmem:[%s1559 + $0x10] sm:$0xff]
  %v1563 = vld [vmem:[%s1559 + $0x18] sm:$0xff]
  %v1564 = vld [vmem:[%s1] sm:$0xff]
  %v1565 = vld [vmem:[%s1 + $0x8] sm:$0xff]
  %v1566 = vld [vmem:[%s1 + $0x10] sm:$0xff]
  %v1567 = vld [vmem:[%s1 + $0x18] sm:$0xff]
  %v1568 = vld [vmem:[%s1 + $0x20] sm:$0xff]
  %v1569 = vld [vmem:[%s1 + $0x28] sm:$0xff]
  %v1570 = vld [vmem:[%s1 + $0x30] sm:$0xff]
  %v1571 = vld [vmem:[%s1 + $0x38] sm:$0xff]
  %v1572 = vadd.f32 %v1564, %v1565
  %1573 = vadd.xlane.f32.xlu0 %v1572
  %v1574 = vpop.xlane.xlu0 %1573
  %v1575 = vadd.f32 %v1566, %v1567
  %1576 = vadd.xlane.f32.xlu0 %v1575
  %v1577 = vpop.xlane.xlu0 %1576
  %v1578 = vadd.f32 %v1568, %v1569
  %1579 = vadd.xlane.f32.xlu0 %v1578
  %v1580 = vpop.xlane.xlu0 %1579
  %v1581 = vadd.f32 %v1570, %v1571
  %1582 = vadd.xlane.f32.xlu0 %v1581
  %v1583 = vpop.xlane.xlu0 %1582
  %v1584 = vadd.f32 %v1574, 0.0
  %v1585 = vadd.f32 %v1577, 0.0
  %v1586 = vadd.f32 %v1580, 0.0
  %v1587 = vadd.f32 %v1583, 0.0
  %s1588 = scalar_lea.vmem %s1, 64
  %v1589 = vld [vmem:[%s1588] sm:$0xff]
  %v1590 = vld [vmem:[%s1588 + $0x8] sm:$0xff]
  %v1591 = vld [vmem:[%s1588 + $0x10] sm:$0xff]
  %v1592 = vld [vmem:[%s1588 + $0x18] sm:$0xff]
  %v1593 = vld [vmem:[%s1588 + $0x20] sm:$0xff]
  %v1594 = vld [vmem:[%s1588 + $0x28] sm:$0xff]
  %v1595 = vld [vmem:[%s1588 + $0x30] sm:$0xff]
  %v1596 = vld [vmem:[%s1588 + $0x38] sm:$0xff]
  %1597 = vmatpush.xpose.msra.mxu0 0.0
  %1598 = vmatpush.xpose.msra.mxu0 0.0
  %1599 = vmatpush.xpose.msra.mxu0 0.0
  %1600 = vmatpush.xpose.msra.mxu0 0.0
  %1601 = vmatpush.xpose.msra.mxu0 0.0
  %1602 = vmatpush.xpose.msra.mxu0 0.0
  %1603 = vmatpush.xpose.msra.mxu0 0.0
  %1604 = vmatpush.xpose.msra.mxu0 0.0
  %1605 = vmatpush.xpose.msra.mxu0 0.0
  %1606 = vmatpush.xpose.msra.mxu0 0.0
  %1607 = vmatpush.xpose.msra.mxu0 0.0
  %1608 = vmatpush.xpose.msra.mxu0 0.0
  %1609 = vmatpush.xpose.msra.mxu0 %v1595
  %1610 = vmatpush.xpose.msra.mxu0 %v1593
  %1611 = vmatpush.xpose.msra.mxu0 %v1591
  %1612 = vmatpush.xpose.msra.mxu0 %v1589
  %1613 = vmatmul.f32.gmra.mxu0 %v1589
  %v1614 = vpop.f32.mrf.mxu0
  %v1615 = vadd.f32 0.0, %v1614
  %1616 = vmatmul.f32.gmra.mxu0 %v1591
  %v1617 = vpop.f32.mrf.mxu0
  %v1618 = vadd.f32 0.0, %v1617
  %1619 = vmatmul.f32.gmra.mxu0 %v1593
  %v1620 = vpop.f32.mrf.mxu0
  %v1621 = vadd.f32 0.0, %v1620
  %1622 = vmatmul.f32.gmra.mxu0 %v1595
  %v1623 = vpop.f32.mrf.mxu0
  %v1624 = vadd.f32 0.0, %v1623
  %1625 = vdwg.mxu0
  %1626 = vmatpush.xpose.msra.mxu0 0.0
  %1627 = vmatpush.xpose.msra.mxu0 0.0
  %1628 = vmatpush.xpose.msra.mxu0 0.0
  %1629 = vmatpush.xpose.msra.mxu0 0.0
  %1630 = vmatpush.xpose.msra.mxu0 0.0
  %1631 = vmatpush.xpose.msra.mxu0 0.0
  %1632 = vmatpush.xpose.msra.mxu0 0.0
  %1633 = vmatpush.xpose.msra.mxu0 0.0
  %1634 = vmatpush.xpose.msra.mxu0 0.0
  %1635 = vmatpush.xpose.msra.mxu0 0.0
  %1636 = vmatpush.xpose.msra.mxu0 0.0
  %1637 = vmatpush.xpose.msra.mxu0 0.0
  %1638 = vmatpush.xpose.msra.mxu0 %v1596
  %1639 = vmatpush.xpose.msra.mxu0 %v1594
  %1640 = vmatpush.xpose.msra.mxu0 %v1592
  %1641 = vmatpush.xpose.msra.mxu0 %v1590
  %1642 = vmatmul.f32.gmra.mxu0 %v1590
  %v1643 = vpop.f32.mrf.mxu0
  %v1644 = vadd.f32 %v1615, %v1643
  %1645 = vmatmul.f32.gmra.mxu0 %v1592
  %v1646 = vpop.f32.mrf.mxu0
  %v1647 = vadd.f32 %v1618, %v1646
  %1648 = vmatmul.f32.gmra.mxu0 %v1594
  %v1649 = vpop.f32.mrf.mxu0
  %v1650 = vadd.f32 %v1621, %v1649
  %1651 = vmatmul.f32.gmra.mxu0 %v1596
  %v1652 = vpop.f32.mrf.mxu0
  %v1653 = vadd.f32 %v1624, %v1652
  %1654 = vdwg.mxu0
  %1655 = vmatpush.xpose.msra.mxu0 0.0
  %1656 = vmatpush.xpose.msra.mxu0 0.0
  %1657 = vmatpush.xpose.msra.mxu0 0.0
  %1658 = vmatpush.xpose.msra.mxu0 0.0
  %1659 = vmatpush.xpose.msra.mxu0 0.0
  %1660 = vmatpush.xpose.msra.mxu0 0.0
  %1661 = vmatpush.xpose.msra.mxu0 0.0
  %1662 = vmatpush.xpose.msra.mxu0 0.0
  %1663 = vmatpush.xpose.msra.mxu0 0.0
  %1664 = vmatpush.xpose.msra.mxu0 0.0
  %1665 = vmatpush.xpose.msra.mxu0 0.0
  %1666 = vmatpush.xpose.msra.mxu0 0.0
  %1667 = vmatpush.xpose.msra.mxu0 %v1570
  %1668 = vmatpush.xpose.msra.mxu0 %v1568
  %1669 = vmatpush.xpose.msra.mxu0 %v1566
  %1670 = vmatpush.xpose.msra.mxu0 %v1564
  %1671 = vmatmul.f32.gmra.mxu0 %v1564
  %v1672 = vpop.f32.mrf.mxu0
  %v1673 = vadd.f32 %v1644, %v1672
  %1674 = vmatmul.f32.gmra.mxu0 %v1566
  %v1675 = vpop.f32.mrf.mxu0
  %v1676 = vadd.f32 %v1647, %v1675
  %1677 = vmatmul.f32.gmra.mxu0 %v1568
  %v1678 = vpop.f32.mrf.mxu0
  %v1679 = vadd.f32 %v1650, %v1678
  %1680 = vmatmul.f32.gmra.mxu0 %v1570
  %v1681 = vpop.f32.mrf.mxu0
  %v1682 = vadd.f32 %v1653, %v1681
  %1683 = vdwg.mxu0
  %1684 = vmatpush.xpose.msra.mxu0 0.0
  %1685 = vmatpush.xpose.msra.mxu0 0.0
  %1686 = vmatpush.xpose.msra.mxu0 0.0
  %1687 = vmatpush.xpose.msra.mxu0 0.0
  %1688 = vmatpush.xpose.msra.mxu0 0.0
  %1689 = vmatpush.xpose.msra.mxu0 0.0
  %1690 = vmatpush.xpose.msra.mxu0 0.0
  %1691 = vmatpush.xpose.msra.mxu0 0.0
  %1692 = vmatpush.xpose.msra.mxu0 0.0
  %1693 = vmatpush.xpose.msra.mxu0 0.0
  %1694 = vmatpush.xpose.msra.mxu0 0.0
  %1695 = vmatpush.xpose.msra.mxu0 0.0
  %1696 = vmatpush.xpose.msra.mxu0 %v1571
  %1697 = vmatpush.xpose.msra.mxu0 %v1569
  %1698 = vmatpush.xpose.msra.mxu0 %v1567
  %1699 = vmatpush.xpose.msra.mxu0 %v1565
  %1700 = vmatmul.f32.gmra.mxu0 %v1565
  %v1701 = vpop.f32.mrf.mxu0
  %v1702 = vadd.f32 %v1673, %v1701
  %1703 = vmatmul.f32.gmra.mxu0 %v1567
  %v1704 = vpop.f32.mrf.mxu0
  %v1705 = vadd.f32 %v1676, %v1704
  %1706 = vmatmul.f32.gmra.mxu0 %v1569
  %v1707 = vpop.f32.mrf.mxu0
  %v1708 = vadd.f32 %v1679, %v1707
  %1709 = vmatmul.f32.gmra.mxu0 %v1571
  %v1710 = vpop.f32.mrf.mxu0
  %v1711 = vadd.f32 %v1682, %v1710
  %1712 = vdwg.mxu0
  %v1713 = vadd.f32 %v1589, %v1590
  %1714 = vadd.xlane.f32.xlu0 %v1713
  %v1715 = vpop.xlane.xlu0 %1714
  %v1716 = vadd.f32 %v1591, %v1592
  %1717 = vadd.xlane.f32.xlu0 %v1716
  %v1718 = vpop.xlane.xlu0 %1717
  %v1719 = vadd.f32 %v1593, %v1594
  %1720 = vadd.xlane.f32.xlu0 %v1719
  %v1721 = vpop.xlane.xlu0 %1720
  %v1722 = vadd.f32 %v1595, %v1596
  %1723 = vadd.xlane.f32.xlu0 %v1722
  %v1724 = vpop.xlane.xlu0 %1723
  %v1725 = vadd.f32 %v1584, %v1715
  %v1726 = vadd.f32 %v1585, %v1718
  %v1727 = vadd.f32 %v1586, %v1721
  %v1728 = vadd.f32 %v1587, %v1724
  %v1730 = vsel %vm645, %v1555, 0
  %v1733 = vsel %vm645, %v1556, 0
  %v1736 = vsel %vm645, %v1557, 0
  %v1739 = vsel %vm645, %v1558, 0
  %1741 = vmatpush.msra.mxu0 0.0
  %1742 = vmatpush.msra.mxu0 0.0
  %1743 = vmatpush.msra.mxu0 0.0
  %1744 = vmatpush.msra.mxu0 0.0
  %1745 = vmatpush.msra.mxu0 0.0
  %1746 = vmatpush.msra.mxu0 0.0
  %1747 = vmatpush.msra.mxu0 0.0
  %1748 = vmatpush.msra.mxu0 0.0
  %1749 = vmatpush.msra.mxu0 0.0
  %1750 = vmatpush.msra.mxu0 0.0
  %1751 = vmatpush.msra.mxu0 0.0
  %1752 = vmatpush.msra.mxu0 0.0
  %1753 = vmatpush.msra.mxu0 %v1728
  %1754 = vmatpush.msra.mxu0 %v1727
  %1755 = vmatpush.msra.mxu0 %v1726
  %1756 = vmatpush.msra.mxu0 %v1725
  %1757 = vmatmul.f32.gmra.mxu0 %v1730
  %v1758 = vpop.f32.mrf.mxu0
  %v1759 = vadd.f32 0.0, %v1758
  %1760 = vmatmul.f32.gmra.mxu0 %v1733
  %v1761 = vpop.f32.mrf.mxu0
  %v1762 = vadd.f32 0.0, %v1761
  %1763 = vmatmul.f32.gmra.mxu0 %v1736
  %v1764 = vpop.f32.mrf.mxu0
  %v1765 = vadd.f32 0.0, %v1764
  %1766 = vmatmul.f32.gmra.mxu0 %v1739
  %v1767 = vpop.f32.mrf.mxu0
  %v1768 = vadd.f32 0.0, %v1767
  %1769 = vdwg.mxu0
  %v1770 = vmul.f32 %v1759, 0.001953125
  %v1771 = vmul.f32 %v1762, 0.001953125
  %v1772 = vmul.f32 %v1765, 0.001953125
  %v1773 = vmul.f32 %v1768, 0.001953125
  %1774 = vmatpush.msra.mxu0 0.0
  %1775 = vmatpush.msra.mxu0 0.0
  %1776 = vmatpush.msra.mxu0 0.0
  %1777 = vmatpush.msra.mxu0 0.0
  %1778 = vmatpush.msra.mxu0 0.0
  %1779 = vmatpush.msra.mxu0 0.0
  %1780 = vmatpush.msra.mxu0 0.0
  %1781 = vmatpush.msra.mxu0 0.0
  %1782 = vmatpush.msra.mxu0 0.0
  %1783 = vmatpush.msra.mxu0 0.0
  %1784 = vmatpush.msra.mxu0 0.0
  %1785 = vmatpush.msra.mxu0 0.0
  %1786 = vmatpush.msra.mxu0 %v1711
  %1787 = vmatpush.msra.mxu0 %v1708
  %1788 = vmatpush.msra.mxu0 %v1705
  %1789 = vmatpush.msra.mxu0 %v1702
  %1790 = vmatmul.f32.gmra.mxu0 %v1730
  %v1791 = vpop.f32.mrf.mxu0
  %v1792 = vadd.f32 0.0, %v1791
  %1793 = vmatmul.f32.gmra.mxu0 %v1733
  %v1794 = vpop.f32.mrf.mxu0
  %v1795 = vadd.f32 0.0, %v1794
  %1796 = vmatmul.f32.gmra.mxu0 %v1736
  %v1797 = vpop.f32.mrf.mxu0
  %v1798 = vadd.f32 0.0, %v1797
  %1799 = vmatmul.f32.gmra.mxu0 %v1739
  %v1800 = vpop.f32.mrf.mxu0
  %v1801 = vadd.f32 0.0, %v1800
  %1802 = vdwg.mxu0
  %v1803 = vmul.f32 %v1792, %v1555
  %v1804 = vmul.f32 %v1795, %v1556
  %v1805 = vmul.f32 %v1798, %v1557
  %v1806 = vmul.f32 %v1801, %v1558
  %v1807 = vsel %vm645, %v1803, 0.0
  %1808 = vadd.xlane.f32.xlu0 %v1807
  %v1809 = vpop.xlane.xlu0 %1808
  %v1810 = vsel %vm645, %v1804, 0.0
  %1811 = vadd.xlane.f32.xlu0 %v1810
  %v1812 = vpop.xlane.xlu0 %1811
  %v1813 = vsel %vm645, %v1805, 0.0
  %1814 = vadd.xlane.f32.xlu0 %v1813
  %v1815 = vpop.xlane.xlu0 %1814
  %v1816 = vsel %vm645, %v1806, 0.0
  %1817 = vadd.xlane.f32.xlu0 %v1816
  %v1818 = vpop.xlane.xlu0 %1817
  %v1819 = vmul.f32 %v1809, 0.001953125
  %v1820 = vmul.f32 %v1812, 0.001953125
  %v1821 = vmul.f32 %v1815, 0.001953125
  %v1822 = vmul.f32 %v1818, 0.001953125
  %v1823 = vmul.f32 %v1770, %v1770
  %v1824 = vmul.f32 %v1771, %v1771
  %v1825 = vmul.f32 %v1772, %v1772
  %v1826 = vmul.f32 %v1773, %v1773
  %v1827 = vsub.f32 %v1819, %v1823
  %v1828 = vsub.f32 %v1820, %v1824
  %v1829 = vsub.f32 %v1821, %v1825
  %v1830 = vsub.f32 %v1822, %v1826
  %v1831 = vmax.f32 %v1827, 0.0
  %v1832 = vmax.f32 %v1828, 0.0
  %v1833 = vmax.f32 %v1829, 0.0
  %v1834 = vmax.f32 %v1830, 0.0
  %v1835 = vadd.f32 %v1831, 1e-05
  %v1836 = vadd.f32 %v1832, 1e-05
  %v1837 = vadd.f32 %v1833, 1e-05
  %v1838 = vadd.f32 %v1834, 1e-05
  %v1839 = vrsqrt.pop %v1835
  %v1840 = vmul.f32 %v1839, %v1835
  %v1841 = vmul.f32 %v1840, %v1839
  %v1842 = vmul.f32 0.5, %v1841
  %v1843 = vsub.f32 1.5, %v1842
  %v1844 = vmul.f32 %v1839, %v1843
  %vm1845 = vweird.f32 %v1835
  %vm1846 = vweird.f32 %v1839
  %vm1847 = vmor %vm1845, %vm1846
  %v1848 = vsel %vm1847, %v1839, %v1844
  %v1849 = vrsqrt.pop %v1836
  %v1850 = vmul.f32 %v1849, %v1836
  %v1851 = vmul.f32 %v1850, %v1849
  %v1852 = vmul.f32 0.5, %v1851
  %v1853 = vsub.f32 1.5, %v1852
  %v1854 = vmul.f32 %v1849, %v1853
  %vm1855 = vweird.f32 %v1836
  %vm1856 = vweird.f32 %v1849
  %vm1857 = vmor %vm1855, %vm1856
  %v1858 = vsel %vm1857, %v1849, %v1854
  %v1859 = vrsqrt.pop %v1837
  %v1860 = vmul.f32 %v1859, %v1837
  %v1861 = vmul.f32 %v1860, %v1859
  %v1862 = vmul.f32 0.5, %v1861
  %v1863 = vsub.f32 1.5, %v1862
  %v1864 = vmul.f32 %v1859, %v1863
  %vm1865 = vweird.f32 %v1837
  %vm1866 = vweird.f32 %v1859
  %vm1867 = vmor %vm1865, %vm1866
  %v1868 = vsel %vm1867, %v1859, %v1864
  %v1869 = vrsqrt.pop %v1838
  %v1870 = vmul.f32 %v1869, %v1838
  %v1871 = vmul.f32 %v1870, %v1869
  %v1872 = vmul.f32 0.5, %v1871
  %v1873 = vsub.f32 1.5, %v1872
  %v1874 = vmul.f32 %v1869, %v1873
  %vm1875 = vweird.f32 %v1838
  %vm1876 = vweird.f32 %v1869
  %vm1877 = vmor %vm1875, %vm1876
  %v1878 = vsel %vm1877, %v1869, %v1874
  %v1879 = vmul.f32 %v1848, %v1560
  %v1880 = vmul.f32 %v1858, %v1561
  %v1881 = vmul.f32 %v1868, %v1562
  %v1882 = vmul.f32 %v1878, %v1563
  %v1883 = vmul.f32 %v1770, %v1879
  %v1884 = vmul.f32 %v1771, %v1880
  %v1885 = vmul.f32 %v1772, %v1881
  %v1886 = vmul.f32 %v1773, %v1882
  %1891 = vrot.lane.b32.xlu0 %v1883, 1
  %v1892 = vpop.permute.xlu0 %1891
  %1893 = vrot.lane.b32.xlu0 %v1884, 1
  %v1894 = vpop.permute.xlu0 %1893
  %1895 = vrot.lane.b32.xlu0 %v1885, 1
  %v1896 = vpop.permute.xlu0 %1895
  %1897 = vrot.lane.b32.xlu0 %v1886, 1
  %v1898 = vpop.permute.xlu0 %1897
  %v1903 = vsub.f32 %v1560, %v1892
  %v1904 = vsub.f32 %v1561, %v1894
  %v1905 = vsub.f32 %v1562, %v1896
  %v1906 = vsub.f32 %v1563, %v1898
  %1907 = vmatpush.msra.mxu0 0.0
  %1908 = vmatpush.msra.mxu0 0.0
  %1909 = vmatpush.msra.mxu0 0.0
  %1910 = vmatpush.msra.mxu0 0.0
  %1911 = vmatpush.msra.mxu0 0.0
  %1912 = vmatpush.msra.mxu0 0.0
  %1913 = vmatpush.msra.mxu0 0.0
  %1914 = vmatpush.msra.mxu0 0.0
  %1915 = vmatpush.msra.mxu0 0.0
  %1916 = vmatpush.msra.mxu0 0.0
  %1917 = vmatpush.msra.mxu0 0.0
  %1918 = vmatpush.msra.mxu0 0.0
  %1919 = vmatpush.msra.mxu0 %v1570
  %1920 = vmatpush.msra.mxu0 %v1568
  %1921 = vmatpush.msra.mxu0 %v1566
  %1922 = vmatpush.msra.mxu0 %v1564
  %1923 = vmatmul.f32.gmra.mxu0 %v1730
  %v1924 = vpop.f32.mrf.mxu0
  %v1925 = vadd.f32 0.0, %v1924
  %1926 = vmatmul.f32.gmra.mxu0 %v1733
  %v1927 = vpop.f32.mrf.mxu0
  %v1928 = vadd.f32 0.0, %v1927
  %1929 = vmatmul.f32.gmra.mxu0 %v1736
  %v1930 = vpop.f32.mrf.mxu0
  %v1931 = vadd.f32 0.0, %v1930
  %1932 = vmatmul.f32.gmra.mxu0 %v1739
  %v1933 = vpop.f32.mrf.mxu0
  %v1934 = vadd.f32 0.0, %v1933
  %1935 = vdwg.mxu0
  %1936 = vmatpush.msra.mxu0 0.0
  %1937 = vmatpush.msra.mxu0 0.0
  %1938 = vmatpush.msra.mxu0 0.0
  %1939 = vmatpush.msra.mxu0 0.0
  %1940 = vmatpush.msra.mxu0 0.0
  %1941 = vmatpush.msra.mxu0 0.0
  %1942 = vmatpush.msra.mxu0 0.0
  %1943 = vmatpush.msra.mxu0 0.0
  %1944 = vmatpush.msra.mxu0 0.0
  %1945 = vmatpush.msra.mxu0 0.0
  %1946 = vmatpush.msra.mxu0 0.0
  %1947 = vmatpush.msra.mxu0 0.0
  %1948 = vmatpush.msra.mxu0 %v1571
  %1949 = vmatpush.msra.mxu0 %v1569
  %1950 = vmatpush.msra.mxu0 %v1567
  %1951 = vmatpush.msra.mxu0 %v1565
  %1952 = vmatmul.f32.gmra.mxu0 %v1730
  %v1953 = vpop.f32.mrf.mxu0
  %v1954 = vadd.f32 0.0, %v1953
  %1955 = vmatmul.f32.gmra.mxu0 %v1733
  %v1956 = vpop.f32.mrf.mxu0
  %v1957 = vadd.f32 0.0, %v1956
  %1958 = vmatmul.f32.gmra.mxu0 %v1736
  %v1959 = vpop.f32.mrf.mxu0
  %v1960 = vadd.f32 0.0, %v1959
  %1961 = vmatmul.f32.gmra.mxu0 %v1739
  %v1962 = vpop.f32.mrf.mxu0
  %v1963 = vadd.f32 0.0, %v1962
  %1964 = vdwg.mxu0
  %1966 = vset.pattern.permute.xlu0 0
  %1967 = vperm.xlu0 %1966, %v1879
  %v1968 = vpop.permute.xlu0 %1967
  %1971 = vset.pattern.permute.xlu0 0
  %1972 = vperm.xlu0 %1971, %v1880
  %v1973 = vpop.permute.xlu0 %1972
  %1976 = vset.pattern.permute.xlu0 0
  %1977 = vperm.xlu0 %1976, %v1881
  %v1978 = vpop.permute.xlu0 %1977
  %1981 = vset.pattern.permute.xlu0 0
  %1982 = vperm.xlu0 %1981, %v1882
  %v1983 = vpop.permute.xlu0 %1982
  %v1985 = vmul.f32 %v1925, %v1968
  %v1986 = vmul.f32 %v1954, %v1968
  %v1987 = vmul.f32 %v1928, %v1973
  %v1988 = vmul.f32 %v1957, %v1973
  %v1989 = vmul.f32 %v1931, %v1978
  %v1990 = vmul.f32 %v1960, %v1978
  %v1991 = vmul.f32 %v1934, %v1983
  %v1992 = vmul.f32 %v1963, %v1983
  %1994 = vset.pattern.permute.xlu0 1
  %1995 = vperm.xlu0 %1994, %v1903
  %v1996 = vpop.permute.xlu0 %1995
  %1999 = vset.pattern.permute.xlu0 1
  %2000 = vperm.xlu0 %1999, %v1904
  %v2001 = vpop.permute.xlu0 %2000
  %2004 = vset.pattern.permute.xlu0 1
  %2005 = vperm.xlu0 %2004, %v1905
  %v2006 = vpop.permute.xlu0 %2005
  %2009 = vset.pattern.permute.xlu0 1
  %2010 = vperm.xlu0 %2009, %v1906
  %v2011 = vpop.permute.xlu0 %2010
  %v2013 = vadd.f32 %v1985, %v1996
  %v2014 = vadd.f32 %v1986, %v1996
  %v2015 = vadd.f32 %v1987, %v2001
  %v2016 = vadd.f32 %v1988, %v2001
  %v2017 = vadd.f32 %v1989, %v2006
  %v2018 = vadd.f32 %v1990, %v2006
  %v2019 = vadd.f32 %v1991, %v2011
  %v2020 = vadd.f32 %v1992, %v2011
  %2021 = vst [vmem:[%s8] sm:$0xff] %v2013
  %2022 = vst [vmem:[%s8 + $0x8] sm:$0xff] %v2014
  %2023 = vst [vmem:[%s8 + $0x10] sm:$0xff] %v2015
  %2024 = vst [vmem:[%s8 + $0x18] sm:$0xff] %v2016
  %2025 = vst [vmem:[%s8 + $0x20] sm:$0xff] %v2017
  %2026 = vst [vmem:[%s8 + $0x28] sm:$0xff] %v2018
  %2027 = vst [vmem:[%s8 + $0x30] sm:$0xff] %v2019
  %2028 = vst [vmem:[%s8 + $0x38] sm:$0xff] %v2020
  %v2029 = vld [vmem:[%s1588] sm:$0xff]
  %v2030 = vld [vmem:[%s1588 + $0x8] sm:$0xff]
  %v2031 = vld [vmem:[%s1588 + $0x10] sm:$0xff]
  %v2032 = vld [vmem:[%s1588 + $0x18] sm:$0xff]
  %v2033 = vld [vmem:[%s1588 + $0x20] sm:$0xff]
  %v2034 = vld [vmem:[%s1588 + $0x28] sm:$0xff]
  %v2035 = vld [vmem:[%s1588 + $0x30] sm:$0xff]
  %v2036 = vld [vmem:[%s1588 + $0x38] sm:$0xff]
  %2037 = vmatpush.msra.mxu0 0.0
  %2038 = vmatpush.msra.mxu0 0.0
  %2039 = vmatpush.msra.mxu0 0.0
  %2040 = vmatpush.msra.mxu0 0.0
  %2041 = vmatpush.msra.mxu0 0.0
  %2042 = vmatpush.msra.mxu0 0.0
  %2043 = vmatpush.msra.mxu0 0.0
  %2044 = vmatpush.msra.mxu0 0.0
  %2045 = vmatpush.msra.mxu0 0.0
  %2046 = vmatpush.msra.mxu0 0.0
  %2047 = vmatpush.msra.mxu0 0.0
  %2048 = vmatpush.msra.mxu0 0.0
  %2049 = vmatpush.msra.mxu0 %v2035
  %2050 = vmatpush.msra.mxu0 %v2033
  %2051 = vmatpush.msra.mxu0 %v2031
  %2052 = vmatpush.msra.mxu0 %v2029
  %2053 = vmatmul.f32.gmra.mxu0 %v1730
  %v2054 = vpop.f32.mrf.mxu0
  %v2055 = vadd.f32 0.0, %v2054
  %2056 = vmatmul.f32.gmra.mxu0 %v1733
  %v2057 = vpop.f32.mrf.mxu0
  %v2058 = vadd.f32 0.0, %v2057
  %2059 = vmatmul.f32.gmra.mxu0 %v1736
  %v2060 = vpop.f32.mrf.mxu0
  %v2061 = vadd.f32 0.0, %v2060
  %2062 = vmatmul.f32.gmra.mxu0 %v1739
  %v2063 = vpop.f32.mrf.mxu0
  %v2064 = vadd.f32 0.0, %v2063
  %2065 = vdwg.mxu0
  %2066 = vmatpush.msra.mxu0 0.0
  %2067 = vmatpush.msra.mxu0 0.0
  %2068 = vmatpush.msra.mxu0 0.0
  %2069 = vmatpush.msra.mxu0 0.0
  %2070 = vmatpush.msra.mxu0 0.0
  %2071 = vmatpush.msra.mxu0 0.0
  %2072 = vmatpush.msra.mxu0 0.0
  %2073 = vmatpush.msra.mxu0 0.0
  %2074 = vmatpush.msra.mxu0 0.0
  %2075 = vmatpush.msra.mxu0 0.0
  %2076 = vmatpush.msra.mxu0 0.0
  %2077 = vmatpush.msra.mxu0 0.0
  %2078 = vmatpush.msra.mxu0 %v2036
  %2079 = vmatpush.msra.mxu0 %v2034
  %2080 = vmatpush.msra.mxu0 %v2032
  %2081 = vmatpush.msra.mxu0 %v2030
  %2082 = vmatmul.f32.gmra.mxu0 %v1730
  %v2083 = vpop.f32.mrf.mxu0
  %v2084 = vadd.f32 0.0, %v2083
  %2085 = vmatmul.f32.gmra.mxu0 %v1733
  %v2086 = vpop.f32.mrf.mxu0
  %v2087 = vadd.f32 0.0, %v2086
  %2088 = vmatmul.f32.gmra.mxu0 %v1736
  %v2089 = vpop.f32.mrf.mxu0
  %v2090 = vadd.f32 0.0, %v2089
  %2091 = vmatmul.f32.gmra.mxu0 %v1739
  %v2092 = vpop.f32.mrf.mxu0
  %v2093 = vadd.f32 0.0, %v2092
  %2094 = vdwg.mxu0
  %v2095 = vmul.f32 %v2055, %v1968
  %v2096 = vmul.f32 %v2084, %v1968
  %v2097 = vmul.f32 %v2058, %v1973
  %v2098 = vmul.f32 %v2087, %v1973
  %v2099 = vmul.f32 %v2061, %v1978
  %v2100 = vmul.f32 %v2090, %v1978
  %v2101 = vmul.f32 %v2064, %v1983
  %v2102 = vmul.f32 %v2093, %v1983
  %v2103 = vadd.f32 %v2095, %v1996
  %v2104 = vadd.f32 %v2096, %v1996
  %v2105 = vadd.f32 %v2097, %v2001
  %v2106 = vadd.f32 %v2098, %v2001
  %v2107 = vadd.f32 %v2099, %v2006
  %v2108 = vadd.f32 %v2100, %v2006
  %v2109 = vadd.f32 %v2101, %v2011
  %v2110 = vadd.f32 %v2102, %v2011
  %s2111 = scalar_lea.vmem %s8, 64
  %2112 = vst [vmem:[%s2111] sm:$0xff] %v2103
  %2113 = vst [vmem:[%s2111 + $0x8] sm:$0xff] %v2104
  %2114 = vst [vmem:[%s2111 + $0x10] sm:$0xff] %v2105
  %2115 = vst [vmem:[%s2111 + $0x18] sm:$0xff] %v2106
  %2116 = vst [vmem:[%s2111 + $0x20] sm:$0xff] %v2107
  %2117 = vst [vmem:[%s2111 + $0x28] sm:$0xff] %v2108
  %2118 = vst [vmem:[%s2111 + $0x30] sm:$0xff] %v2109
  %2119 = vst [vmem:[%s2111 + $0x38] sm:$0xff] %v2110
  %s2120 = scalar_lea.vmem %s4, 128
  %v2121 = vld [vmem:[%s2120] sm:$0xff]
  %v2122 = vld [vmem:[%s2120 + $0x8] sm:$0xff]
  %v2123 = vld [vmem:[%s2120 + $0x10] sm:$0xff]
  %v2124 = vld [vmem:[%s2120 + $0x18] sm:$0xff]
  %v2125 = vld [vmem:[%s2120 + $0x20] sm:$0xff]
  %v2126 = vld [vmem:[%s2120 + $0x28] sm:$0xff]
  %v2127 = vld [vmem:[%s2120 + $0x30] sm:$0xff]
  %v2128 = vld [vmem:[%s2120 + $0x38] sm:$0xff]
  %s2129 = scalar_lea.vmem %s5, 128
  %v2130 = vld [vmem:[%s2129] sm:$0xff]
  %v2131 = vld [vmem:[%s2129 + $0x8] sm:$0xff]
  %v2132 = vld [vmem:[%s2129 + $0x10] sm:$0xff]
  %v2133 = vld [vmem:[%s2129 + $0x18] sm:$0xff]
  %v2134 = vld [vmem:[%s2129 + $0x20] sm:$0xff]
  %v2135 = vld [vmem:[%s2129 + $0x28] sm:$0xff]
  %v2136 = vld [vmem:[%s2129 + $0x30] sm:$0xff]
  %v2137 = vld [vmem:[%s2129 + $0x38] sm:$0xff]
  %v2138 = vld [vmem:[%s2] sm:$0xff]
  %v2139 = vld [vmem:[%s2 + $0x8] sm:$0xff]
  %v2140 = vld [vmem:[%s2 + $0x10] sm:$0xff]
  %v2141 = vld [vmem:[%s2 + $0x18] sm:$0xff]
  %v2142 = vld [vmem:[%s2 + $0x20] sm:$0xff]
  %v2143 = vld [vmem:[%s2 + $0x28] sm:$0xff]
  %v2144 = vld [vmem:[%s2 + $0x30] sm:$0xff]
  %v2145 = vld [vmem:[%s2 + $0x38] sm:$0xff]
  %vm2146 = vcmask 523264
  %v2147 = vsel %vm2146, %v2138, 0.0
  %2148 = vadd.xlane.f32.xlu0 %v2147
  %v2149 = vpop.xlane.xlu0 %2148
  %v2150 = vsel %vm2146, %v2139, 0.0
  %2151 = vadd.xlane.f32.xlu0 %v2150
  %v2152 = vpop.xlane.xlu0 %2151
  %v2153 = vsel %vm2146, %v2140, 0.0
  %2154 = vadd.xlane.f32.xlu0 %v2153
  %v2155 = vpop.xlane.xlu0 %2154
  %v2156 = vsel %vm2146, %v2141, 0.0
  %2157 = vadd.xlane.f32.xlu0 %v2156
  %v2158 = vpop.xlane.xlu0 %2157
  %v2159 = vsel %vm2146, %v2142, 0.0
  %2160 = vadd.xlane.f32.xlu0 %v2159
  %v2161 = vpop.xlane.xlu0 %2160
  %v2162 = vsel %vm2146, %v2143, 0.0
  %2163 = vadd.xlane.f32.xlu0 %v2162
  %v2164 = vpop.xlane.xlu0 %2163
  %v2165 = vsel %vm2146, %v2144, 0.0
  %2166 = vadd.xlane.f32.xlu0 %v2165
  %v2167 = vpop.xlane.xlu0 %2166
  %v2168 = vsel %vm2146, %v2145, 0.0
  %2169 = vadd.xlane.f32.xlu0 %v2168
  %v2170 = vpop.xlane.xlu0 %2169
  %v2171 = vadd.f32 %v2149, 0.0
  %v2172 = vadd.f32 %v2152, 0.0
  %v2173 = vadd.f32 %v2155, 0.0
  %v2174 = vadd.f32 %v2158, 0.0
  %v2175 = vadd.f32 %v2161, 0.0
  %v2176 = vadd.f32 %v2164, 0.0
  %v2177 = vadd.f32 %v2167, 0.0
  %v2178 = vadd.f32 %v2170, 0.0
  %s2179 = scalar_lea.vmem %s2, 64
  %v2180 = vld [vmem:[%s2179] sm:$0xff]
  %v2181 = vld [vmem:[%s2179 + $0x8] sm:$0xff]
  %v2182 = vld [vmem:[%s2179 + $0x10] sm:$0xff]
  %v2183 = vld [vmem:[%s2179 + $0x18] sm:$0xff]
  %v2184 = vld [vmem:[%s2179 + $0x20] sm:$0xff]
  %v2185 = vld [vmem:[%s2179 + $0x28] sm:$0xff]
  %v2186 = vld [vmem:[%s2179 + $0x30] sm:$0xff]
  %v2187 = vld [vmem:[%s2179 + $0x38] sm:$0xff]
  %v2189 = vsel %vm2146, %v2180, 0
  %v2192 = vsel %vm2146, %v2181, 0
  %v2195 = vsel %vm2146, %v2182, 0
  %v2198 = vsel %vm2146, %v2183, 0
  %v2201 = vsel %vm2146, %v2184, 0
  %v2204 = vsel %vm2146, %v2185, 0
  %v2207 = vsel %vm2146, %v2186, 0
  %v2210 = vsel %vm2146, %v2187, 0
  %2212 = vmatpush.xpose.msra.mxu0 0.0
  %2213 = vmatpush.xpose.msra.mxu0 0.0
  %2214 = vmatpush.xpose.msra.mxu0 0.0
  %2215 = vmatpush.xpose.msra.mxu0 0.0
  %2216 = vmatpush.xpose.msra.mxu0 0.0
  %2217 = vmatpush.xpose.msra.mxu0 0.0
  %2218 = vmatpush.xpose.msra.mxu0 0.0
  %2219 = vmatpush.xpose.msra.mxu0 0.0
  %2220 = vmatpush.xpose.msra.mxu0 %v2210
  %2221 = vmatpush.xpose.msra.mxu0 %v2207
  %2222 = vmatpush.xpose.msra.mxu0 %v2204
  %2223 = vmatpush.xpose.msra.mxu0 %v2201
  %2224 = vmatpush.xpose.msra.mxu0 %v2198
  %2225 = vmatpush.xpose.msra.mxu0 %v2195
  %2226 = vmatpush.xpose.msra.mxu0 %v2192
  %2227 = vmatpush.xpose.msra.mxu0 %v2189
  %2228 = vmatmul.f32.gmra.mxu0 %v2189
  %v2229 = vpop.f32.mrf.mxu0
  %v2230 = vadd.f32 0.0, %v2229
  %2231 = vmatmul.f32.gmra.mxu0 %v2192
  %v2232 = vpop.f32.mrf.mxu0
  %v2233 = vadd.f32 0.0, %v2232
  %2234 = vmatmul.f32.gmra.mxu0 %v2195
  %v2235 = vpop.f32.mrf.mxu0
  %v2236 = vadd.f32 0.0, %v2235
  %2237 = vmatmul.f32.gmra.mxu0 %v2198
  %v2238 = vpop.f32.mrf.mxu0
  %v2239 = vadd.f32 0.0, %v2238
  %2240 = vmatmul.f32.gmra.mxu0 %v2201
  %v2241 = vpop.f32.mrf.mxu0
  %v2242 = vadd.f32 0.0, %v2241
  %2243 = vmatmul.f32.gmra.mxu0 %v2204
  %v2244 = vpop.f32.mrf.mxu0
  %v2245 = vadd.f32 0.0, %v2244
  %2246 = vmatmul.f32.gmra.mxu0 %v2207
  %v2247 = vpop.f32.mrf.mxu0
  %v2248 = vadd.f32 0.0, %v2247
  %2249 = vmatmul.f32.gmra.mxu0 %v2210
  %v2250 = vpop.f32.mrf.mxu0
  %v2251 = vadd.f32 0.0, %v2250
  %2252 = vdwg.mxu0
  %v2254 = vsel %vm2146, %v2138, 0
  %v2257 = vsel %vm2146, %v2139, 0
  %v2260 = vsel %vm2146, %v2140, 0
  %v2263 = vsel %vm2146, %v2141, 0
  %v2266 = vsel %vm2146, %v2142, 0
  %v2269 = vsel %vm2146, %v2143, 0
  %v2272 = vsel %vm2146, %v2144, 0
  %v2275 = vsel %vm2146, %v2145, 0
  %2277 = vmatpush.xpose.msra.mxu0 0.0
  %2278 = vmatpush.xpose.msra.mxu0 0.0
  %2279 = vmatpush.xpose.msra.mxu0 0.0
  %2280 = vmatpush.xpose.msra.mxu0 0.0
  %2281 = vmatpush.xpose.msra.mxu0 0.0
  %2282 = vmatpush.xpose.msra.mxu0 0.0
  %2283 = vmatpush.xpose.msra.mxu0 0.0
  %2284 = vmatpush.xpose.msra.mxu0 0.0
  %2285 = vmatpush.xpose.msra.mxu0 %v2275
  %2286 = vmatpush.xpose.msra.mxu0 %v2272
  %2287 = vmatpush.xpose.msra.mxu0 %v2269
  %2288 = vmatpush.xpose.msra.mxu0 %v2266
  %2289 = vmatpush.xpose.msra.mxu0 %v2263
  %2290 = vmatpush.xpose.msra.mxu0 %v2260
  %2291 = vmatpush.xpose.msra.mxu0 %v2257
  %2292 = vmatpush.xpose.msra.mxu0 %v2254
  %2293 = vmatmul.f32.gmra.mxu0 %v2254
  %v2294 = vpop.f32.mrf.mxu0
  %v2295 = vadd.f32 %v2230, %v2294
  %2296 = vmatmul.f32.gmra.mxu0 %v2257
  %v2297 = vpop.f32.mrf.mxu0
  %v2298 = vadd.f32 %v2233, %v2297
  %2299 = vmatmul.f32.gmra.mxu0 %v2260
  %v2300 = vpop.f32.mrf.mxu0
  %v2301 = vadd.f32 %v2236, %v2300
  %2302 = vmatmul.f32.gmra.mxu0 %v2263
  %v2303 = vpop.f32.mrf.mxu0
  %v2304 = vadd.f32 %v2239, %v2303
  %2305 = vmatmul.f32.gmra.mxu0 %v2266
  %v2306 = vpop.f32.mrf.mxu0
  %v2307 = vadd.f32 %v2242, %v2306
  %2308 = vmatmul.f32.gmra.mxu0 %v2269
  %v2309 = vpop.f32.mrf.mxu0
  %v2310 = vadd.f32 %v2245, %v2309
  %2311 = vmatmul.f32.gmra.mxu0 %v2272
  %v2312 = vpop.f32.mrf.mxu0
  %v2313 = vadd.f32 %v2248, %v2312
  %2314 = vmatmul.f32.gmra.mxu0 %v2275
  %v2315 = vpop.f32.mrf.mxu0
  %v2316 = vadd.f32 %v2251, %v2315
  %2317 = vdwg.mxu0
  %v2318 = vsel %vm2146, %v2180, 0.0
  %2319 = vadd.xlane.f32.xlu0 %v2318
  %v2320 = vpop.xlane.xlu0 %2319
  %v2321 = vsel %vm2146, %v2181, 0.0
  %2322 = vadd.xlane.f32.xlu0 %v2321
  %v2323 = vpop.xlane.xlu0 %2322
  %v2324 = vsel %vm2146, %v2182, 0.0
  %2325 = vadd.xlane.f32.xlu0 %v2324
  %v2326 = vpop.xlane.xlu0 %2325
  %v2327 = vsel %vm2146, %v2183, 0.0
  %2328 = vadd.xlane.f32.xlu0 %v2327
  %v2329 = vpop.xlane.xlu0 %2328
  %v2330 = vsel %vm2146, %v2184, 0.0
  %2331 = vadd.xlane.f32.xlu0 %v2330
  %v2332 = vpop.xlane.xlu0 %2331
  %v2333 = vsel %vm2146, %v2185, 0.0
  %2334 = vadd.xlane.f32.xlu0 %v2333
  %v2335 = vpop.xlane.xlu0 %2334
  %v2336 = vsel %vm2146, %v2186, 0.0
  %2337 = vadd.xlane.f32.xlu0 %v2336
  %v2338 = vpop.xlane.xlu0 %2337
  %v2339 = vsel %vm2146, %v2187, 0.0
  %2340 = vadd.xlane.f32.xlu0 %v2339
  %v2341 = vpop.xlane.xlu0 %2340
  %v2342 = vadd.f32 %v2171, %v2320
  %v2343 = vadd.f32 %v2172, %v2323
  %v2344 = vadd.f32 %v2173, %v2326
  %v2345 = vadd.f32 %v2174, %v2329
  %v2346 = vadd.f32 %v2175, %v2332
  %v2347 = vadd.f32 %v2176, %v2335
  %v2348 = vadd.f32 %v2177, %v2338
  %v2349 = vadd.f32 %v2178, %v2341
  %v2351 = vsel %vm2146, %v2121, 0
  %v2354 = vsel %vm2146, %v2122, 0
  %v2357 = vsel %vm2146, %v2123, 0
  %v2360 = vsel %vm2146, %v2124, 0
  %v2363 = vsel %vm2146, %v2125, 0
  %v2366 = vsel %vm2146, %v2126, 0
  %v2369 = vsel %vm2146, %v2127, 0
  %v2372 = vsel %vm2146, %v2128, 0
  %2374 = vmatpush.msra.mxu0 0.0
  %2375 = vmatpush.msra.mxu0 0.0
  %2376 = vmatpush.msra.mxu0 0.0
  %2377 = vmatpush.msra.mxu0 0.0
  %2378 = vmatpush.msra.mxu0 0.0
  %2379 = vmatpush.msra.mxu0 0.0
  %2380 = vmatpush.msra.mxu0 0.0
  %2381 = vmatpush.msra.mxu0 0.0
  %2382 = vmatpush.msra.mxu0 %v2349
  %2383 = vmatpush.msra.mxu0 %v2348
  %2384 = vmatpush.msra.mxu0 %v2347
  %2385 = vmatpush.msra.mxu0 %v2346
  %2386 = vmatpush.msra.mxu0 %v2345
  %2387 = vmatpush.msra.mxu0 %v2344
  %2388 = vmatpush.msra.mxu0 %v2343
  %2389 = vmatpush.msra.mxu0 %v2342
  %2390 = vmatmul.f32.gmra.mxu0 %v2351
  %v2391 = vpop.f32.mrf.mxu0
  %v2392 = vadd.f32 0.0, %v2391
  %2393 = vmatmul.f32.gmra.mxu0 %v2354
  %v2394 = vpop.f32.mrf.mxu0
  %v2395 = vadd.f32 0.0, %v2394
  %2396 = vmatmul.f32.gmra.mxu0 %v2357
  %v2397 = vpop.f32.mrf.mxu0
  %v2398 = vadd.f32 0.0, %v2397
  %2399 = vmatmul.f32.gmra.mxu0 %v2360
  %v2400 = vpop.f32.mrf.mxu0
  %v2401 = vadd.f32 0.0, %v2400
  %2402 = vmatmul.f32.gmra.mxu0 %v2363
  %v2403 = vpop.f32.mrf.mxu0
  %v2404 = vadd.f32 0.0, %v2403
  %2405 = vmatmul.f32.gmra.mxu0 %v2366
  %v2406 = vpop.f32.mrf.mxu0
  %v2407 = vadd.f32 0.0, %v2406
  %2408 = vmatmul.f32.gmra.mxu0 %v2369
  %v2409 = vpop.f32.mrf.mxu0
  %v2410 = vadd.f32 0.0, %v2409
  %2411 = vmatmul.f32.gmra.mxu0 %v2372
  %v2412 = vpop.f32.mrf.mxu0
  %v2413 = vadd.f32 0.0, %v2412
  %2414 = vdwg.mxu0
  %v2415 = vmul.f32 %v2392, 0.0078125
  %v2416 = vmul.f32 %v2395, 0.0078125
  %v2417 = vmul.f32 %v2398, 0.0078125
  %v2418 = vmul.f32 %v2401, 0.0078125
  %v2419 = vmul.f32 %v2404, 0.0078125
  %v2420 = vmul.f32 %v2407, 0.0078125
  %v2421 = vmul.f32 %v2410, 0.0078125
  %v2422 = vmul.f32 %v2413, 0.0078125
  %2423 = vmatpush.msra.mxu0 0.0
  %2424 = vmatpush.msra.mxu0 0.0
  %2425 = vmatpush.msra.mxu0 0.0
  %2426 = vmatpush.msra.mxu0 0.0
  %2427 = vmatpush.msra.mxu0 0.0
  %2428 = vmatpush.msra.mxu0 0.0
  %2429 = vmatpush.msra.mxu0 0.0
  %2430 = vmatpush.msra.mxu0 0.0
  %2431 = vmatpush.msra.mxu0 %v2316
  %2432 = vmatpush.msra.mxu0 %v2313
  %2433 = vmatpush.msra.mxu0 %v2310
  %2434 = vmatpush.msra.mxu0 %v2307
  %2435 = vmatpush.msra.mxu0 %v2304
  %2436 = vmatpush.msra.mxu0 %v2301
  %2437 = vmatpush.msra.mxu0 %v2298
  %2438 = vmatpush.msra.mxu0 %v2295
  %2439 = vmatmul.f32.gmra.mxu0 %v2351
  %v2440 = vpop.f32.mrf.mxu0
  %v2441 = vadd.f32 0.0, %v2440
  %2442 = vmatmul.f32.gmra.mxu0 %v2354
  %v2443 = vpop.f32.mrf.mxu0
  %v2444 = vadd.f32 0.0, %v2443
  %2445 = vmatmul.f32.gmra.mxu0 %v2357
  %v2446 = vpop.f32.mrf.mxu0
  %v2447 = vadd.f32 0.0, %v2446
  %2448 = vmatmul.f32.gmra.mxu0 %v2360
  %v2449 = vpop.f32.mrf.mxu0
  %v2450 = vadd.f32 0.0, %v2449
  %2451 = vmatmul.f32.gmra.mxu0 %v2363
  %v2452 = vpop.f32.mrf.mxu0
  %v2453 = vadd.f32 0.0, %v2452
  %2454 = vmatmul.f32.gmra.mxu0 %v2366
  %v2455 = vpop.f32.mrf.mxu0
  %v2456 = vadd.f32 0.0, %v2455
  %2457 = vmatmul.f32.gmra.mxu0 %v2369
  %v2458 = vpop.f32.mrf.mxu0
  %v2459 = vadd.f32 0.0, %v2458
  %2460 = vmatmul.f32.gmra.mxu0 %v2372
  %v2461 = vpop.f32.mrf.mxu0
  %v2462 = vadd.f32 0.0, %v2461
  %2463 = vdwg.mxu0
  %v2464 = vmul.f32 %v2441, %v2121
  %v2465 = vmul.f32 %v2444, %v2122
  %v2466 = vmul.f32 %v2447, %v2123
  %v2467 = vmul.f32 %v2450, %v2124
  %v2468 = vmul.f32 %v2453, %v2125
  %v2469 = vmul.f32 %v2456, %v2126
  %v2470 = vmul.f32 %v2459, %v2127
  %v2471 = vmul.f32 %v2462, %v2128
  %v2472 = vsel %vm2146, %v2464, 0.0
  %2473 = vadd.xlane.f32.xlu0 %v2472
  %v2474 = vpop.xlane.xlu0 %2473
  %v2475 = vsel %vm2146, %v2465, 0.0
  %2476 = vadd.xlane.f32.xlu0 %v2475
  %v2477 = vpop.xlane.xlu0 %2476
  %v2478 = vsel %vm2146, %v2466, 0.0
  %2479 = vadd.xlane.f32.xlu0 %v2478
  %v2480 = vpop.xlane.xlu0 %2479
  %v2481 = vsel %vm2146, %v2467, 0.0
  %2482 = vadd.xlane.f32.xlu0 %v2481
  %v2483 = vpop.xlane.xlu0 %2482
  %v2484 = vsel %vm2146, %v2468, 0.0
  %2485 = vadd.xlane.f32.xlu0 %v2484
  %v2486 = vpop.xlane.xlu0 %2485
  %v2487 = vsel %vm2146, %v2469, 0.0
  %2488 = vadd.xlane.f32.xlu0 %v2487
  %v2489 = vpop.xlane.xlu0 %2488
  %v2490 = vsel %vm2146, %v2470, 0.0
  %2491 = vadd.xlane.f32.xlu0 %v2490
  %v2492 = vpop.xlane.xlu0 %2491
  %v2493 = vsel %vm2146, %v2471, 0.0
  %2494 = vadd.xlane.f32.xlu0 %v2493
  %v2495 = vpop.xlane.xlu0 %2494
  %v2496 = vmul.f32 %v2474, 0.0078125
  %v2497 = vmul.f32 %v2477, 0.0078125
  %v2498 = vmul.f32 %v2480, 0.0078125
  %v2499 = vmul.f32 %v2483, 0.0078125
  %v2500 = vmul.f32 %v2486, 0.0078125
  %v2501 = vmul.f32 %v2489, 0.0078125
  %v2502 = vmul.f32 %v2492, 0.0078125
  %v2503 = vmul.f32 %v2495, 0.0078125
  %v2504 = vmul.f32 %v2415, %v2415
  %v2505 = vmul.f32 %v2416, %v2416
  %v2506 = vmul.f32 %v2417, %v2417
  %v2507 = vmul.f32 %v2418, %v2418
  %v2508 = vmul.f32 %v2419, %v2419
  %v2509 = vmul.f32 %v2420, %v2420
  %v2510 = vmul.f32 %v2421, %v2421
  %v2511 = vmul.f32 %v2422, %v2422
  %v2512 = vsub.f32 %v2496, %v2504
  %v2513 = vsub.f32 %v2497, %v2505
  %v2514 = vsub.f32 %v2498, %v2506
  %v2515 = vsub.f32 %v2499, %v2507
  %v2516 = vsub.f32 %v2500, %v2508
  %v2517 = vsub.f32 %v2501, %v2509
  %v2518 = vsub.f32 %v2502, %v2510
  %v2519 = vsub.f32 %v2503, %v2511
  %v2520 = vmax.f32 %v2512, 0.0
  %v2521 = vmax.f32 %v2513, 0.0
  %v2522 = vmax.f32 %v2514, 0.0
  %v2523 = vmax.f32 %v2515, 0.0
  %v2524 = vmax.f32 %v2516, 0.0
  %v2525 = vmax.f32 %v2517, 0.0
  %v2526 = vmax.f32 %v2518, 0.0
  %v2527 = vmax.f32 %v2519, 0.0
  %v2528 = vadd.f32 %v2520, 1e-05
  %v2529 = vadd.f32 %v2521, 1e-05
  %v2530 = vadd.f32 %v2522, 1e-05
  %v2531 = vadd.f32 %v2523, 1e-05
  %v2532 = vadd.f32 %v2524, 1e-05
  %v2533 = vadd.f32 %v2525, 1e-05
  %v2534 = vadd.f32 %v2526, 1e-05
  %v2535 = vadd.f32 %v2527, 1e-05
  %v2536 = vrsqrt.pop %v2528
  %v2537 = vmul.f32 %v2536, %v2528
  %v2538 = vmul.f32 %v2537, %v2536
  %v2539 = vmul.f32 0.5, %v2538
  %v2540 = vsub.f32 1.5, %v2539
  %v2541 = vmul.f32 %v2536, %v2540
  %vm2542 = vweird.f32 %v2528
  %vm2543 = vweird.f32 %v2536
  %vm2544 = vmor %vm2542, %vm2543
  %v2545 = vsel %vm2544, %v2536, %v2541
  %v2546 = vrsqrt.pop %v2529
  %v2547 = vmul.f32 %v2546, %v2529
  %v2548 = vmul.f32 %v2547, %v2546
  %v2549 = vmul.f32 0.5, %v2548
  %v2550 = vsub.f32 1.5, %v2549
  %v2551 = vmul.f32 %v2546, %v2550
  %vm2552 = vweird.f32 %v2529
  %vm2553 = vweird.f32 %v2546
  %vm2554 = vmor %vm2552, %vm2553
  %v2555 = vsel %vm2554, %v2546, %v2551
  %v2556 = vrsqrt.pop %v2530
  %v2557 = vmul.f32 %v2556, %v2530
  %v2558 = vmul.f32 %v2557, %v2556
  %v2559 = vmul.f32 0.5, %v2558
  %v2560 = vsub.f32 1.5, %v2559
  %v2561 = vmul.f32 %v2556, %v2560
  %vm2562 = vweird.f32 %v2530
  %vm2563 = vweird.f32 %v2556
  %vm2564 = vmor %vm2562, %vm2563
  %v2565 = vsel %vm2564, %v2556, %v2561
  %v2566 = vrsqrt.pop %v2531
  %v2567 = vmul.f32 %v2566, %v2531
  %v2568 = vmul.f32 %v2567, %v2566
  %v2569 = vmul.f32 0.5, %v2568
  %v2570 = vsub.f32 1.5, %v2569
  %v2571 = vmul.f32 %v2566, %v2570
  %vm2572 = vweird.f32 %v2531
  %vm2573 = vweird.f32 %v2566
  %vm2574 = vmor %vm2572, %vm2573
  %v2575 = vsel %vm2574, %v2566, %v2571
  %v2576 = vrsqrt.pop %v2532
  %v2577 = vmul.f32 %v2576, %v2532
  %v2578 = vmul.f32 %v2577, %v2576
  %v2579 = vmul.f32 0.5, %v2578
  %v2580 = vsub.f32 1.5, %v2579
  %v2581 = vmul.f32 %v2576, %v2580
  %vm2582 = vweird.f32 %v2532
  %vm2583 = vweird.f32 %v2576
  %vm2584 = vmor %vm2582, %vm2583
  %v2585 = vsel %vm2584, %v2576, %v2581
  %v2586 = vrsqrt.pop %v2533
  %v2587 = vmul.f32 %v2586, %v2533
  %v2588 = vmul.f32 %v2587, %v2586
  %v2589 = vmul.f32 0.5, %v2588
  %v2590 = vsub.f32 1.5, %v2589
  %v2591 = vmul.f32 %v2586, %v2590
  %vm2592 = vweird.f32 %v2533
  %vm2593 = vweird.f32 %v2586
  %vm2594 = vmor %vm2592, %vm2593
  %v2595 = vsel %vm2594, %v2586, %v2591
  %v2596 = vrsqrt.pop %v2534
  %v2597 = vmul.f32 %v2596, %v2534
  %v2598 = vmul.f32 %v2597, %v2596
  %v2599 = vmul.f32 0.5, %v2598
  %v2600 = vsub.f32 1.5, %v2599
  %v2601 = vmul.f32 %v2596, %v2600
  %vm2602 = vweird.f32 %v2534
  %vm2603 = vweird.f32 %v2596
  %vm2604 = vmor %vm2602, %vm2603
  %v2605 = vsel %vm2604, %v2596, %v2601
  %v2606 = vrsqrt.pop %v2535
  %v2607 = vmul.f32 %v2606, %v2535
  %v2608 = vmul.f32 %v2607, %v2606
  %v2609 = vmul.f32 0.5, %v2608
  %v2610 = vsub.f32 1.5, %v2609
  %v2611 = vmul.f32 %v2606, %v2610
  %vm2612 = vweird.f32 %v2535
  %vm2613 = vweird.f32 %v2606
  %vm2614 = vmor %vm2612, %vm2613
  %v2615 = vsel %vm2614, %v2606, %v2611
  %v2616 = vmul.f32 %v2545, %v2130
  %v2617 = vmul.f32 %v2555, %v2131
  %v2618 = vmul.f32 %v2565, %v2132
  %v2619 = vmul.f32 %v2575, %v2133
  %v2620 = vmul.f32 %v2585, %v2134
  %v2621 = vmul.f32 %v2595, %v2135
  %v2622 = vmul.f32 %v2605, %v2136
  %v2623 = vmul.f32 %v2615, %v2137
  %v2624 = vmul.f32 %v2415, %v2616
  %v2625 = vmul.f32 %v2416, %v2617
  %v2626 = vmul.f32 %v2417, %v2618
  %v2627 = vmul.f32 %v2418, %v2619
  %v2628 = vmul.f32 %v2419, %v2620
  %v2629 = vmul.f32 %v2420, %v2621
  %v2630 = vmul.f32 %v2421, %v2622
  %v2631 = vmul.f32 %v2422, %v2623
  %2640 = vrot.lane.b32.xlu0 %v2624, 1
  %v2641 = vpop.permute.xlu0 %2640
  %2642 = vrot.lane.b32.xlu0 %v2625, 1
  %v2643 = vpop.permute.xlu0 %2642
  %2644 = vrot.lane.b32.xlu0 %v2626, 1
  %v2645 = vpop.permute.xlu0 %2644
  %2646 = vrot.lane.b32.xlu0 %v2627, 1
  %v2647 = vpop.permute.xlu0 %2646
  %2648 = vrot.lane.b32.xlu0 %v2628, 1
  %v2649 = vpop.permute.xlu0 %2648
  %2650 = vrot.lane.b32.xlu0 %v2629, 1
  %v2651 = vpop.permute.xlu0 %2650
  %2652 = vrot.lane.b32.xlu0 %v2630, 1
  %v2653 = vpop.permute.xlu0 %2652
  %2654 = vrot.lane.b32.xlu0 %v2631, 1
  %v2655 = vpop.permute.xlu0 %2654
  %v2664 = vsub.f32 %v2130, %v2641
  %v2665 = vsub.f32 %v2131, %v2643
  %v2666 = vsub.f32 %v2132, %v2645
  %v2667 = vsub.f32 %v2133, %v2647
  %v2668 = vsub.f32 %v2134, %v2649
  %v2669 = vsub.f32 %v2135, %v2651
  %v2670 = vsub.f32 %v2136, %v2653
  %v2671 = vsub.f32 %v2137, %v2655
  %2672 = vmatpush.msra.mxu0 0.0
  %2673 = vmatpush.msra.mxu0 0.0
  %2674 = vmatpush.msra.mxu0 0.0
  %2675 = vmatpush.msra.mxu0 0.0
  %2676 = vmatpush.msra.mxu0 0.0
  %2677 = vmatpush.msra.mxu0 0.0
  %2678 = vmatpush.msra.mxu0 0.0
  %2679 = vmatpush.msra.mxu0 0.0
  %2680 = vmatpush.msra.mxu0 %v2145
  %2681 = vmatpush.msra.mxu0 %v2144
  %2682 = vmatpush.msra.mxu0 %v2143
  %2683 = vmatpush.msra.mxu0 %v2142
  %2684 = vmatpush.msra.mxu0 %v2141
  %2685 = vmatpush.msra.mxu0 %v2140
  %2686 = vmatpush.msra.mxu0 %v2139
  %2687 = vmatpush.msra.mxu0 %v2138
  %2688 = vmatmul.f32.gmra.mxu0 %v2351
  %v2689 = vpop.f32.mrf.mxu0
  %v2690 = vadd.f32 0.0, %v2689
  %2691 = vmatmul.f32.gmra.mxu0 %v2354
  %v2692 = vpop.f32.mrf.mxu0
  %v2693 = vadd.f32 0.0, %v2692
  %2694 = vmatmul.f32.gmra.mxu0 %v2357
  %v2695 = vpop.f32.mrf.mxu0
  %v2696 = vadd.f32 0.0, %v2695
  %2697 = vmatmul.f32.gmra.mxu0 %v2360
  %v2698 = vpop.f32.mrf.mxu0
  %v2699 = vadd.f32 0.0, %v2698
  %2700 = vmatmul.f32.gmra.mxu0 %v2363
  %v2701 = vpop.f32.mrf.mxu0
  %v2702 = vadd.f32 0.0, %v2701
  %2703 = vmatmul.f32.gmra.mxu0 %v2366
  %v2704 = vpop.f32.mrf.mxu0
  %v2705 = vadd.f32 0.0, %v2704
  %2706 = vmatmul.f32.gmra.mxu0 %v2369
  %v2707 = vpop.f32.mrf.mxu0
  %v2708 = vadd.f32 0.0, %v2707
  %2709 = vmatmul.f32.gmra.mxu0 %v2372
  %v2710 = vpop.f32.mrf.mxu0
  %v2711 = vadd.f32 0.0, %v2710
  %2712 = vdwg.mxu0
  %2714 = vset.pattern.permute.xlu0 0
  %2715 = vperm.xlu0 %2714, %v2616
  %v2716 = vpop.permute.xlu0 %2715
  %2719 = vset.pattern.permute.xlu0 0
  %2720 = vperm.xlu0 %2719, %v2617
  %v2721 = vpop.permute.xlu0 %2720
  %2724 = vset.pattern.permute.xlu0 0
  %2725 = vperm.xlu0 %2724, %v2618
  %v2726 = vpop.permute.xlu0 %2725
  %2729 = vset.pattern.permute.xlu0 0
  %2730 = vperm.xlu0 %2729, %v2619
  %v2731 = vpop.permute.xlu0 %2730
  %2734 = vset.pattern.permute.xlu0 0
  %2735 = vperm.xlu0 %2734, %v2620
  %v2736 = vpop.permute.xlu0 %2735
  %2739 = vset.pattern.permute.xlu0 0
  %2740 = vperm.xlu0 %2739, %v2621
  %v2741 = vpop.permute.xlu0 %2740
  %2744 = vset.pattern.permute.xlu0 0
  %2745 = vperm.xlu0 %2744, %v2622
  %v2746 = vpop.permute.xlu0 %2745
  %2749 = vset.pattern.permute.xlu0 0
  %2750 = vperm.xlu0 %2749, %v2623
  %v2751 = vpop.permute.xlu0 %2750
  %v2753 = vmul.f32 %v2690, %v2716
  %v2754 = vmul.f32 %v2693, %v2721
  %v2755 = vmul.f32 %v2696, %v2726
  %v2756 = vmul.f32 %v2699, %v2731
  %v2757 = vmul.f32 %v2702, %v2736
  %v2758 = vmul.f32 %v2705, %v2741
  %v2759 = vmul.f32 %v2708, %v2746
  %v2760 = vmul.f32 %v2711, %v2751
  %2762 = vset.pattern.permute.xlu0 1
  %2763 = vperm.xlu0 %2762, %v2664
  %v2764 = vpop.permute.xlu0 %2763
  %2767 = vset.pattern.permute.xlu0 1
  %2768 = vperm.xlu0 %2767, %v2665
  %v2769 = vpop.permute.xlu0 %2768
  %2772 = vset.pattern.permute.xlu0 1
  %2773 = vperm.xlu0 %2772, %v2666
  %v2774 = vpop.permute.xlu0 %2773
  %2777 = vset.pattern.permute.xlu0 1
  %2778 = vperm.xlu0 %2777, %v2667
  %v2779 = vpop.permute.xlu0 %2778
  %2782 = vset.pattern.permute.xlu0 1
  %2783 = vperm.xlu0 %2782, %v2668
  %v2784 = vpop.permute.xlu0 %2783
  %2787 = vset.pattern.permute.xlu0 1
  %2788 = vperm.xlu0 %2787, %v2669
  %v2789 = vpop.permute.xlu0 %2788
  %2792 = vset.pattern.permute.xlu0 1
  %2793 = vperm.xlu0 %2792, %v2670
  %v2794 = vpop.permute.xlu0 %2793
  %2797 = vset.pattern.permute.xlu0 1
  %2798 = vperm.xlu0 %2797, %v2671
  %v2799 = vpop.permute.xlu0 %2798
  %v2801 = vadd.f32 %v2753, %v2764
  %v2802 = vadd.f32 %v2754, %v2769
  %v2803 = vadd.f32 %v2755, %v2774
  %v2804 = vadd.f32 %v2756, %v2779
  %v2805 = vadd.f32 %v2757, %v2784
  %v2806 = vadd.f32 %v2758, %v2789
  %v2807 = vadd.f32 %v2759, %v2794
  %v2808 = vadd.f32 %v2760, %v2799
  %2809 = vst.msk [vmem:[%s9] sm:$0xff] %vm2146, %v2801
  %2810 = vst.msk [vmem:[%s9 + $0x8] sm:$0xff] %vm2146, %v2802
  %2811 = vst.msk [vmem:[%s9 + $0x10] sm:$0xff] %vm2146, %v2803
  %2812 = vst.msk [vmem:[%s9 + $0x18] sm:$0xff] %vm2146, %v2804
  %2813 = vst.msk [vmem:[%s9 + $0x20] sm:$0xff] %vm2146, %v2805
  %2814 = vst.msk [vmem:[%s9 + $0x28] sm:$0xff] %vm2146, %v2806
  %2815 = vst.msk [vmem:[%s9 + $0x30] sm:$0xff] %vm2146, %v2807
  %2816 = vst.msk [vmem:[%s9 + $0x38] sm:$0xff] %vm2146, %v2808
  %v2817 = vld [vmem:[%s2179] sm:$0xff]
  %v2818 = vld [vmem:[%s2179 + $0x8] sm:$0xff]
  %v2819 = vld [vmem:[%s2179 + $0x10] sm:$0xff]
  %v2820 = vld [vmem:[%s2179 + $0x18] sm:$0xff]
  %v2821 = vld [vmem:[%s2179 + $0x20] sm:$0xff]
  %v2822 = vld [vmem:[%s2179 + $0x28] sm:$0xff]
  %v2823 = vld [vmem:[%s2179 + $0x30] sm:$0xff]
  %v2824 = vld [vmem:[%s2179 + $0x38] sm:$0xff]
  %2825 = vmatpush.msra.mxu0 0.0
  %2826 = vmatpush.msra.mxu0 0.0
  %2827 = vmatpush.msra.mxu0 0.0
  %2828 = vmatpush.msra.mxu0 0.0
  %2829 = vmatpush.msra.mxu0 0.0
  %2830 = vmatpush.msra.mxu0 0.0
  %2831 = vmatpush.msra.mxu0 0.0
  %2832 = vmatpush.msra.mxu0 0.0
  %2833 = vmatpush.msra.mxu0 %v2824
  %2834 = vmatpush.msra.mxu0 %v2823
  %2835 = vmatpush.msra.mxu0 %v2822
  %2836 = vmatpush.msra.mxu0 %v2821
  %2837 = vmatpush.msra.mxu0 %v2820
  %2838 = vmatpush.msra.mxu0 %v2819
  %2839 = vmatpush.msra.mxu0 %v2818
  %2840 = vmatpush.msra.mxu0 %v2817
  %2841 = vmatmul.f32.gmra.mxu0 %v2351
  %v2842 = vpop.f32.mrf.mxu0
  %v2843 = vadd.f32 0.0, %v2842
  %2844 = vmatmul.f32.gmra.mxu0 %v2354
  %v2845 = vpop.f32.mrf.mxu0
  %v2846 = vadd.f32 0.0, %v2845
  %2847 = vmatmul.f32.gmra.mxu0 %v2357
  %v2848 = vpop.f32.mrf.mxu0
  %v2849 = vadd.f32 0.0, %v2848
  %2850 = vmatmul.f32.gmra.mxu0 %v2360
  %v2851 = vpop.f32.mrf.mxu0
  %v2852 = vadd.f32 0.0, %v2851
  %2853 = vmatmul.f32.gmra.mxu0 %v2363
  %v2854 = vpop.f32.mrf.mxu0
  %v2855 = vadd.f32 0.0, %v2854
  %2856 = vmatmul.f32.gmra.mxu0 %v2366
  %v2857 = vpop.f32.mrf.mxu0
  %v2858 = vadd.f32 0.0, %v2857
  %2859 = vmatmul.f32.gmra.mxu0 %v2369
  %v2860 = vpop.f32.mrf.mxu0
  %v2861 = vadd.f32 0.0, %v2860
  %2862 = vmatmul.f32.gmra.mxu0 %v2372
  %v2863 = vpop.f32.mrf.mxu0
  %v2864 = vadd.f32 0.0, %v2863
  %2865 = vdwg.mxu0
  %v2866 = vmul.f32 %v2843, %v2716
  %v2867 = vmul.f32 %v2846, %v2721
  %v2868 = vmul.f32 %v2849, %v2726
  %v2869 = vmul.f32 %v2852, %v2731
  %v2870 = vmul.f32 %v2855, %v2736
  %v2871 = vmul.f32 %v2858, %v2741
  %v2872 = vmul.f32 %v2861, %v2746
  %v2873 = vmul.f32 %v2864, %v2751
  %v2874 = vadd.f32 %v2866, %v2764
  %v2875 = vadd.f32 %v2867, %v2769
  %v2876 = vadd.f32 %v2868, %v2774
  %v2877 = vadd.f32 %v2869, %v2779
  %v2878 = vadd.f32 %v2870, %v2784
  %v2879 = vadd.f32 %v2871, %v2789
  %v2880 = vadd.f32 %v2872, %v2794
  %v2881 = vadd.f32 %v2873, %v2799
  %s2882 = scalar_lea.vmem %s9, 64
  %2883 = vst.msk [vmem:[%s2882] sm:$0xff] %vm2146, %v2874
  %2884 = vst.msk [vmem:[%s2882 + $0x8] sm:$0xff] %vm2146, %v2875
  %2885 = vst.msk [vmem:[%s2882 + $0x10] sm:$0xff] %vm2146, %v2876
  %2886 = vst.msk [vmem:[%s2882 + $0x18] sm:$0xff] %vm2146, %v2877
  %2887 = vst.msk [vmem:[%s2882 + $0x20] sm:$0xff] %vm2146, %v2878
  %2888 = vst.msk [vmem:[%s2882 + $0x28] sm:$0xff] %vm2146, %v2879
  %2889 = vst.msk [vmem:[%s2882 + $0x30] sm:$0xff] %vm2146, %v2880
  %2890 = vst.msk [vmem:[%s2882 + $0x38] sm:$0xff] %vm2146, %v2881
  %s2891 = scalar_lea.vmem %s4, 192
  %v2892 = vld [vmem:[%s2891] sm:$0xff]
  %v2893 = vld [vmem:[%s2891 + $0x8] sm:$0xff]
  %v2894 = vld [vmem:[%s2891 + $0x10] sm:$0xff]
  %v2895 = vld [vmem:[%s2891 + $0x18] sm:$0xff]
  %v2896 = vld [vmem:[%s2891 + $0x20] sm:$0xff]
  %v2897 = vld [vmem:[%s2891 + $0x28] sm:$0xff]
  %v2898 = vld [vmem:[%s2891 + $0x30] sm:$0xff]
  %v2899 = vld [vmem:[%s2891 + $0x38] sm:$0xff]
  %s2900 = scalar_lea.vmem %s5, 192
  %v2901 = vld [vmem:[%s2900] sm:$0xff]
  %v2902 = vld [vmem:[%s2900 + $0x8] sm:$0xff]
  %v2903 = vld [vmem:[%s2900 + $0x10] sm:$0xff]
  %v2904 = vld [vmem:[%s2900 + $0x18] sm:$0xff]
  %v2905 = vld [vmem:[%s2900 + $0x20] sm:$0xff]
  %v2906 = vld [vmem:[%s2900 + $0x28] sm:$0xff]
  %v2907 = vld [vmem:[%s2900 + $0x30] sm:$0xff]
  %v2908 = vld [vmem:[%s2900 + $0x38] sm:$0xff]
  %v2909 = vld [vmem:[%s3] sm:$0xff]
  %v2910 = vld [vmem:[%s3 + $0x8] sm:$0xff]
  %v2911 = vld [vmem:[%s3 + $0x10] sm:$0xff]
  %v2912 = vld [vmem:[%s3 + $0x18] sm:$0xff]
  %v2913 = vld [vmem:[%s3 + $0x20] sm:$0xff]
  %v2914 = vld [vmem:[%s3 + $0x28] sm:$0xff]
  %v2915 = vld [vmem:[%s3 + $0x30] sm:$0xff]
  %v2916 = vld [vmem:[%s3 + $0x38] sm:$0xff]
  %v2918 = vsel %vm2146, %v2892, 0
  %v2921 = vsel %vm2146, %v2893, 0
  %v2924 = vsel %vm2146, %v2894, 0
  %v2927 = vsel %vm2146, %v2895, 0
  %v2930 = vsel %vm2146, %v2896, 0
  %v2933 = vsel %vm2146, %v2897, 0
  %v2936 = vsel %vm2146, %v2898, 0
  %v2939 = vsel %vm2146, %v2899, 0
  %2941 = vmatpush.msra.mxu0 0.0
  %2942 = vmatpush.msra.mxu0 0.0
  %2943 = vmatpush.msra.mxu0 0.0
  %2944 = vmatpush.msra.mxu0 0.0
  %2945 = vmatpush.msra.mxu0 0.0
  %2946 = vmatpush.msra.mxu0 0.0
  %2947 = vmatpush.msra.mxu0 0.0
  %2948 = vmatpush.msra.mxu0 0.0
  %2949 = vmatpush.msra.mxu0 %v2916
  %2950 = vmatpush.msra.mxu0 %v2915
  %2951 = vmatpush.msra.mxu0 %v2914
  %2952 = vmatpush.msra.mxu0 %v2913
  %2953 = vmatpush.msra.mxu0 %v2912
  %2954 = vmatpush.msra.mxu0 %v2911
  %2955 = vmatpush.msra.mxu0 %v2910
  %2956 = vmatpush.msra.mxu0 %v2909
  %2957 = vmatmul.f32.gmra.mxu0 %v2918
  %v2958 = vpop.f32.mrf.mxu0
  %v2959 = vadd.f32 0.0, %v2958
  %2960 = vmatmul.f32.gmra.mxu0 %v2921
  %v2961 = vpop.f32.mrf.mxu0
  %v2962 = vadd.f32 0.0, %v2961
  %2963 = vmatmul.f32.gmra.mxu0 %v2924
  %v2964 = vpop.f32.mrf.mxu0
  %v2965 = vadd.f32 0.0, %v2964
  %2966 = vmatmul.f32.gmra.mxu0 %v2927
  %v2967 = vpop.f32.mrf.mxu0
  %v2968 = vadd.f32 0.0, %v2967
  %2969 = vmatmul.f32.gmra.mxu0 %v2930
  %v2970 = vpop.f32.mrf.mxu0
  %v2971 = vadd.f32 0.0, %v2970
  %2972 = vmatmul.f32.gmra.mxu0 %v2933
  %v2973 = vpop.f32.mrf.mxu0
  %v2974 = vadd.f32 0.0, %v2973
  %2975 = vmatmul.f32.gmra.mxu0 %v2936
  %v2976 = vpop.f32.mrf.mxu0
  %v2977 = vadd.f32 0.0, %v2976
  %2978 = vmatmul.f32.gmra.mxu0 %v2939
  %v2979 = vpop.f32.mrf.mxu0
  %v2980 = vadd.f32 0.0, %v2979
  %2981 = vdwg.mxu0
  %s2982 = scalar_lea.vmem %s3, 64
  %v2983 = vld [vmem:[%s2982] sm:$0xff]
  %v2984 = vld [vmem:[%s2982 + $0x8] sm:$0xff]
  %v2985 = vld [vmem:[%s2982 + $0x10] sm:$0xff]
  %v2986 = vld [vmem:[%s2982 + $0x18] sm:$0xff]
  %v2987 = vld [vmem:[%s2982 + $0x20] sm:$0xff]
  %v2988 = vld [vmem:[%s2982 + $0x28] sm:$0xff]
  %v2989 = vld [vmem:[%s2982 + $0x30] sm:$0xff]
  %v2990 = vld [vmem:[%s2982 + $0x38] sm:$0xff]
  %2991 = vmatpush.msra.mxu0 0.0
  %2992 = vmatpush.msra.mxu0 0.0
  %2993 = vmatpush.msra.mxu0 0.0
  %2994 = vmatpush.msra.mxu0 0.0
  %2995 = vmatpush.msra.mxu0 0.0
  %2996 = vmatpush.msra.mxu0 0.0
  %2997 = vmatpush.msra.mxu0 0.0
  %2998 = vmatpush.msra.mxu0 0.0
  %2999 = vmatpush.msra.mxu0 %v2990
  %3000 = vmatpush.msra.mxu0 %v2989
  %3001 = vmatpush.msra.mxu0 %v2988
  %3002 = vmatpush.msra.mxu0 %v2987
  %3003 = vmatpush.msra.mxu0 %v2986
  %3004 = vmatpush.msra.mxu0 %v2985
  %3005 = vmatpush.msra.mxu0 %v2984
  %3006 = vmatpush.msra.mxu0 %v2983
  %3007 = vmatmul.f32.gmra.mxu0 %v2918
  %v3008 = vpop.f32.mrf.mxu0
  %v3009 = vadd.f32 0.0, %v3008
  %3010 = vmatmul.f32.gmra.mxu0 %v2921
  %v3011 = vpop.f32.mrf.mxu0
  %v3012 = vadd.f32 0.0, %v3011
  %3013 = vmatmul.f32.gmra.mxu0 %v2924
  %v3014 = vpop.f32.mrf.mxu0
  %v3015 = vadd.f32 0.0, %v3014
  %3016 = vmatmul.f32.gmra.mxu0 %v2927
  %v3017 = vpop.f32.mrf.mxu0
  %v3018 = vadd.f32 0.0, %v3017
  %3019 = vmatmul.f32.gmra.mxu0 %v2930
  %v3020 = vpop.f32.mrf.mxu0
  %v3021 = vadd.f32 0.0, %v3020
  %3022 = vmatmul.f32.gmra.mxu0 %v2933
  %v3023 = vpop.f32.mrf.mxu0
  %v3024 = vadd.f32 0.0, %v3023
  %3025 = vmatmul.f32.gmra.mxu0 %v2936
  %v3026 = vpop.f32.mrf.mxu0
  %v3027 = vadd.f32 0.0, %v3026
  %3028 = vmatmul.f32.gmra.mxu0 %v2939
  %v3029 = vpop.f32.mrf.mxu0
  %v3030 = vadd.f32 0.0, %v3029
  %3031 = vdwg.mxu0
  %v3032 = vadd.f32 %v2959, %v3009
  %v3033 = vadd.f32 %v2962, %v3012
  %v3034 = vadd.f32 %v2965, %v3015
  %v3035 = vadd.f32 %v2968, %v3018
  %v3036 = vadd.f32 %v2971, %v3021
  %v3037 = vadd.f32 %v2974, %v3024
  %v3038 = vadd.f32 %v2977, %v3027
  %v3039 = vadd.f32 %v2980, %v3030
  %v3040 = vadd.f32 %v3032, 0.0
  %v3041 = vadd.f32 %v3033, 0.0
  %v3042 = vadd.f32 %v3034, 0.0
  %v3043 = vadd.f32 %v3035, 0.0
  %v3044 = vadd.f32 %v3036, 0.0
  %v3045 = vadd.f32 %v3037, 0.0
  %v3046 = vadd.f32 %v3038, 0.0
  %v3047 = vadd.f32 %v3039, 0.0
  %v3048 = vmul.f32 %v3040, 0.5
  %v3049 = vmul.f32 %v3041, 0.5
  %v3050 = vmul.f32 %v3042, 0.5
  %v3051 = vmul.f32 %v3043, 0.5
  %v3052 = vmul.f32 %v3044, 0.5
  %v3053 = vmul.f32 %v3045, 0.5
  %v3054 = vmul.f32 %v3046, 0.5
  %v3055 = vmul.f32 %v3047, 0.5
  %v3056 = vsub.f32 %v2959, %v3048
  %v3057 = vsub.f32 %v2962, %v3049
  %v3058 = vsub.f32 %v2965, %v3050
  %v3059 = vsub.f32 %v2968, %v3051
  %v3060 = vsub.f32 %v2971, %v3052
  %v3061 = vsub.f32 %v2974, %v3053
  %v3062 = vsub.f32 %v2977, %v3054
  %v3063 = vsub.f32 %v2980, %v3055
  %v3064 = vmul.f32 %v3056, %v3056
  %v3065 = vmul.f32 %v3057, %v3057
  %v3066 = vmul.f32 %v3058, %v3058
  %v3067 = vmul.f32 %v3059, %v3059
  %v3068 = vmul.f32 %v3060, %v3060
  %v3069 = vmul.f32 %v3061, %v3061
  %v3070 = vmul.f32 %v3062, %v3062
  %v3071 = vmul.f32 %v3063, %v3063
  %v3072 = vadd.f32 %v3064, 0.0
  %v3073 = vadd.f32 %v3065, 0.0
  %v3074 = vadd.f32 %v3066, 0.0
  %v3075 = vadd.f32 %v3067, 0.0
  %v3076 = vadd.f32 %v3068, 0.0
  %v3077 = vadd.f32 %v3069, 0.0
  %v3078 = vadd.f32 %v3070, 0.0
  %v3079 = vadd.f32 %v3071, 0.0
  %v3080 = vadd.f32 %v3072, 0.0
  %v3081 = vadd.f32 %v3073, 0.0
  %v3082 = vadd.f32 %v3074, 0.0
  %v3083 = vadd.f32 %v3075, 0.0
  %v3084 = vadd.f32 %v3076, 0.0
  %v3085 = vadd.f32 %v3077, 0.0
  %v3086 = vadd.f32 %v3078, 0.0
  %v3087 = vadd.f32 %v3079, 0.0
  %v3088 = vsub.f32 %v3009, %v3048
  %v3089 = vsub.f32 %v3012, %v3049
  %v3090 = vsub.f32 %v3015, %v3050
  %v3091 = vsub.f32 %v3018, %v3051
  %v3092 = vsub.f32 %v3021, %v3052
  %v3093 = vsub.f32 %v3024, %v3053
  %v3094 = vsub.f32 %v3027, %v3054
  %v3095 = vsub.f32 %v3030, %v3055
  %v3096 = vmul.f32 %v3088, %v3088
  %v3097 = vmul.f32 %v3089, %v3089
  %v3098 = vmul.f32 %v3090, %v3090
  %v3099 = vmul.f32 %v3091, %v3091
  %v3100 = vmul.f32 %v3092, %v3092
  %v3101 = vmul.f32 %v3093, %v3093
  %v3102 = vmul.f32 %v3094, %v3094
  %v3103 = vmul.f32 %v3095, %v3095
  %v3104 = vadd.f32 %v3096, 0.0
  %v3105 = vadd.f32 %v3097, 0.0
  %v3106 = vadd.f32 %v3098, 0.0
  %v3107 = vadd.f32 %v3099, 0.0
  %v3108 = vadd.f32 %v3100, 0.0
  %v3109 = vadd.f32 %v3101, 0.0
  %v3110 = vadd.f32 %v3102, 0.0
  %v3111 = vadd.f32 %v3103, 0.0
  %v3112 = vadd.f32 %v3080, %v3104
  %v3113 = vadd.f32 %v3081, %v3105
  %v3114 = vadd.f32 %v3082, %v3106
  %v3115 = vadd.f32 %v3083, %v3107
  %v3116 = vadd.f32 %v3084, %v3108
  %v3117 = vadd.f32 %v3085, %v3109
  %v3118 = vadd.f32 %v3086, %v3110
  %v3119 = vadd.f32 %v3087, %v3111
  %v3120 = vmul.f32 %v3112, 0.5
  %v3121 = vmul.f32 %v3113, 0.5
  %v3122 = vmul.f32 %v3114, 0.5
  %v3123 = vmul.f32 %v3115, 0.5
  %v3124 = vmul.f32 %v3116, 0.5
  %v3125 = vmul.f32 %v3117, 0.5
  %v3126 = vmul.f32 %v3118, 0.5
  %v3127 = vmul.f32 %v3119, 0.5
  %v3128 = vadd.f32 %v3120, 1e-05
  %v3129 = vadd.f32 %v3121, 1e-05
  %v3130 = vadd.f32 %v3122, 1e-05
  %v3131 = vadd.f32 %v3123, 1e-05
  %v3132 = vadd.f32 %v3124, 1e-05
  %v3133 = vadd.f32 %v3125, 1e-05
  %v3134 = vadd.f32 %v3126, 1e-05
  %v3135 = vadd.f32 %v3127, 1e-05
  %v3136 = vrsqrt.pop %v3128
  %v3137 = vmul.f32 %v3136, %v3128
  %v3138 = vmul.f32 %v3137, %v3136
  %v3139 = vmul.f32 0.5, %v3138
  %v3140 = vsub.f32 1.5, %v3139
  %v3141 = vmul.f32 %v3136, %v3140
  %vm3142 = vweird.f32 %v3128
  %vm3143 = vweird.f32 %v3136
  %vm3144 = vmor %vm3142, %vm3143
  %v3145 = vsel %vm3144, %v3136, %v3141
  %v3146 = vrsqrt.pop %v3129
  %v3147 = vmul.f32 %v3146, %v3129
  %v3148 = vmul.f32 %v3147, %v3146
  %v3149 = vmul.f32 0.5, %v3148
  %v3150 = vsub.f32 1.5, %v3149
  %v3151 = vmul.f32 %v3146, %v3150
  %vm3152 = vweird.f32 %v3129
  %vm3153 = vweird.f32 %v3146
  %vm3154 = vmor %vm3152, %vm3153
  %v3155 = vsel %vm3154, %v3146, %v3151
  %v3156 = vrsqrt.pop %v3130
  %v3157 = vmul.f32 %v3156, %v3130
  %v3158 = vmul.f32 %v3157, %v3156
  %v3159 = vmul.f32 0.5, %v3158
  %v3160 = vsub.f32 1.5, %v3159
  %v3161 = vmul.f32 %v3156, %v3160
  %vm3162 = vweird.f32 %v3130
  %vm3163 = vweird.f32 %v3156
  %vm3164 = vmor %vm3162, %vm3163
  %v3165 = vsel %vm3164, %v3156, %v3161
  %v3166 = vrsqrt.pop %v3131
  %v3167 = vmul.f32 %v3166, %v3131
  %v3168 = vmul.f32 %v3167, %v3166
  %v3169 = vmul.f32 0.5, %v3168
  %v3170 = vsub.f32 1.5, %v3169
  %v3171 = vmul.f32 %v3166, %v3170
  %vm3172 = vweird.f32 %v3131
  %vm3173 = vweird.f32 %v3166
  %vm3174 = vmor %vm3172, %vm3173
  %v3175 = vsel %vm3174, %v3166, %v3171
  %v3176 = vrsqrt.pop %v3132
  %v3177 = vmul.f32 %v3176, %v3132
  %v3178 = vmul.f32 %v3177, %v3176
  %v3179 = vmul.f32 0.5, %v3178
  %v3180 = vsub.f32 1.5, %v3179
  %v3181 = vmul.f32 %v3176, %v3180
  %vm3182 = vweird.f32 %v3132
  %vm3183 = vweird.f32 %v3176
  %vm3184 = vmor %vm3182, %vm3183
  %v3185 = vsel %vm3184, %v3176, %v3181
  %v3186 = vrsqrt.pop %v3133
  %v3187 = vmul.f32 %v3186, %v3133
  %v3188 = vmul.f32 %v3187, %v3186
  %v3189 = vmul.f32 0.5, %v3188
  %v3190 = vsub.f32 1.5, %v3189
  %v3191 = vmul.f32 %v3186, %v3190
  %vm3192 = vweird.f32 %v3133
  %vm3193 = vweird.f32 %v3186
  %vm3194 = vmor %vm3192, %vm3193
  %v3195 = vsel %vm3194, %v3186, %v3191
  %v3196 = vrsqrt.pop %v3134
  %v3197 = vmul.f32 %v3196, %v3134
  %v3198 = vmul.f32 %v3197, %v3196
  %v3199 = vmul.f32 0.5, %v3198
  %v3200 = vsub.f32 1.5, %v3199
  %v3201 = vmul.f32 %v3196, %v3200
  %vm3202 = vweird.f32 %v3134
  %vm3203 = vweird.f32 %v3196
  %vm3204 = vmor %vm3202, %vm3203
  %v3205 = vsel %vm3204, %v3196, %v3201
  %v3206 = vrsqrt.pop %v3135
  %v3207 = vmul.f32 %v3206, %v3135
  %v3208 = vmul.f32 %v3207, %v3206
  %v3209 = vmul.f32 0.5, %v3208
  %v3210 = vsub.f32 1.5, %v3209
  %v3211 = vmul.f32 %v3206, %v3210
  %vm3212 = vweird.f32 %v3135
  %vm3213 = vweird.f32 %v3206
  %vm3214 = vmor %vm3212, %vm3213
  %v3215 = vsel %vm3214, %v3206, %v3211
  %v3216 = vmul.f32 %v3145, %v2901
  %v3217 = vmul.f32 %v3155, %v2902
  %v3218 = vmul.f32 %v3165, %v2903
  %v3219 = vmul.f32 %v3175, %v2904
  %v3220 = vmul.f32 %v3185, %v2905
  %v3221 = vmul.f32 %v3195, %v2906
  %v3222 = vmul.f32 %v3205, %v2907
  %v3223 = vmul.f32 %v3215, %v2908
  %v3224 = vmul.f32 %v3048, %v3216
  %v3225 = vmul.f32 %v3049, %v3217
  %v3226 = vmul.f32 %v3050, %v3218
  %v3227 = vmul.f32 %v3051, %v3219
  %v3228 = vmul.f32 %v3052, %v3220
  %v3229 = vmul.f32 %v3053, %v3221
  %v3230 = vmul.f32 %v3054, %v3222
  %v3231 = vmul.f32 %v3055, %v3223
  %3240 = vrot.lane.b32.xlu0 %v3224, 1
  %v3241 = vpop.permute.xlu0 %3240
  %3242 = vrot.lane.b32.xlu0 %v3225, 1
  %v3243 = vpop.permute.xlu0 %3242
  %3244 = vrot.lane.b32.xlu0 %v3226, 1
  %v3245 = vpop.permute.xlu0 %3244
  %3246 = vrot.lane.b32.xlu0 %v3227, 1
  %v3247 = vpop.permute.xlu0 %3246
  %3248 = vrot.lane.b32.xlu0 %v3228, 1
  %v3249 = vpop.permute.xlu0 %3248
  %3250 = vrot.lane.b32.xlu0 %v3229, 1
  %v3251 = vpop.permute.xlu0 %3250
  %3252 = vrot.lane.b32.xlu0 %v3230, 1
  %v3253 = vpop.permute.xlu0 %3252
  %3254 = vrot.lane.b32.xlu0 %v3231, 1
  %v3255 = vpop.permute.xlu0 %3254
  %v3264 = vsub.f32 %v2901, %v3241
  %v3265 = vsub.f32 %v2902, %v3243
  %v3266 = vsub.f32 %v2903, %v3245
  %v3267 = vsub.f32 %v2904, %v3247
  %v3268 = vsub.f32 %v2905, %v3249
  %v3269 = vsub.f32 %v2906, %v3251
  %v3270 = vsub.f32 %v2907, %v3253
  %v3271 = vsub.f32 %v2908, %v3255
  %v3272 = vmul.f32 %v2959, %v3216
  %v3273 = vmul.f32 %v2962, %v3217
  %v3274 = vmul.f32 %v2965, %v3218
  %v3275 = vmul.f32 %v2968, %v3219
  %v3276 = vmul.f32 %v2971, %v3220
  %v3277 = vmul.f32 %v2974, %v3221
  %v3278 = vmul.f32 %v2977, %v3222
  %v3279 = vmul.f32 %v2980, %v3223
  %3288 = vrot.lane.b32.xlu0 %v3264, 127
  %v3289 = vpop.permute.xlu0 %3288
  %3290 = vrot.lane.b32.xlu0 %v3265, 127
  %v3291 = vpop.permute.xlu0 %3290
  %3292 = vrot.lane.b32.xlu0 %v3266, 127
  %v3293 = vpop.permute.xlu0 %3292
  %3294 = vrot.lane.b32.xlu0 %v3267, 127
  %v3295 = vpop.permute.xlu0 %3294
  %3296 = vrot.lane.b32.xlu0 %v3268, 127
  %v3297 = vpop.permute.xlu0 %3296
  %3298 = vrot.lane.b32.xlu0 %v3269, 127
  %v3299 = vpop.permute.xlu0 %3298
  %3300 = vrot.lane.b32.xlu0 %v3270, 127
  %v3301 = vpop.permute.xlu0 %3300
  %3302 = vrot.lane.b32.xlu0 %v3271, 127
  %v3303 = vpop.permute.xlu0 %3302
  %v3312 = vadd.f32 %v3272, %v3289
  %v3313 = vadd.f32 %v3273, %v3291
  %v3314 = vadd.f32 %v3274, %v3293
  %v3315 = vadd.f32 %v3275, %v3295
  %v3316 = vadd.f32 %v3276, %v3297
  %v3317 = vadd.f32 %v3277, %v3299
  %v3318 = vadd.f32 %v3278, %v3301
  %v3319 = vadd.f32 %v3279, %v3303
  %vm3320 = vcmask 7168
  %3321 = vst.msk [vmem:[%s10] sm:$0xff] %vm3320, %v3312
  %3322 = vst.msk [vmem:[%s10 + $0x8] sm:$0xff] %vm3320, %v3313
  %3323 = vst.msk [vmem:[%s10 + $0x10] sm:$0xff] %vm3320, %v3314
  %3324 = vst.msk [vmem:[%s10 + $0x18] sm:$0xff] %vm3320, %v3315
  %3325 = vst.msk [vmem:[%s10 + $0x20] sm:$0xff] %vm3320, %v3316
  %3326 = vst.msk [vmem:[%s10 + $0x28] sm:$0xff] %vm3320, %v3317
  %3327 = vst.msk [vmem:[%s10 + $0x30] sm:$0xff] %vm3320, %v3318
  %3328 = vst.msk [vmem:[%s10 + $0x38] sm:$0xff] %vm3320, %v3319
  %v3329 = vmul.f32 %v3009, %v3216
  %v3330 = vmul.f32 %v3012, %v3217
  %v3331 = vmul.f32 %v3015, %v3218
  %v3332 = vmul.f32 %v3018, %v3219
  %v3333 = vmul.f32 %v3021, %v3220
  %v3334 = vmul.f32 %v3024, %v3221
  %v3335 = vmul.f32 %v3027, %v3222
  %v3336 = vmul.f32 %v3030, %v3223
  %v3337 = vadd.f32 %v3329, %v3289
  %v3338 = vadd.f32 %v3330, %v3291
  %v3339 = vadd.f32 %v3331, %v3293
  %v3340 = vadd.f32 %v3332, %v3295
  %v3341 = vadd.f32 %v3333, %v3297
  %v3342 = vadd.f32 %v3334, %v3299
  %v3343 = vadd.f32 %v3335, %v3301
  %v3344 = vadd.f32 %v3336, %v3303
  %s3345 = scalar_lea.vmem %s10, 64
  %3346 = vst.msk [vmem:[%s3345] sm:$0xff] %vm3320, %v3337
  %3347 = vst.msk [vmem:[%s3345 + $0x8] sm:$0xff] %vm3320, %v3338
  %3348 = vst.msk [vmem:[%s3345 + $0x10] sm:$0xff] %vm3320, %v3339
  %3349 = vst.msk [vmem:[%s3345 + $0x18] sm:$0xff] %vm3320, %v3340
  %3350 = vst.msk [vmem:[%s3345 + $0x20] sm:$0xff] %vm3320, %v3341
  %3351 = vst.msk [vmem:[%s3345 + $0x28] sm:$0xff] %vm3320, %v3342
  %3352 = vst.msk [vmem:[%s3345 + $0x30] sm:$0xff] %vm3320, %v3343
  %3353 = vst.msk [vmem:[%s3345 + $0x38] sm:$0xff] %vm3320, %v3344
  // Predicated region
  $region26: #{baseline_framework_forward.1} parent=0 // pred_check
    _
  $region27: #{baseline_framework_forward.1} parent=0 // pred_check_branch
    %3355 = sbr.rel (0) target = $region29
  $region28: #{baseline_framework_forward.1} parent=0 // pred_region
    _
  $region29: #{baseline_framework_forward.1} parent=0 // pred_fallthru
    _
  // Predicated region
  $region30: #{baseline_framework_forward.1} parent=0 // pred_check
    _
  $region31: #{baseline_framework_forward.1} parent=0 // pred_check_branch
    %3357 = sbr.rel (0) target = $region33
  $region32: #{baseline_framework_forward.1} parent=0 // pred_region
    _
  $region33: #{baseline_framework_forward.1} parent=0 // pred_fallthru
    _
  // Predicated region
  $region34: #{baseline_framework_forward.1} parent=0 // pred_check
    _
  $region35: #{baseline_framework_forward.1} parent=0 // pred_check_branch
    %3359 = sbr.rel (0) target = $region37
  $region36: #{baseline_framework_forward.1} parent=0 // pred_region
    _
  $region37: #{baseline_framework_forward.1} parent=0 // pred_fallthru
    _
  // Predicated region
  $region38: #{baseline_framework_forward.1} parent=0 // pred_check
    _
  $region39: #{baseline_framework_forward.1} parent=0 // pred_check_branch
    %3361 = sbr.rel (0) target = $region41
  $region40: #{baseline_framework_forward.1} parent=0 // pred_region
    _
  $region41: #{baseline_framework_forward.1} parent=0 // pred_fallthru
    _
  // Predicated region
  $region42: #{baseline_framework_forward.1} parent=0 // pred_check
    _
  $region43: #{baseline_framework_forward.1} parent=0 // pred_check_branch
    %3363 = sbr.rel (0) target = $region45
  $region44: #{baseline_framework_forward.1} parent=0 // pred_region
    _
  $region45: #{baseline_framework_forward.1} parent=0 // pred_fallthru
    _
  // Predicated region
  $region46: #{baseline_framework_forward.1} parent=0 // pred_check
    _
  $region47: #{baseline_framework_forward.1} parent=0 // pred_check_branch
    %3365 = sbr.rel (0) target = $region49
  $region48: #{baseline_framework_forward.1} parent=0 // pred_region
    _
  $region49: #{baseline_framework_forward.1} parent=0 // pred_fallthru
    _
  // Predicated region
  $region50: #{baseline_framework_forward.1} parent=0 // pred_check
    _
  $region51: #{baseline_framework_forward.1} parent=0 // pred_check_branch
    %3367 = sbr.rel (0) target = $region53
  $region52: #{baseline_framework_forward.1} parent=0 // pred_region
    _
  $region53: #{baseline_framework_forward.1} parent=0 // pred_fallthru
    _
  // Predicated region
  $region54: #{baseline_framework_forward.1} parent=0 // pred_check
    _
  $region55: #{baseline_framework_forward.1} parent=0 // pred_check_branch
    %3369 = sbr.rel (0) target = $region57
  $region56: #{baseline_framework_forward.1} parent=0 // pred_region
    _
  $region57: #{baseline_framework_forward.1} parent=0 // pred_fallthru
    _
  // Predicated region
  $region58: #{baseline_framework_forward.1} parent=0 // pred_check
    _
  $region59: #{baseline_framework_forward.1} parent=0 // pred_check_branch
    %3371 = sbr.rel (0) target = $region61
  $region60: #{baseline_framework_forward.1} parent=0 // pred_region
    _
  $region61: #{baseline_framework_forward.1} parent=0 // pred_fallthru
    _
  // Predicated region
  $region62: #{baseline_framework_forward.1} parent=0 // pred_check
    _
  $region63: #{baseline_framework_forward.1} parent=0 // pred_check_branch
    %3373 = sbr.rel (0) target = $region65
  $region64: #{baseline_framework_forward.1} parent=0 // pred_region
    _
  $region65: #{baseline_framework_forward.1} parent=0 // pred_fallthru
    _

</llo_original>
